<compile_context>
chip_gen: v5e
topology: v5e:2x2
jax: 0.10.0
libtpu: 0.0.40
codegen_flags: <defaults>
</compile_context>

<pallas_src>
import math

import jax
import jax.numpy as jnp
from jax import lax
from jax.experimental import pallas as pl
from jax.experimental.pallas import tpu as pltpu

HIDDEN = 32
HEADS = 4
NH = HIDDEN // HEADS
LAYERS = 2
LEAKY_SLOPE = 0.2
BN_EPS = 1e-5
NEG_BIG = -1e30          # finite "-inf" -> exp underflows to 0, no NaN hazard for masked rows


def _batch_tile(bsz, cap=8):
    t = min(bsz, cap)
    while bsz % t:
        t -= 1
    return t


# ----------------------------- GAT layer (per batch-tile; residual + node-BN stats fused) -----------------
def _gat_kernel(h_ref, adj_ref, dis_ref, wt_ref, gb_ref, a12_ref, wea3_ref, seb_ref,
                hs_ref, hb_ref, o_ref, sum_ref, ssq_ref):
    B, n, H = h_ref.shape
    heads = wea3_ref.shape[1]
    nh = H // heads

    h_raw = h_ref[...]                                                          # [B, n, H]
    h2 = h_raw.reshape(B * n, H)
    # g = linear(node_bn(h))          (pending node-BN affine folded into wt/gb on the host)
    g2 = jnp.dot(h2, wt_ref[...], preferred_element_type=jnp.float32) + gb_ref[...]        # [B*n, H]
    # w1.g_i | w2.g_j  (A1|A2 fused)
    s12 = jnp.dot(g2, a12_ref[...], preferred_element_type=jnp.float32)                    # [B*n, 2*heads]
    # w3.linear_e(edge_bn(dis))       (linear_e, per-head w3 and pending edge-BN affine folded into wea3/seb)
    dis2 = dis_ref[...].reshape(B * n * n, H)
    se2 = jnp.dot(dis2, wea3_ref[...], preferred_element_type=jnp.float32) + seb_ref[...]  # [B*n*n, heads]

    g3 = g2.reshape(B, n, H)
    s12_3 = s12.reshape(B, n, 2 * heads)
    se4 = se2.reshape(B, n, n, heads)
    masked = adj_ref[...] == 0.0                                                # [B, n, n]

    head_outs = []
    for hd in range(heads):
        si = s12_3[:, :, hd:hd + 1]                                             # [B, n, 1] (varies with i)
        sj = s12_3[:, :, heads + hd][:, None, :]                                # [B, 1, n] (varies with j)
        e = si + sj + se4[:, :, :, hd]                                          # [B, n, n] (j on lanes)
        e = jnp.where(e >= 0.0, e, LEAKY_SLOPE * e)                             # LeakyReLU(0.2)
        e = jnp.where(masked, NEG_BIG, e)
        m = jnp.max(e, axis=-1, keepdims=True)                                  # softmax over j (lanes)
        p = jnp.exp(e - m)
        a = p * pl.reciprocal(jnp.sum(p, axis=-1, keepdims=True), approx=True)
        gh = g3[:, :, hd * nh:(hd + 1) * nh]                                    # [B, n, nh]
        head_outs.append(jnp.einsum('bij,bjf->bif', a, gh,
                                    preferred_element_type=jnp.float32))        # MXU aggregation
    attn = jnp.concatenate(head_outs, axis=-1)                                  # [B, n, H]

    # residual uses the *normalized* h
    h_norm = h_raw * hs_ref[...].reshape(1, 1, H) + hb_ref[...].reshape(1, 1, H)
    out = attn + h_norm
    o_ref[...] = out.astype(o_ref.dtype)

    # node-BN partial statistics of this tile's output (finalized on the host)
    out2 = out.reshape(B * n, H)
    sum_ref[...] = jnp.sum(out2, axis=0, keepdims=True).reshape(1, 1, H)
    ssq_ref[...] = jnp.sum(out2 * out2, axis=0, keepdims=True).reshape(1, 1, H)


def gat_layer(h, adj, dis, wt_eff, g_bias, a12, wea3_eff, se_bias, hscale, hshift):
    bsz, n, H = h.shape
    heads = wea3_eff.shape[1]
    bt = _batch_tile(bsz)
    T = bsz // bt
    return pl.pallas_call(
        _gat_kernel,
        out_shape=(jax.ShapeDtypeStruct((bsz, n, H), jnp.float32),
                   jax.ShapeDtypeStruct((T, 1, H), jnp.float32),
                   jax.ShapeDtypeStruct((T, 1, H), jnp.float32)),
        grid=(T,),
        in_specs=[
            pl.BlockSpec((bt, n, H), lambda b: (b, 0, 0)),
            pl.BlockSpec((bt, n, n), lambda b: (b, 0, 0)),
            pl.BlockSpec((bt, n, n, H), lambda b: (b, 0, 0, 0)),
            pl.BlockSpec((H, H), lambda b: (0, 0)),
            pl.BlockSpec((1, H), lambda b: (0, 0)),
            pl.BlockSpec((H, 2 * heads), lambda b: (0, 0)),
            pl.BlockSpec((H, heads), lambda b: (0, 0)),
            pl.BlockSpec((1, heads), lambda b: (0, 0)),
            pl.BlockSpec((1, H), lambda b: (0, 0)),
            pl.BlockSpec((1, H), lambda b: (0, 0)),
        ],
        out_specs=(pl.BlockSpec((bt, n, H), lambda b: (b, 0, 0)),
                   pl.BlockSpec((1, 1, H), lambda b: (b, 0, 0)),
                   pl.BlockSpec((1, 1, H), lambda b: (b, 0, 0))),
        compiler_params=pltpu.CompilerParams(dimension_semantics=("parallel",)),
    )(h, adj, dis, wt_eff, g_bias.reshape(1, H), a12, wea3_eff, se_bias.reshape(1, heads),
      hscale.reshape(1, H), hshift.reshape(1, H))


# ----------------------------- EdgeTransition (sigmoid + residual + edge-BN stats fused) -------------------
def _edge_kernel(h_ref, dis_ref, ew_ref, eb_ref, h12_ref, b12_ref, ds_ref, db_ref,
                 o_ref, sum_ref, ssq_ref):
    B, n, H = h_ref.shape
    dis_raw = dis_ref[...]                                                      # [B, n, n, H]
    dis2 = dis_raw.reshape(B * n * n, H)
    # Eweight1(edge_bn(dis))          (pending edge-BN affine folded into ew/eb)
    ed = jnp.dot(dis2, ew_ref[...], preferred_element_type=jnp.float32) + eb_ref[...]      # [B*n*n, H]
    # Hweight1(node_bn(h)) | Hweight2(node_bn(h))   (fused; node-BN affine folded into h12/b12)
    h2 = h_ref[...].reshape(B * n, H)
    hh = jnp.dot(h2, h12_ref[...], preferred_element_type=jnp.float32) + b12_ref[...]      # [B*n, 2H]
    hj = hh[:, :H].reshape(B, n, H)[:, None, :, :]                              # broadcast over i
    hi = hh[:, H:].reshape(B, n, H)[:, :, None, :]                              # broadcast over j
    t = ed.reshape(B, n, n, H) + hj + hi
    sig = pl.reciprocal(1.0 + jnp.exp(-t), approx=True)                         # sigmoid via EUP
    dis_norm = dis_raw * ds_ref[...].reshape(1, 1, 1, H) + db_ref[...].reshape(1, 1, 1, H)
    out = sig + dis_norm                                                        # residual uses normalized dis
    o_ref[...] = out.astype(o_ref.dtype)

    out2 = out.reshape(B * n * n, H)
    sum_ref[...] = jnp.sum(out2, axis=0, keepdims=True).reshape(1, 1, H)
    ssq_ref[...] = jnp.sum(out2 * out2, axis=0, keepdims=True).reshape(1, 1, H)


def edge_layer(h, dis, ew_eff, eb_eff, h12_eff, b12_eff, dscale, dshift):
    bsz, n, H = h.shape
    bt = _batch_tile(bsz)
    T = bsz // bt
    return pl.pallas_call(
        _edge_kernel,
        out_shape=(jax.ShapeDtypeStruct((bsz, n, n, H), jnp.float32),
                   jax.ShapeDtypeStruct((T, 1, H), jnp.float32),
                   jax.ShapeDtypeStruct((T, 1, H), jnp.float32)),
        grid=(T,),
        in_specs=[
            pl.BlockSpec((bt, n, H), lambda b: (b, 0, 0)),
            pl.BlockSpec((bt, n, n, H), lambda b: (b, 0, 0, 0)),
            pl.BlockSpec((H, H), lambda b: (0, 0)),
            pl.BlockSpec((1, H), lambda b: (0, 0)),
            pl.BlockSpec((H, 2 * H), lambda b: (0, 0)),
            pl.BlockSpec((1, 2 * H), lambda b: (0, 0)),
            pl.BlockSpec((1, H), lambda b: (0, 0)),
            pl.BlockSpec((1, H), lambda b: (0, 0)),
        ],
        out_specs=(pl.BlockSpec((bt, n, n, H), lambda b: (b, 0, 0, 0)),
                   pl.BlockSpec((1, 1, H), lambda b: (b, 0, 0)),
                   pl.BlockSpec((1, 1, H), lambda b: (b, 0, 0))),
        compiler_params=pltpu.CompilerParams(dimension_semantics=("parallel",)),
    )(h, dis, ew_eff, eb_eff.reshape(1, H), h12_eff, b12_eff.reshape(1, 2 * H),
      dscale.reshape(1, H), dshift.reshape(1, H))


# ----------------------------- MultiheadAttention (tgt_len = 1, residual fused, no head loop) --------------
def _mha_kernel(q_ref, h_ref, wq_ref, bq_ref, wkv_ref, bkv_ref, wo_ref, bo_ref,
                hsel_ref, hselt_ref, o_ref, s_ref):
    B, n, H = h_ref.shape
    heads = hsel_ref.shape[1]
    nh = H // heads
    scale = 1.0 / math.sqrt(nh)

    q = q_ref[...].reshape(B, H)                                                # normalized h_start
    qp = jnp.dot(q, wq_ref[...], preferred_element_type=jnp.float32) + bq_ref[...]         # [B, H]
    h2 = h_ref[...].reshape(B * n, H)
    kv = jnp.dot(h2, wkv_ref[...], preferred_element_type=jnp.float32) + bkv_ref[...]      # [B*n, 2H]
    k3 = kv[:, :H].reshape(B, n, H)
    v2 = kv[:, H:]                                                              # [B*n, H]

    qk = k3 * (qp * scale)[:, None, :]                                          # [B, n, H]
    s = jnp.dot(qk.reshape(B * n, H), hsel_ref[...], preferred_element_type=jnp.float32)   # [B*n, heads]
    s3 = s.reshape(B, n, heads)
    m = jnp.max(s3, axis=1, keepdims=True)                                      # softmax over src (n)
    p = jnp.exp(s3 - m)
    a = p * pl.reciprocal(jnp.sum(p, axis=1, keepdims=True), approx=True)       # [B, n, heads]

    # heads-averaged attention weights (torch need_weights default)
    s_ref[...] = (jnp.sum(a, axis=-1) * (1.0 / heads)).reshape(B, 1, n).astype(s_ref.dtype)

    # per-channel weights a_full[b*n+j, c] = a[b, j, head(c)]  -> context via elementwise + sublane reduce
    a_full = jnp.dot(a.reshape(B * n, heads), hselt_ref[...], preferred_element_type=jnp.float32)  # [B*n, H]
    ctx = jnp.sum((a_full * v2).reshape(B, n, H), axis=1)                       # [B, H]
    o = jnp.dot(ctx, wo_ref[...], preferred_element_type=jnp.float32) + bo_ref[...] + q    # + residual h_start
    o_ref[...] = o.reshape(B, 1, H).astype(o_ref.dtype)


def mha_layer(hstart, h, wq_t, bq, wkv_eff, bkv_eff, wo_t, bo, hsel, hselt):
    bsz, n, H = h.shape
    heads = hsel.shape[1]
    bt = _batch_tile(bsz)
    T = bsz // bt
    return pl.pallas_call(
        _mha_kernel,
        out_shape=(jax.ShapeDtypeStruct((bsz, 1, H), jnp.float32),
                   jax.ShapeDtypeStruct((bsz, 1, n), jnp.float32)),
        grid=(T,),
        in_specs=[
            pl.BlockSpec((bt, 1, H), lambda b: (b, 0, 0)),
            pl.BlockSpec((bt, n, H), lambda b: (b, 0, 0)),
            pl.BlockSpec((H, H), lambda b: (0, 0)),
            pl.BlockSpec((1, H), lambda b: (0, 0)),
            pl.BlockSpec((H, 2 * H), lambda b: (0, 0)),
            pl.BlockSpec((1, 2 * H), lambda b: (0, 0)),
            pl.BlockSpec((H, H), lambda b: (0, 0)),
            pl.BlockSpec((1, H), lambda b: (0, 0)),
            pl.BlockSpec((H, heads), lambda b: (0, 0)),
            pl.BlockSpec((heads, H), lambda b: (0, 0)),
        ],
        out_specs=(pl.BlockSpec((bt, 1, H), lambda b: (b, 0, 0)),
                   pl.BlockSpec((bt, 1, n), lambda b: (b, 0, 0))),
        compiler_params=pltpu.CompilerParams(dimension_semantics=("parallel",)),
    )(hstart, h, wq_t, bq.reshape(1, H), wkv_eff, bkv_eff.reshape(1, 2 * H),
      wo_t, bo.reshape(1, H), hsel, hselt)


# ----------------------------- small BN over rows (att_norm on h_start, [bsz, 1, H]) -----------------------
def _att_bn_kernel(x_ref, g_ref, b_ref, o_ref):
    x = x_ref[...]                                                              # [bsz, 1, H]
    B = x.shape[0]
    mean = jnp.sum(x, axis=0, keepdims=True) * (1.0 / B)
    d = x - mean
    var = jnp.sum(d * d, axis=0, keepdims=True) * (1.0 / B)
    inv = lax.rsqrt(var + BN_EPS)
    g = g_ref[...].reshape(1, 1, -1)
    b = b_ref[...].reshape(1, 1, -1)
    o_ref[...] = (d * inv * g + b).astype(o_ref.dtype)


def att_batch_norm(x, gamma, beta):
    bsz, _, H = x.shape
    return pl.pallas_call(
        _att_bn_kernel,
        out_shape=jax.ShapeDtypeStruct((bsz, 1, H), jnp.float32),
    )(x, gamma.reshape(1, H), beta.reshape(1, H))


# ----------------------------- tiled affine (materialize the final pending edge-BN on dis) -----------------
def _affine_kernel(x_ref, sc_ref, sh_ref, o_ref):
    H = x_ref.shape[-1]
    sc = sc_ref[...].reshape(1, 1, H)
    sh = sh_ref[...].reshape(1, 1, H)
    o_ref[...] = (x_ref[...] * sc + sh).astype(o_ref.dtype)


def affine_apply(x3, scale, shift):
    bsz, R, H = x3.shape
    bt = _batch_tile(bsz)
    T = bsz // bt
    return pl.pallas_call(
        _affine_kernel,
        out_shape=jax.ShapeDtypeStruct((bsz, R, H), jnp.float32),
        grid=(T,),
        in_specs=[pl.BlockSpec((bt, R, H), lambda b: (b, 0, 0)),
                  pl.BlockSpec((1, H), lambda b: (0, 0)),
                  pl.BlockSpec((1, H), lambda b: (0, 0))],
        out_specs=pl.BlockSpec((bt, R, H), lambda b: (b, 0, 0)),
        compiler_params=pltpu.CompilerParams(dimension_semantics=("parallel",)),
    )(x3, scale.reshape(1, H), shift.reshape(1, H))


# ----------------------------- BN finalize (tiny host-side glue: [T,1,H] partials -> per-channel affine) ---
def _bn_affine(psum, psq, count, gamma, beta):
    s = jnp.sum(psum, axis=(0, 1))
    ss = jnp.sum(psq, axis=(0, 1))
    mean = s / count
    var = jnp.maximum(ss / count - mean * mean, 0.0)                            # biased variance
    scale = gamma * lax.rsqrt(var + BN_EPS)
    return scale, beta - mean * scale


# ----------------------------- parameters ------------------------------------------------------------------
def init_params(key, H, heads, layers):
    nh = H // heads
    eye_h = jnp.eye(heads, dtype=jnp.float32)

    def nrm(k, shape, scale=0.1):
        return scale * jax.random.normal(k, shape, dtype=jnp.float32)

    params = []
    for _ in range(layers):
        key, *ks = jax.random.split(key, 20)
        W, We = nrm(ks[0], (H, H)), nrm(ks[1], (H, H))          # GAT linear / linear_e (no bias)
        aw = nrm(ks[2], (3 * nh,))                              # attn weight vector [w1|w2|w3]
        A1 = jnp.kron(eye_h, aw[:nh].reshape(nh, 1))            # [H, heads] per-head block columns
        A2 = jnp.kron(eye_h, aw[nh:2 * nh].reshape(nh, 1))
        A3 = jnp.kron(eye_h, aw[2 * nh:].reshape(nh, 1))
        params.append(dict(
            Wt=W.T,                                             # pre-transposed: g = h @ Wt
            A12=jnp.concatenate([A1, A2], axis=1),              # [H, 2*heads]
            WeA3=We.T @ A3,                                     # linear_e folded with per-head w3
            bn_n_gamma=jnp.ones((H,), jnp.float32), bn_n_beta=jnp.zeros((H,), jnp.float32),
            Ewt=nrm(ks[3], (H, H)).T, eb=nrm(ks[4], (H,)),
            H12t=jnp.concatenate([nrm(ks[5], (H, H)).T, nrm(ks[7], (H, H)).T], axis=1),
            b12=jnp.concatenate([nrm(ks[6], (H,)), nrm(ks[8], (H,))]),
            bn_e_gamma=jnp.ones((H,), jnp.float32), bn_e_beta=jnp.zeros((H,), jnp.float32),
            Wq_t=nrm(ks[9], (H, H)).T, bq=nrm(ks[12], (H,)),
            Wkv_t=jnp.concatenate([nrm(ks[10], (H, H)).T, nrm(ks[11], (H, H)).T], axis=1),
            bkv=jnp.concatenate([nrm(ks[13], (H,)), nrm(ks[14], (H,))]),
            Wo_t=nrm(ks[15], (H, H)).T, bo=nrm(ks[16], (H,)),
            bn_a_gamma=jnp.ones((H,), jnp.float32), bn_a_beta=jnp.zeros((H,), jnp.float32),
        ))
    return params


# ----------------------------- encoder forward -------------------------------------------------------------
def graph_attention_encoder(params, h, adj, dis, h_start):
    bsz, n, H = h.shape
    heads = HEADS
    nh = H // heads
    hsel = jnp.kron(jnp.eye(heads, dtype=jnp.float32), jnp.ones((nh, 1), jnp.float32))   # [H, heads]
    hselt = hsel.T

    hstart = jnp.transpose(h_start, (1, 0, 2))                      # [bsz, 1, H]
    ones = jnp.ones((H,), jnp.float32)
    zeros = jnp.zeros((H,), jnp.float32)
    hs, hb = ones, zeros                                            # pending node-BN affine on h
    ds, db = ones, zeros                                            # pending edge-BN affine on dis
    nlayers = len(params)
    score = None
    cnt_h = float(bsz * n)
    cnt_d = float(bsz * n * n)

    for i, lp in enumerate(params):
        # ---- GAT + residual (pending BN affines folded into effective weights on the host) ----
        wt_eff = hs[:, None] * lp['Wt']
        g_bias = hb @ lp['Wt']
        wea3_eff = ds[:, None] * lp['WeA3']
        se_bias = db @ lp['WeA3']
        h, psum, psq = gat_layer(h, adj, dis, wt_eff, g_bias, lp['A12'], wea3_eff, se_bias, hs, hb)
        if n > 1:                                                   # NodeBN skipped when nb_node == 1
            hs, hb = _bn_affine(psum, psq, cnt_h, lp['bn_n_gamma'], lp['bn_n_beta'])
        else:
            hs, hb = ones, zeros

        # ---- EdgeTransition + sigmoid + residual ----
        ew_eff = ds[:, None] * lp['Ewt']
        eb_eff = db @ lp['Ewt'] + lp['eb']
        h12_eff = hs[:, None] * lp['H12t']
        b12_eff = hb @ lp['H12t'] + lp['b12']
        dis, dsum, dsq = edge_layer(h, dis, ew_eff, eb_eff, h12_eff, b12_eff, ds, db)
        if n > 1:                                                   # EdgeBN skipped when nb_node == 1
            ds, db = _bn_affine(dsum, dsq, cnt_d, lp['bn_e_gamma'], lp['bn_e_beta'])
        else:
            ds, db = ones, zeros

        # ---- MultiheadAttention(h_start, h, h) ----
        wkv_eff = hs[:, None] * lp['Wkv_t']
        bkv_eff = hb @ lp['Wkv_t'] + lp['bkv']
        o, score = mha_layer(hstart, h, lp['Wq_t'], lp['bq'], wkv_eff, bkv_eff,
                             lp['Wo_t'], lp['bo'], hsel, hselt)
        if i < nlayers - 1:
            hstart = att_batch_norm(o, lp['bn_a_gamma'], lp['bn_a_beta']) if bsz > 1 else o

    # materialize the last layer's pending edge-BN affine on dis exactly once
    if n > 1:
        dis = affine_apply(dis.reshape(bsz, n * n, H), ds, db).reshape(bsz, n, n, H)
    return dis, score.reshape(bsz, n)


if __name__ == "__main__":
    key = jax.random.PRNGKey(0)
    bsz, n, H = 2, 8, HIDDEN
    k1, k2, k3, k4, k5 = jax.random.split(key, 5)
    h = jax.random.normal(k1, (bsz, n, H), dtype=jnp.float32)
    dis = jax.random.normal(k2, (bsz, n, n, H), dtype=jnp.float32)
    adj = (jax.random.uniform(k3, (bsz, n, n)) < 0.7).astype(jnp.float32)
    adj = jnp.maximum(adj, jnp.eye(n, dtype=jnp.float32)[None])      # self-loops: no all-masked rows
    h_start = jax.random.normal(k4, (1, bsz, H), dtype=jnp.float32)

    params = init_params(k5, H, HEADS, LAYERS)
    fwd = jax.jit(graph_attention_encoder)
    dis_out, score = fwd(params, h, adj, dis, h_start)
    jax.block_until_ready((dis_out, score))
    assert dis_out.shape == (bsz, n, n, H) and score.shape == (bsz, n)
    assert bool(jnp.all(jnp.isfinite(dis_out))) and bool(jnp.all(jnp.isfinite(score)))
    print("KERNEL_OK")
</pallas_src>

<mosaic_0001>
module attributes {stable_mosaic.version = 11 : i64} {
  func.func @_att_bn_kernel(%arg0: memref<2x1x32xf32, #tpu.memory_space<vmem>>, %arg1: memref<1x32xf32, #tpu.memory_space<vmem>>, %arg2: memref<1x32xf32, #tpu.memory_space<vmem>>, %arg3: memref<2x1x32xf32, #tpu.memory_space<vmem>>) attributes {dimension_semantics = [], scalar_prefetch = 0 : i64, scratch_operands = 0 : i64, tpu.core_type = #tpu.core_type<tc>} {
    %c0 = arith.constant 0 : index
    %c0_0 = arith.constant 0 : index
    %c0_1 = arith.constant 0 : index
    %0 = vector.load %arg0[%c0, %c0_0, %c0_1] : memref<2x1x32xf32, #tpu.memory_space<vmem>>, vector<2x1x32xf32>
    %cst = arith.constant dense<0.000000e+00> : vector<1x32xf32>
    %1 = vector.multi_reduction <add>, %0, %cst [0] : vector<2x1x32xf32> to vector<1x32xf32>
    %2 = vector.shape_cast %1 : vector<1x32xf32> to vector<1x1x32xf32>
    %cst_2 = arith.constant 5.000000e-01 : f32
    %3 = vector.broadcast %cst_2 : f32 to vector<1x1x32xf32>
    %4 = arith.mulf %2, %3 : vector<1x1x32xf32>
    %5 = vector.broadcast %4 : vector<1x1x32xf32> to vector<2x1x32xf32>
    %6 = arith.subf %0, %5 : vector<2x1x32xf32>
    %7 = arith.mulf %6, %6 : vector<2x1x32xf32>
    %cst_3 = arith.constant dense<0.000000e+00> : vector<1x32xf32>
    %8 = vector.multi_reduction <add>, %7, %cst_3 [0] : vector<2x1x32xf32> to vector<1x32xf32>
    %9 = vector.shape_cast %8 : vector<1x32xf32> to vector<1x1x32xf32>
    %cst_4 = arith.constant 5.000000e-01 : f32
    %10 = vector.broadcast %cst_4 : f32 to vector<1x1x32xf32>
    %11 = arith.mulf %9, %10 : vector<1x1x32xf32>
    %cst_5 = arith.constant 9.99999974E-6 : f32
    %12 = vector.broadcast %cst_5 : f32 to vector<1x1x32xf32>
    %13 = arith.addf %11, %12 : vector<1x1x32xf32>
    %14 = math.rsqrt %13 : vector<1x1x32xf32>
    %c0_6 = arith.constant 0 : index
    %c0_7 = arith.constant 0 : index
    %15 = vector.load %arg1[%c0_6, %c0_7] : memref<1x32xf32, #tpu.memory_space<vmem>>, vector<1x32xf32>
    %16 = vector.shape_cast %15 : vector<1x32xf32> to vector<1x1x32xf32>
    %c0_8 = arith.constant 0 : index
    %c0_9 = arith.constant 0 : index
    %17 = vector.load %arg2[%c0_8, %c0_9] : memref<1x32xf32, #tpu.memory_space<vmem>>, vector<1x32xf32>
    %18 = vector.shape_cast %17 : vector<1x32xf32> to vector<1x1x32xf32>
    %19 = vector.broadcast %14 : vector<1x1x32xf32> to vector<2x1x32xf32>
    %20 = arith.mulf %6, %19 : vector<2x1x32xf32>
    %21 = vector.broadcast %16 : vector<1x1x32xf32> to vector<2x1x32xf32>
    %22 = arith.mulf %20, %21 : vector<2x1x32xf32>
    %23 = vector.broadcast %18 : vector<1x1x32xf32> to vector<2x1x32xf32>
    %24 = arith.addf %22, %23 : vector<2x1x32xf32>
    %c0_10 = arith.constant 0 : index
    %c0_11 = arith.constant 0 : index
    %c0_12 = arith.constant 0 : index
    %25 = vector.load %arg3[%c0_10, %c0_11, %c0_12] : memref<2x1x32xf32, #tpu.memory_space<vmem>>, vector<2x1x32xf32>
    tpu.vector_store %arg3[%c0_10, %c0_11, %c0_12], %24 {strides = array<i32>} : memref<2x1x32xf32, #tpu.memory_space<vmem>>, vector<2x1x32xf32>,
    return
  }
}

module attributes {stable_mosaic.version = 11 : i64} {
  func.func @_gat_kernel(%arg0: i32, %arg1: memref<2x8x32xf32, #tpu.memory_space<vmem>>, %arg2: memref<2x8x8xf32, #tpu.memory_space<vmem>>, %arg3: memref<2x8x8x32xf32, #tpu.memory_space<vmem>>, %arg4: memref<32x32xf32, #tpu.memory_space<vmem>>, %arg5: memref<1x32xf32, #tpu.memory_space<vmem>>, %arg6: memref<32x8xf32, #tpu.memory_space<vmem>>, %arg7: memref<32x4xf32, #tpu.memory_space<vmem>>, %arg8: memref<1x4xf32, #tpu.memory_space<vmem>>, %arg9: memref<1x32xf32, #tpu.memory_space<vmem>>, %arg10: memref<1x32xf32, #tpu.memory_space<vmem>>, %arg11: memref<2x8x32xf32, #tpu.memory_space<vmem>>, %arg12: memref<1x1x32xf32, #tpu.memory_space<vmem>>, %arg13: memref<1x1x32xf32, #tpu.memory_space<vmem>>) attributes {dimension_semantics = [#tpu.dimension_semantics<parallel>], iteration_bounds = array<i64: 1>, scalar_prefetch = 0 : i64, scratch_operands = 0 : i64, tpu.core_type = #tpu.core_type<tc>, window_params = [{transform_indices = @transform_0, window_bounds = array<i64: 2, 8, 32>}, {transform_indices = @transform_1, window_bounds = array<i64: 2, 8, 8>}, {transform_indices = @transform_2, window_bounds = array<i64: 2, 8, 8, 32>}, {pipeline_mode = #tpu.pipeline_mode<synchronous>, transform_indices = @transform_3, window_bounds = array<i64: 32, 32>}, {pipeline_mode = #tpu.pipeline_mode<synchronous>, transform_indices = @transform_4, window_bounds = array<i64: 1, 32>}, {pipeline_mode = #tpu.pipeline_mode<synchronous>, transform_indices = @transform_5, window_bounds = array<i64: 32, 8>}, {pipeline_mode = #tpu.pipeline_mode<synchronous>, transform_indices = @transform_6, window_bounds = array<i64: 32, 4>}, {pipeline_mode = #tpu.pipeline_mode<synchronous>, transform_indices = @transform_7, window_bounds = array<i64: 1, 4>}, {pipeline_mode = #tpu.pipeline_mode<synchronous>, transform_indices = @transform_8, window_bounds = array<i64: 1, 32>}, {pipeline_mode = #tpu.pipeline_mode<synchronous>, transform_indices = @transform_9, window_bounds = array<i64: 1, 32>}, {transform_indices = @transform_10, window_bounds = array<i64: 2, 8, 32>}, {transform_indices = @transform_11, window_bounds = array<i64: 1, 1, 32>}, {transform_indices = @transform_12, window_bounds = array<i64: 1, 1, 32>}]} {
    %c0 = arith.constant 0 : index
    %c0_0 = arith.constant 0 : index
    %c0_1 = arith.constant 0 : index
    %0 = vector.load %arg1[%c0, %c0_0, %c0_1] : memref<2x8x32xf32, #tpu.memory_space<vmem>>, vector<2x8x32xf32>
    %1 = vector.shape_cast %0 : vector<2x8x32xf32> to vector<16x32xf32>
    %c0_2 = arith.constant 0 : index
    %c0_3 = arith.constant 0 : index
    %2 = vector.load %arg4[%c0_2, %c0_3] : memref<32x32xf32, #tpu.memory_space<vmem>>, vector<32x32xf32>
    %cst = arith.constant dense<0.000000e+00> : vector<16x32xf32>
    %3 = tpu.matmul %1, %2, %cst {dimension_numbers = #tpu.dot_dimension_numbers<[1], [0], [0], [1], [0, 0, 1, 1], [], []>} : vector<16x32xf32>, vector<32x32xf32>, vector<16x32xf32> -> vector<16x32xf32>
    %c0_4 = arith.constant 0 : index
    %c0_5 = arith.constant 0 : index
    %4 = vector.load %arg5[%c0_4, %c0_5] : memref<1x32xf32, #tpu.memory_space<vmem>>, vector<1x32xf32>
    %5 = vector.broadcast %4 : vector<1x32xf32> to vector<16x32xf32>
    %6 = arith.addf %3, %5 : vector<16x32xf32>
    %c0_6 = arith.constant 0 : index
    %c0_7 = arith.constant 0 : index
    %7 = vector.load %arg6[%c0_6, %c0_7] : memref<32x8xf32, #tpu.memory_space<vmem>>, vector<32x8xf32>
    %cst_8 = arith.constant dense<0.000000e+00> : vector<16x8xf32>
    %8 = tpu.matmul %6, %7, %cst_8 {dimension_numbers = #tpu.dot_dimension_numbers<[1], [0], [0], [1], [0, 0, 1, 1], [], []>} : vector<16x32xf32>, vector<32x8xf32>, vector<16x8xf32> -> vector<16x8xf32>
    %c0_9 = arith.constant 0 : index
    %c0_10 = arith.constant 0 : index
    %c0_11 = arith.constant 0 : index
    %c0_12 = arith.constant 0 : index
    %9 = vector.load %arg3[%c0_9, %c0_10, %c0_11, %c0_12] : memref<2x8x8x32xf32, #tpu.memory_space<vmem>>, vector<2x8x8x32xf32>
    %10 = vector.shape_cast %9 : vector<2x8x8x32xf32> to vector<128x32xf32>
    %c0_13 = arith.constant 0 : index
    %c0_14 = arith.constant 0 : index
    %11 = vector.load %arg7[%c0_13, %c0_14] : memref<32x4xf32, #tpu.memory_space<vmem>>, vector<32x4xf32>
    %cst_15 = arith.constant dense<0.000000e+00> : vector<128x4xf32>
    %12 = tpu.matmul %10, %11, %cst_15 {dimension_numbers = #tpu.dot_dimension_numbers<[1], [0], [0], [1], [0, 0, 1, 1], [], []>} : vector<128x32xf32>, vector<32x4xf32>, vector<128x4xf32> -> vector<128x4xf32>
    %c0_16 = arith.constant 0 : index
    %c0_17 = arith.constant 0 : index
    %13 = vector.load %arg8[%c0_16, %c0_17] : memref<1x4xf32, #tpu.memory_space<vmem>>, vector<1x4xf32>
    %14 = vector.broadcast %13 : vector<1x4xf32> to vector<128x4xf32>
    %15 = arith.addf %12, %14 : vector<128x4xf32>
    %16 = vector.shape_cast %6 : vector<16x32xf32> to vector<2x8x32xf32>
    %17 = vector.shape_cast %8 : vector<16x8xf32> to vector<2x8x8xf32>
    %18 = vector.shape_cast %15 : vector<128x4xf32> to vector<2x8x8x4xf32>
    %c0_18 = arith.constant 0 : index
    %c0_19 = arith.constant 0 : index
    %c0_20 = arith.constant 0 : index
    %19 = vector.load %arg2[%c0_18, %c0_19, %c0_20] : memref<2x8x8xf32, #tpu.memory_space<vmem>>, vector<2x8x8xf32>
    %cst_21 = arith.constant 0.000000e+00 : f32
    %20 = vector.broadcast %cst_21 : f32 to vector<2x8x8xf32>
    %21 = arith.cmpf oeq, %19, %20 : vector<2x8x8xf32>
    %22 = vector.extract_strided_slice %17 {offsets = [0, 0, 0], sizes = [2, 8, 1], strides = [1, 1, 1]} : vector<2x8x8xf32> to vector<2x8x1xf32>
    %23 = vector.extract_strided_slice %17 {offsets = [0, 0, 4], sizes = [2, 8, 1], strides = [1, 1, 1]} : vector<2x8x8xf32> to vector<2x8x1xf32>
    %24 = vector.shape_cast %23 : vector<2x8x1xf32> to vector<2x8xf32>
    %25 = vector.shape_cast %24 : vector<2x8xf32> to vector<2x1x8xf32>
    %26 = vector.broadcast %22 : vector<2x8x1xf32> to vector<2x8x8xf32>
    %27 = vector.broadcast %25 : vector<2x1x8xf32> to vector<2x8x8xf32>
    %28 = arith.addf %26, %27 : vector<2x8x8xf32>
    %29 = vector.extract_strided_slice %18 {offsets = [0, 0, 0, 0], sizes = [2, 8, 8, 1], strides = [1, 1, 1, 1]} : vector<2x8x8x4xf32> to vector<2x8x8x1xf32>
    %30 = vector.shape_cast %29 : vector<2x8x8x1xf32> to vector<2x8x8xf32>
    %31 = arith.addf %28, %30 : vector<2x8x8xf32>
    %cst_22 = arith.constant 0.000000e+00 : f32
    %32 = vector.broadcast %cst_22 : f32 to vector<2x8x8xf32>
    %33 = arith.cmpf oge, %31, %32 : vector<2x8x8xf32>
    %cst_23 = arith.constant 2.000000e-01 : f32
    %34 = vector.broadcast %cst_23 : f32 to vector<2x8x8xf32>
    %35 = arith.mulf %34, %31 : vector<2x8x8xf32>
    %36 = arith.select %33, %31, %35 : vector<2x8x8xi1>, vector<2x8x8xf32>
    %cst_24 = arith.constant -1.000000e+30 : f32
    %37 = vector.broadcast %cst_24 : f32 to vector<2x8x8xf32>
    %38 = arith.select %21, %37, %36 : vector<2x8x8xi1>, vector<2x8x8xf32>
    %cst_25 = arith.constant dense<0xFF800000> : vector<2x8xf32>
    %39 = vector.multi_reduction <maximumf>, %38, %cst_25 [2] : vector<2x8x8xf32> to vector<2x8xf32>
    %40 = vector.shape_cast %39 : vector<2x8xf32> to vector<2x8x1xf32>
    %41 = vector.broadcast %40 : vector<2x8x1xf32> to vector<2x8x8xf32>
    %42 = arith.subf %38, %41 : vector<2x8x8xf32>
    %43 = math.exp %42 : vector<2x8x8xf32>
    %cst_26 = arith.constant dense<0.000000e+00> : vector<2x8xf32>
    %44 = vector.multi_reduction <add>, %43, %cst_26 [2] : vector<2x8x8xf32> to vector<2x8xf32>
    %45 = vector.shape_cast %44 : vector<2x8xf32> to vector<2x8x1xf32>
    %46 = tpu.reciprocal %45 {approx = true} : vector<2x8x1xf32> -> vector<2x8x1xf32>
    %47 = vector.broadcast %46 : vector<2x8x1xf32> to vector<2x8x8xf32>
    %48 = arith.mulf %43, %47 : vector<2x8x8xf32>
    %49 = vector.extract_strided_slice %16 {offsets = [0, 0, 0], sizes = [2, 8, 8], strides = [1, 1, 1]} : vector<2x8x32xf32> to vector<2x8x8xf32>
    "tpu.trace_start"() <{level = 10 : i32, message = "bij,bjf->bif"}> : () -> ()
    %cst_27 = arith.constant dense<0.000000e+00> : vector<2x8x8xf32>
    %50 = tpu.matmul %48, %49, %cst_27 {dimension_numbers = #tpu.dot_dimension_numbers<[2], [1], [1], [2], [0, 0, 0, 1, 1, 2], [0], [0]>} : vector<2x8x8xf32>, vector<2x8x8xf32>, vector<2x8x8xf32> -> vector<2x8x8xf32>
    "tpu.trace_stop"() : () -> ()
    %51 = vector.extract_strided_slice %17 {offsets = [0, 0, 1], sizes = [2, 8, 1], strides = [1, 1, 1]} : vector<2x8x8xf32> to vector<2x8x1xf32>
    %52 = vector.extract_strided_slice %17 {offsets = [0, 0, 5], sizes = [2, 8, 1], strides = [1, 1, 1]} : vector<2x8x8xf32> to vector<2x8x1xf32>
    %53 = vector.shape_cast %52 : vector<2x8x1xf32> to vector<2x8xf32>
    %54 = vector.shape_cast %53 : vector<2x8xf32> to vector<2x1x8xf32>
    %55 = vector.broadcast %51 : vector<2x8x1xf32> to vector<2x8x8xf32>
    %56 = vector.broadcast %54 : vector<2x1x8xf32> to vector<2x8x8xf32>
    %57 = arith.addf %55, %56 : vector<2x8x8xf32>
    %58 = vector.extract_strided_slice %18 {offsets = [0, 0, 0, 1], sizes = [2, 8, 8, 1], strides = [1, 1, 1, 1]} : vector<2x8x8x4xf32> to vector<2x8x8x1xf32>
    %59 = vector.shape_cast %58 : vector<2x8x8x1xf32> to vector<2x8x8xf32>
    %60 = arith.addf %57, %59 : vector<2x8x8xf32>
    %cst_28 = arith.constant 0.000000e+00 : f32
    %61 = vector.broadcast %cst_28 : f32 to vector<2x8x8xf32>
    %62 = arith.cmpf oge, %60, %61 : vector<2x8x8xf32>
    %cst_29 = arith.constant 2.000000e-01 : f32
    %63 = vector.broadcast %cst_29 : f32 to vector<2x8x8xf32>
    %64 = arith.mulf %63, %60 : vector<2x8x8xf32>
    %65 = arith.select %62, %60, %64 : vector<2x8x8xi1>, vector<2x8x8xf32>
    %cst_30 = arith.constant -1.000000e+30 : f32
    %66 = vector.broadcast %cst_30 : f32 to vector<2x8x8xf32>
    %67 = arith.select %21, %66, %65 : vector<2x8x8xi1>, vector<2x8x8xf32>
    %cst_31 = arith.constant dense<0xFF800000> : vector<2x8xf32>
    %68 = vector.multi_reduction <maximumf>, %67, %cst_31 [2] : vector<2x8x8xf32> to vector<2x8xf32>
    %69 = vector.shape_cast %68 : vector<2x8xf32> to vector<2x8x1xf32>
    %70 = vector.broadcast %69 : vector<2x8x1xf32> to vector<2x8x8xf32>
    %71 = arith.subf %67, %70 : vector<2x8x8xf32>
    %72 = math.exp %71 : vector<2x8x8xf32>
    %cst_32 = arith.constant dense<0.000000e+00> : vector<2x8xf32>
    %73 = vector.multi_reduction <add>, %72, %cst_32 [2] : vector<2x8x8xf32> to vector<2x8xf32>
    %74 = vector.shape_cast %73 : vector<2x8xf32> to vector<2x8x1xf32>
    %75 = tpu.reciprocal %74 {approx = true} : vector<2x8x1xf32> -> vector<2x8x1xf32>
    %76 = vector.broadcast %75 : vector<2x8x1xf32> to vector<2x8x8xf32>
    %77 = arith.mulf %72, %76 : vector<2x8x8xf32>
    %78 = vector.extract_strided_slice %16 {offsets = [0, 0, 8], sizes = [2, 8, 8], strides = [1, 1, 1]} : vector<2x8x32xf32> to vector<2x8x8xf32>
    "tpu.trace_start"() <{level = 10 : i32, message = "bij,bjf->bif"}> : () -> ()
    %cst_33 = arith.constant dense<0.000000e+00> : vector<2x8x8xf32>
    %79 = tpu.matmul %77, %78, %cst_33 {dimension_numbers = #tpu.dot_dimension_numbers<[2], [1], [1], [2], [0, 0, 0, 1, 1, 2], [0], [0]>} : vector<2x8x8xf32>, vector<2x8x8xf32>, vector<2x8x8xf32> -> vector<2x8x8xf32>
    "tpu.trace_stop"() : () -> ()
    %80 = vector.extract_strided_slice %17 {offsets = [0, 0, 2], sizes = [2, 8, 1], strides = [1, 1, 1]} : vector<2x8x8xf32> to vector<2x8x1xf32>
    %81 = vector.extract_strided_slice %17 {offsets = [0, 0, 6], sizes = [2, 8, 1], strides = [1, 1, 1]} : vector<2x8x8xf32> to vector<2x8x1xf32>
    %82 = vector.shape_cast %81 : vector<2x8x1xf32> to vector<2x8xf32>
    %83 = vector.shape_cast %82 : vector<2x8xf32> to vector<2x1x8xf32>
    %84 = vector.broadcast %80 : vector<2x8x1xf32> to vector<2x8x8xf32>
    %85 = vector.broadcast %83 : vector<2x1x8xf32> to vector<2x8x8xf32>
    %86 = arith.addf %84, %85 : vector<2x8x8xf32>
    %87 = vector.extract_strided_slice %18 {offsets = [0, 0, 0, 2], sizes = [2, 8, 8, 1], strides = [1, 1, 1, 1]} : vector<2x8x8x4xf32> to vector<2x8x8x1xf32>
    %88 = vector.shape_cast %87 : vector<2x8x8x1xf32> to vector<2x8x8xf32>
    %89 = arith.addf %86, %88 : vector<2x8x8xf32>
    %cst_34 = arith.constant 0.000000e+00 : f32
    %90 = vector.broadcast %cst_34 : f32 to vector<2x8x8xf32>
    %91 = arith.cmpf oge, %89, %90 : vector<2x8x8xf32>
    %cst_35 = arith.constant 2.000000e-01 : f32
    %92 = vector.broadcast %cst_35 : f32 to vector<2x8x8xf32>
    %93 = arith.mulf %92, %89 : vector<2x8x8xf32>
    %94 = arith.select %91, %89, %93 : vector<2x8x8xi1>, vector<2x8x8xf32>
    %cst_36 = arith.constant -1.000000e+30 : f32
    %95 = vector.broadcast %cst_36 : f32 to vector<2x8x8xf32>
    %96 = arith.select %21, %95, %94 : vector<2x8x8xi1>, vector<2x8x8xf32>
    %cst_37 = arith.constant dense<0xFF800000> : vector<2x8xf32>
    %97 = vector.multi_reduction <maximumf>, %96, %cst_37 [2] : vector<2x8x8xf32> to vector<2x8xf32>
    %98 = vector.shape_cast %97 : vector<2x8xf32> to vector<2x8x1xf32>
    %99 = vector.broadcast %98 : vector<2x8x1xf32> to vector<2x8x8xf32>
    %100 = arith.subf %96, %99 : vector<2x8x8xf32>
    %101 = math.exp %100 : vector<2x8x8xf32>
    %cst_38 = arith.constant dense<0.000000e+00> : vector<2x8xf32>
    %102 = vector.multi_reduction <add>, %101, %cst_38 [2] : vector<2x8x8xf32> to vector<2x8xf32>
    %103 = vector.shape_cast %102 : vector<2x8xf32> to vector<2x8x1xf32>
    %104 = tpu.reciprocal %103 {approx = true} : vector<2x8x1xf32> -> vector<2x8x1xf32>
    %105 = vector.broadcast %104 : vector<2x8x1xf32> to vector<2x8x8xf32>
    %106 = arith.mulf %101, %105 : vector<2x8x8xf32>
    %107 = vector.extract_strided_slice %16 {offsets = [0, 0, 16], sizes = [2, 8, 8], strides = [1, 1, 1]} : vector<2x8x32xf32> to vector<2x8x8xf32>
    "tpu.trace_start"() <{level = 10 : i32, message = "bij,bjf->bif"}> : () -> ()
    %cst_39 = arith.constant dense<0.000000e+00> : vector<2x8x8xf32>
    %108 = tpu.matmul %106, %107, %cst_39 {dimension_numbers = #tpu.dot_dimension_numbers<[2], [1], [1], [2], [0, 0, 0, 1, 1, 2], [0], [0]>} : vector<2x8x8xf32>, vector<2x8x8xf32>, vector<2x8x8xf32> -> vector<2x8x8xf32>
    "tpu.trace_stop"() : () -> ()
    %109 = vector.extract_strided_slice %17 {offsets = [0, 0, 3], sizes = [2, 8, 1], strides = [1, 1, 1]} : vector<2x8x8xf32> to vector<2x8x1xf32>
    %110 = vector.extract_strided_slice %17 {offsets = [0, 0, 7], sizes = [2, 8, 1], strides = [1, 1, 1]} : vector<2x8x8xf32> to vector<2x8x1xf32>
    %111 = vector.shape_cast %110 : vector<2x8x1xf32> to vector<2x8xf32>
    %112 = vector.shape_cast %111 : vector<2x8xf32> to vector<2x1x8xf32>
    %113 = vector.broadcast %109 : vector<2x8x1xf32> to vector<2x8x8xf32>
    %114 = vector.broadcast %112 : vector<2x1x8xf32> to vector<2x8x8xf32>
    %115 = arith.addf %113, %114 : vector<2x8x8xf32>
    %116 = vector.extract_strided_slice %18 {offsets = [0, 0, 0, 3], sizes = [2, 8, 8, 1], strides = [1, 1, 1, 1]} : vector<2x8x8x4xf32> to vector<2x8x8x1xf32>
    %117 = vector.shape_cast %116 : vector<2x8x8x1xf32> to vector<2x8x8xf32>
    %118 = arith.addf %115, %117 : vector<2x8x8xf32>
    %cst_40 = arith.constant 0.000000e+00 : f32
    %119 = vector.broadcast %cst_40 : f32 to vector<2x8x8xf32>
    %120 = arith.cmpf oge, %118, %119 : vector<2x8x8xf32>
    %cst_41 = arith.constant 2.000000e-01 : f32
    %121 = vector.broadcast %cst_41 : f32 to vector<2x8x8xf32>
    %122 = arith.mulf %121, %118 : vector<2x8x8xf32>
    %123 = arith.select %120, %118, %122 : vector<2x8x8xi1>, vector<2x8x8xf32>
    %cst_42 = arith.constant -1.000000e+30 : f32
    %124 = vector.broadcast %cst_42 : f32 to vector<2x8x8xf32>
    %125 = arith.select %21, %124, %123 : vector<2x8x8xi1>, vector<2x8x8xf32>
    %cst_43 = arith.constant dense<0xFF800000> : vector<2x8xf32>
    %126 = vector.multi_reduction <maximumf>, %125, %cst_43 [2] : vector<2x8x8xf32> to vector<2x8xf32>
    %127 = vector.shape_cast %126 : vector<2x8xf32> to vector<2x8x1xf32>
    %128 = vector.broadcast %127 : vector<2x8x1xf32> to vector<2x8x8xf32>
    %129 = arith.subf %125, %128 : vector<2x8x8xf32>
    %130 = math.exp %129 : vector<2x8x8xf32>
    %cst_44 = arith.constant dense<0.000000e+00> : vector<2x8xf32>
    %131 = vector.multi_reduction <add>, %130, %cst_44 [2] : vector<2x8x8xf32> to vector<2x8xf32>
    %132 = vector.shape_cast %131 : vector<2x8xf32> to vector<2x8x1xf32>
    %133 = tpu.reciprocal %132 {approx = true} : vector<2x8x1xf32> -> vector<2x8x1xf32>
    %134 = vector.broadcast %133 : vector<2x8x1xf32> to vector<2x8x8xf32>
    %135 = arith.mulf %130, %134 : vector<2x8x8xf32>
    %136 = vector.extract_strided_slice %16 {offsets = [0, 0, 24], sizes = [2, 8, 8], strides = [1, 1, 1]} : vector<2x8x32xf32> to vector<2x8x8xf32>
    "tpu.trace_start"() <{level = 10 : i32, message = "bij,bjf->bif"}> : () -> ()
    %cst_45 = arith.constant dense<0.000000e+00> : vector<2x8x8xf32>
    %137 = tpu.matmul %135, %136, %cst_45 {dimension_numbers = #tpu.dot_dimension_numbers<[2], [1], [1], [2], [0, 0, 0, 1, 1, 2], [0], [0]>} : vector<2x8x8xf32>, vector<2x8x8xf32>, vector<2x8x8xf32> -> vector<2x8x8xf32>
    "tpu.trace_stop"() : () -> ()
    %138 = tpu.concatenate %50, %79, %108, %137 in 2 : vector<2x8x8xf32>, vector<2x8x8xf32>, vector<2x8x8xf32>, vector<2x8x8xf32> -> vector<2x8x32xf32>
    %c0_46 = arith.constant 0 : index
    %c0_47 = arith.constant 0 : index
    %139 = vector.load %arg9[%c0_46, %c0_47] : memref<1x32xf32, #tpu.memory_space<vmem>>, vector<1x32xf32>
    %140 = vector.shape_cast %139 : vector<1x32xf32> to vector<1x1x32xf32>
    %141 = vector.broadcast %140 : vector<1x1x32xf32> to vector<2x8x32xf32>
    %142 = arith.mulf %0, %141 : vector<2x8x32xf32>
    %c0_48 = arith.constant 0 : index
    %c0_49 = arith.constant 0 : index
    %143 = vector.load %arg10[%c0_48, %c0_49] : memref<1x32xf32, #tpu.memory_space<vmem>>, vector<1x32xf32>
    %144 = vector.shape_cast %143 : vector<1x32xf32> to vector<1x1x32xf32>
    %145 = vector.broadcast %144 : vector<1x1x32xf32> to vector<2x8x32xf32>
    %146 = arith.addf %142, %145 : vector<2x8x32xf32>
    %147 = arith.addf %138, %146 : vector<2x8x32xf32>
    %c0_50 = arith.constant 0 : index
    %c0_51 = arith.constant 0 : index
    %c0_52 = arith.constant 0 : index
    %148 = vector.load %arg11[%c0_50, %c0_51, %c0_52] : memref<2x8x32xf32, #tpu.memory_space<vmem>>, vector<2x8x32xf32>
    tpu.vector_store %arg11[%c0_50, %c0_51, %c0_52], %147 {strides = array<i32>} : memref<2x8x32xf32, #tpu.memory_space<vmem>>, vector<2x8x32xf32>,
    %149 = vector.shape_cast %147 : vector<2x8x32xf32> to vector<16x32xf32>
    %cst_53 = arith.constant dense<0.000000e+00> : vector<32xf32>
    %150 = vector.multi_reduction <add>, %149, %cst_53 [0] : vector<16x32xf32> to vector<32xf32>
    %151 = vector.shape_cast %150 : vector<32xf32> to vector<1x32xf32>
    %152 = vector.shape_cast %151 : vector<1x32xf32> to vector<1x1x32xf32>
    %c0_54 = arith.constant 0 : index
    %c0_55 = arith.constant 0 : index
    %c0_56 = arith.constant 0 : index
    %153 = vector.load %arg12[%c0_54, %c0_55, %c0_56] : memref<1x1x32xf32, #tpu.memory_space<vmem>>, vector<1x1x32xf32>
    tpu.vector_store %arg12[%c0_54, %c0_55, %c0_56], %152 {strides = array<i32>} : memref<1x1x32xf32, #tpu.memory_space<vmem>>, vector<1x1x32xf32>,
    %154 = arith.mulf %149, %149 : vector<16x32xf32>
    %cst_57 = arith.constant dense<0.000000e+00> : vector<32xf32>
    %155 = vector.multi_reduction <add>, %154, %cst_57 [0] : vector<16x32xf32> to vector<32xf32>
    %156 = vector.shape_cast %155 : vector<32xf32> to vector<1x32xf32>
    %157 = vector.shape_cast %156 : vector<1x32xf32> to vector<1x1x32xf32>
    %c0_58 = arith.constant 0 : index
    %c0_59 = arith.constant 0 : index
    %c0_60 = arith.constant 0 : index
    %158 = vector.load %arg13[%c0_58, %c0_59, %c0_60] : memref<1x1x32xf32, #tpu.memory_space<vmem>>, vector<1x1x32xf32>
    tpu.vector_store %arg13[%c0_58, %c0_59, %c0_60], %157 {strides = array<i32>} : memref<1x1x32xf32, #tpu.memory_space<vmem>>, vector<1x1x32xf32>,
    return
  }
  func.func @transform_0(%arg0: i32) -> (i32, i32, i32) {
    %c0_i32 = arith.constant 0 : i32
    %c0_i32_0 = arith.constant 0 : i32
    %c0_i32_1 = arith.constant 0 : i32
    return %arg0, %c0_i32, %c0_i32_0 : i32, i32, i32
  }
  func.func @transform_1(%arg0: i32) -> (i32, i32, i32) {
    %c0_i32 = arith.constant 0 : i32
    %c0_i32_0 = arith.constant 0 : i32
    %c0_i32_1 = arith.constant 0 : i32
    return %arg0, %c0_i32, %c0_i32_0 : i32, i32, i32
  }
  func.func @transform_2(%arg0: i32) -> (i32, i32, i32, i32) {
    %c0_i32 = arith.constant 0 : i32
    %c0_i32_0 = arith.constant 0 : i32
    %c0_i32_1 = arith.constant 0 : i32
    %c0_i32_2 = arith.constant 0 : i32
    return %arg0, %c0_i32, %c0_i32_0, %c0_i32_1 : i32, i32, i32, i32
  }
  func.func @transform_3(%arg0: i32) -> (i32, i32) {
    %c0_i32 = arith.constant 0 : i32
    %c0_i32_0 = arith.constant 0 : i32
    %c0_i32_1 = arith.constant 0 : i32
    return %c0_i32, %c0_i32_0 : i32, i32
  }
  func.func @transform_4(%arg0: i32) -> (i32, i32) {
    %c0_i32 = arith.constant 0 : i32
    %c0_i32_0 = arith.constant 0 : i32
    %c0_i32_1 = arith.constant 0 : i32
    return %c0_i32, %c0_i32_0 : i32, i32
  }
  func.func @transform_5(%arg0: i32) -> (i32, i32) {
    %c0_i32 = arith.constant 0 : i32
    %c0_i32_0 = arith.constant 0 : i32
    %c0_i32_1 = arith.constant 0 : i32
    return %c0_i32, %c0_i32_0 : i32, i32
  }
  func.func @transform_6(%arg0: i32) -> (i32, i32) {
    %c0_i32 = arith.constant 0 : i32
    %c0_i32_0 = arith.constant 0 : i32
    %c0_i32_1 = arith.constant 0 : i32
    return %c0_i32, %c0_i32_0 : i32, i32
  }
  func.func @transform_7(%arg0: i32) -> (i32, i32) {
    %c0_i32 = arith.constant 0 : i32
    %c0_i32_0 = arith.constant 0 : i32
    %c0_i32_1 = arith.constant 0 : i32
    return %c0_i32, %c0_i32_0 : i32, i32
  }
  func.func @transform_8(%arg0: i32) -> (i32, i32) {
    %c0_i32 = arith.constant 0 : i32
    %c0_i32_0 = arith.constant 0 : i32
    %c0_i32_1 = arith.constant 0 : i32
    return %c0_i32, %c0_i32_0 : i32, i32
  }
  func.func @transform_9(%arg0: i32) -> (i32, i32) {
    %c0_i32 = arith.constant 0 : i32
    %c0_i32_0 = arith.constant 0 : i32
    %c0_i32_1 = arith.constant 0 : i32
    return %c0_i32, %c0_i32_0 : i32, i32
  }
  func.func @transform_10(%arg0: i32) -> (i32, i32, i32) {
    %c0_i32 = arith.constant 0 : i32
    %c0_i32_0 = arith.constant 0 : i32
    %c0_i32_1 = arith.constant 0 : i32
    return %arg0, %c0_i32, %c0_i32_0 : i32, i32, i32
  }
  func.func @transform_11(%arg0: i32) -> (i32, i32, i32) {
    %c0_i32 = arith.constant 0 : i32
    %c0_i32_0 = arith.constant 0 : i32
    %c0_i32_1 = arith.constant 0 : i32
    return %arg0, %c0_i32, %c0_i32_0 : i32, i32, i32
  }
  func.func @transform_12(%arg0: i32) -> (i32, i32, i32) {
    %c0_i32 = arith.constant 0 : i32
    %c0_i32_0 = arith.constant 0 : i32
    %c0_i32_1 = arith.constant 0 : i32
    return %arg0, %c0_i32, %c0_i32_0 : i32, i32, i32
  }
}

module attributes {stable_mosaic.version = 11 : i64} {
  func.func @_mha_kernel(%arg0: i32, %arg1: memref<2x1x32xf32, #tpu.memory_space<vmem>>, %arg2: memref<2x8x32xf32, #tpu.memory_space<vmem>>, %arg3: memref<32x32xf32, #tpu.memory_space<vmem>>, %arg4: memref<1x32xf32, #tpu.memory_space<vmem>>, %arg5: memref<32x64xf32, #tpu.memory_space<vmem>>, %arg6: memref<1x64xf32, #tpu.memory_space<vmem>>, %arg7: memref<32x32xf32, #tpu.memory_space<vmem>>, %arg8: memref<1x32xf32, #tpu.memory_space<vmem>>, %arg9: memref<32x4xf32, #tpu.memory_space<vmem>>, %arg10: memref<4x32xf32, #tpu.memory_space<vmem>>, %arg11: memref<2x1x32xf32, #tpu.memory_space<vmem>>, %arg12: memref<2x1x8xf32, #tpu.memory_space<vmem>>) attributes {dimension_semantics = [#tpu.dimension_semantics<parallel>], iteration_bounds = array<i64: 1>, scalar_prefetch = 0 : i64, scratch_operands = 0 : i64, tpu.core_type = #tpu.core_type<tc>, window_params = [{transform_indices = @transform_0, window_bounds = array<i64: 2, 1, 32>}, {transform_indices = @transform_1, window_bounds = array<i64: 2, 8, 32>}, {pipeline_mode = #tpu.pipeline_mode<synchronous>, transform_indices = @transform_2, window_bounds = array<i64: 32, 32>}, {pipeline_mode = #tpu.pipeline_mode<synchronous>, transform_indices = @transform_3, window_bounds = array<i64: 1, 32>}, {pipeline_mode = #tpu.pipeline_mode<synchronous>, transform_indices = @transform_4, window_bounds = array<i64: 32, 64>}, {pipeline_mode = #tpu.pipeline_mode<synchronous>, transform_indices = @transform_5, window_bounds = array<i64: 1, 64>}, {pipeline_mode = #tpu.pipeline_mode<synchronous>, transform_indices = @transform_6, window_bounds = array<i64: 32, 32>}, {pipeline_mode = #tpu.pipeline_mode<synchronous>, transform_indices = @transform_7, window_bounds = array<i64: 1, 32>}, {pipeline_mode = #tpu.pipeline_mode<synchronous>, transform_indices = @transform_8, window_bounds = array<i64: 32, 4>}, {pipeline_mode = #tpu.pipeline_mode<synchronous>, transform_indices = @transform_9, window_bounds = array<i64: 4, 32>}, {transform_indices = @transform_10, window_bounds = array<i64: 2, 1, 32>}, {transform_indices = @transform_11, window_bounds = array<i64: 2, 1, 8>}]} {
    %c0 = arith.constant 0 : index
    %c0_0 = arith.constant 0 : index
    %c0_1 = arith.constant 0 : index
    %0 = vector.load %arg1[%c0, %c0_0, %c0_1] : memref<2x1x32xf32, #tpu.memory_space<vmem>>, vector<2x1x32xf32>
    %1 = vector.shape_cast %0 : vector<2x1x32xf32> to vector<2x32xf32>
    %c0_2 = arith.constant 0 : index
    %c0_3 = arith.constant 0 : index
    %2 = vector.load %arg3[%c0_2, %c0_3] : memref<32x32xf32, #tpu.memory_space<vmem>>, vector<32x32xf32>
    %cst = arith.constant dense<0.000000e+00> : vector<2x32xf32>
    %3 = tpu.matmul %1, %2, %cst {dimension_numbers = #tpu.dot_dimension_numbers<[1], [0], [0], [1], [0, 0, 1, 1], [], []>} : vector<2x32xf32>, vector<32x32xf32>, vector<2x32xf32> -> vector<2x32xf32>
    %c0_4 = arith.constant 0 : index
    %c0_5 = arith.constant 0 : index
    %4 = vector.load %arg4[%c0_4, %c0_5] : memref<1x32xf32, #tpu.memory_space<vmem>>, vector<1x32xf32>
    %5 = vector.broadcast %4 : vector<1x32xf32> to vector<2x32xf32>
    %6 = arith.addf %3, %5 : vector<2x32xf32>
    %c0_6 = arith.constant 0 : index
    %c0_7 = arith.constant 0 : index
    %c0_8 = arith.constant 0 : index
    %7 = vector.load %arg2[%c0_6, %c0_7, %c0_8] : memref<2x8x32xf32, #tpu.memory_space<vmem>>, vector<2x8x32xf32>
    %8 = vector.shape_cast %7 : vector<2x8x32xf32> to vector<16x32xf32>
    %c0_9 = arith.constant 0 : index
    %c0_10 = arith.constant 0 : index
    %9 = vector.load %arg5[%c0_9, %c0_10] : memref<32x64xf32, #tpu.memory_space<vmem>>, vector<32x64xf32>
    %cst_11 = arith.constant dense<0.000000e+00> : vector<16x64xf32>
    %10 = tpu.matmul %8, %9, %cst_11 {dimension_numbers = #tpu.dot_dimension_numbers<[1], [0], [0], [1], [0, 0, 1, 1], [], []>} : vector<16x32xf32>, vector<32x64xf32>, vector<16x64xf32> -> vector<16x64xf32>
    %c0_12 = arith.constant 0 : index
    %c0_13 = arith.constant 0 : index
    %11 = vector.load %arg6[%c0_12, %c0_13] : memref<1x64xf32, #tpu.memory_space<vmem>>, vector<1x64xf32>
    %12 = vector.broadcast %11 : vector<1x64xf32> to vector<16x64xf32>
    %13 = arith.addf %10, %12 : vector<16x64xf32>
    %14 = vector.extract_strided_slice %13 {offsets = [0, 0], sizes = [16, 32], strides = [1, 1]} : vector<16x64xf32> to vector<16x32xf32>
    %15 = vector.shape_cast %14 : vector<16x32xf32> to vector<2x8x32xf32>
    %16 = vector.extract_strided_slice %13 {offsets = [0, 32], sizes = [16, 32], strides = [1, 1]} : vector<16x64xf32> to vector<16x32xf32>
    %cst_14 = arith.constant 0.353553385 : f32
    %17 = vector.broadcast %cst_14 : f32 to vector<2x32xf32>
    %18 = arith.mulf %6, %17 : vector<2x32xf32>
    %19 = vector.shape_cast %18 : vector<2x32xf32> to vector<2x1x32xf32>
    %20 = vector.broadcast %19 : vector<2x1x32xf32> to vector<2x8x32xf32>
    %21 = arith.mulf %15, %20 : vector<2x8x32xf32>
    %22 = vector.shape_cast %21 : vector<2x8x32xf32> to vector<16x32xf32>
    %c0_15 = arith.constant 0 : index
    %c0_16 = arith.constant 0 : index
    %23 = vector.load %arg9[%c0_15, %c0_16] : memref<32x4xf32, #tpu.memory_space<vmem>>, vector<32x4xf32>
    %cst_17 = arith.constant dense<0.000000e+00> : vector<16x4xf32>
    %24 = tpu.matmul %22, %23, %cst_17 {dimension_numbers = #tpu.dot_dimension_numbers<[1], [0], [0], [1], [0, 0, 1, 1], [], []>} : vector<16x32xf32>, vector<32x4xf32>, vector<16x4xf32> -> vector<16x4xf32>
    %25 = vector.shape_cast %24 : vector<16x4xf32> to vector<2x8x4xf32>
    %cst_18 = arith.constant dense<0xFF800000> : vector<2x4xf32>
    %26 = vector.multi_reduction <maximumf>, %25, %cst_18 [1] : vector<2x8x4xf32> to vector<2x4xf32>
    %27 = vector.shape_cast %26 : vector<2x4xf32> to vector<2x1x4xf32>
    %28 = vector.broadcast %27 : vector<2x1x4xf32> to vector<2x8x4xf32>
    %29 = arith.subf %25, %28 : vector<2x8x4xf32>
    %30 = math.exp %29 : vector<2x8x4xf32>
    %cst_19 = arith.constant dense<0.000000e+00> : vector<2x4xf32>
    %31 = vector.multi_reduction <add>, %30, %cst_19 [1] : vector<2x8x4xf32> to vector<2x4xf32>
    %32 = vector.shape_cast %31 : vector<2x4xf32> to vector<2x1x4xf32>
    %33 = tpu.reciprocal %32 {approx = true} : vector<2x1x4xf32> -> vector<2x1x4xf32>
    %34 = vector.broadcast %33 : vector<2x1x4xf32> to vector<2x8x4xf32>
    %35 = arith.mulf %30, %34 : vector<2x8x4xf32>
    %cst_20 = arith.constant dense<0.000000e+00> : vector<2x8xf32>
    %36 = vector.multi_reduction <add>, %35, %cst_20 [2] : vector<2x8x4xf32> to vector<2x8xf32>
    %cst_21 = arith.constant 2.500000e-01 : f32
    %37 = vector.broadcast %cst_21 : f32 to vector<2x8xf32>
    %38 = arith.mulf %36, %37 : vector<2x8xf32>
    %39 = vector.shape_cast %38 : vector<2x8xf32> to vector<2x1x8xf32>
    %c0_22 = arith.constant 0 : index
    %c0_23 = arith.constant 0 : index
    %c0_24 = arith.constant 0 : index
    %40 = vector.load %arg12[%c0_22, %c0_23, %c0_24] : memref<2x1x8xf32, #tpu.memory_space<vmem>>, vector<2x1x8xf32>
    tpu.vector_store %arg12[%c0_22, %c0_23, %c0_24], %39 {strides = array<i32>} : memref<2x1x8xf32, #tpu.memory_space<vmem>>, vector<2x1x8xf32>,
    %41 = vector.shape_cast %35 : vector<2x8x4xf32> to vector<16x4xf32>
    %c0_25 = arith.constant 0 : index
    %c0_26 = arith.constant 0 : index
    %42 = vector.load %arg10[%c0_25, %c0_26] : memref<4x32xf32, #tpu.memory_space<vmem>>, vector<4x32xf32>
    %cst_27 = arith.constant dense<0.000000e+00> : vector<16x32xf32>
    %43 = tpu.matmul %41, %42, %cst_27 {dimension_numbers = #tpu.dot_dimension_numbers<[1], [0], [0], [1], [0, 0, 1, 1], [], []>} : vector<16x4xf32>, vector<4x32xf32>, vector<16x32xf32> -> vector<16x32xf32>
    %44 = arith.mulf %43, %16 : vector<16x32xf32>
    %45 = vector.shape_cast %44 : vector<16x32xf32> to vector<2x8x32xf32>
    %cst_28 = arith.constant dense<0.000000e+00> : vector<2x32xf32>
    %46 = vector.multi_reduction <add>, %45, %cst_28 [1] : vector<2x8x32xf32> to vector<2x32xf32>
    %c0_29 = arith.constant 0 : index
    %c0_30 = arith.constant 0 : index
    %47 = vector.load %arg7[%c0_29, %c0_30] : memref<32x32xf32, #tpu.memory_space<vmem>>, vector<32x32xf32>
    %cst_31 = arith.constant dense<0.000000e+00> : vector<2x32xf32>
    %48 = tpu.matmul %46, %47, %cst_31 {dimension_numbers = #tpu.dot_dimension_numbers<[1], [0], [0], [1], [0, 0, 1, 1], [], []>} : vector<2x32xf32>, vector<32x32xf32>, vector<2x32xf32> -> vector<2x32xf32>
    %c0_32 = arith.constant 0 : index
    %c0_33 = arith.constant 0 : index
    %49 = vector.load %arg8[%c0_32, %c0_33] : memref<1x32xf32, #tpu.memory_space<vmem>>, vector<1x32xf32>
    %50 = vector.broadcast %49 : vector<1x32xf32> to vector<2x32xf32>
    %51 = arith.addf %48, %50 : vector<2x32xf32>
    %52 = arith.addf %51, %1 : vector<2x32xf32>
    %53 = vector.shape_cast %52 : vector<2x32xf32> to vector<2x1x32xf32>
    %c0_34 = arith.constant 0 : index
    %c0_35 = arith.constant 0 : index
    %c0_36 = arith.constant 0 : index
    %54 = vector.load %arg11[%c0_34, %c0_35, %c0_36] : memref<2x1x32xf32, #tpu.memory_space<vmem>>, vector<2x1x32xf32>
    tpu.vector_store %arg11[%c0_34, %c0_35, %c0_36], %53 {strides = array<i32>} : memref<2x1x32xf32, #tpu.memory_space<vmem>>, vector<2x1x32xf32>,
    return
  }
  func.func @transform_0(%arg0: i32) -> (i32, i32, i32) {
    %c0_i32 = arith.constant 0 : i32
    %c0_i32_0 = arith.constant 0 : i32
    %c0_i32_1 = arith.constant 0 : i32
    return %arg0, %c0_i32, %c0_i32_0 : i32, i32, i32
  }
  func.func @transform_1(%arg0: i32) -> (i32, i32, i32) {
    %c0_i32 = arith.constant 0 : i32
    %c0_i32_0 = arith.constant 0 : i32
    %c0_i32_1 = arith.constant 0 : i32
    return %arg0, %c0_i32, %c0_i32_0 : i32, i32, i32
  }
  func.func @transform_2(%arg0: i32) -> (i32, i32) {
    %c0_i32 = arith.constant 0 : i32
    %c0_i32_0 = arith.constant 0 : i32
    %c0_i32_1 = arith.constant 0 : i32
    return %c0_i32, %c0_i32_0 : i32, i32
  }
  func.func @transform_3(%arg0: i32) -> (i32, i32) {
    %c0_i32 = arith.constant 0 : i32
    %c0_i32_0 = arith.constant 0 : i32
    %c0_i32_1 = arith.constant 0 : i32
    return %c0_i32, %c0_i32_0 : i32, i32
  }
  func.func @transform_4(%arg0: i32) -> (i32, i32) {
    %c0_i32 = arith.constant 0 : i32
    %c0_i32_0 = arith.constant 0 : i32
    %c0_i32_1 = arith.constant 0 : i32
    return %c0_i32, %c0_i32_0 : i32, i32
  }
  func.func @transform_5(%arg0: i32) -> (i32, i32) {
    %c0_i32 = arith.constant 0 : i32
    %c0_i32_0 = arith.constant 0 : i32
    %c0_i32_1 = arith.constant 0 : i32
    return %c0_i32, %c0_i32_0 : i32, i32
  }
  func.func @transform_6(%arg0: i32) -> (i32, i32) {
    %c0_i32 = arith.constant 0 : i32
    %c0_i32_0 = arith.constant 0 : i32
    %c0_i32_1 = arith.constant 0 : i32
    return %c0_i32, %c0_i32_0 : i32, i32
  }
  func.func @transform_7(%arg0: i32) -> (i32, i32) {
    %c0_i32 = arith.constant 0 : i32
    %c0_i32_0 = arith.constant 0 : i32
    %c0_i32_1 = arith.constant 0 : i32
    return %c0_i32, %c0_i32_0 : i32, i32
  }
  func.func @transform_8(%arg0: i32) -> (i32, i32) {
    %c0_i32 = arith.constant 0 : i32
    %c0_i32_0 = arith.constant 0 : i32
    %c0_i32_1 = arith.constant 0 : i32
    return %c0_i32, %c0_i32_0 : i32, i32
  }
  func.func @transform_9(%arg0: i32) -> (i32, i32) {
    %c0_i32 = arith.constant 0 : i32
    %c0_i32_0 = arith.constant 0 : i32
    %c0_i32_1 = arith.constant 0 : i32
    return %c0_i32, %c0_i32_0 : i32, i32
  }
  func.func @transform_10(%arg0: i32) -> (i32, i32, i32) {
    %c0_i32 = arith.constant 0 : i32
    %c0_i32_0 = arith.constant 0 : i32
    %c0_i32_1 = arith.constant 0 : i32
    return %arg0, %c0_i32, %c0_i32_0 : i32, i32, i32
  }
  func.func @transform_11(%arg0: i32) -> (i32, i32, i32) {
    %c0_i32 = arith.constant 0 : i32
    %c0_i32_0 = arith.constant 0 : i32
    %c0_i32_1 = arith.constant 0 : i32
    return %arg0, %c0_i32, %c0_i32_0 : i32, i32, i32
  }
}

module attributes {stable_mosaic.version = 11 : i64} {
  func.func @_edge_kernel(%arg0: i32, %arg1: memref<2x8x32xf32, #tpu.memory_space<vmem>>, %arg2: memref<2x8x8x32xf32, #tpu.memory_space<vmem>>, %arg3: memref<32x32xf32, #tpu.memory_space<vmem>>, %arg4: memref<1x32xf32, #tpu.memory_space<vmem>>, %arg5: memref<32x64xf32, #tpu.memory_space<vmem>>, %arg6: memref<1x64xf32, #tpu.memory_space<vmem>>, %arg7: memref<1x32xf32, #tpu.memory_space<vmem>>, %arg8: memref<1x32xf32, #tpu.memory_space<vmem>>, %arg9: memref<2x8x8x32xf32, #tpu.memory_space<vmem>>, %arg10: memref<1x1x32xf32, #tpu.memory_space<vmem>>, %arg11: memref<1x1x32xf32, #tpu.memory_space<vmem>>) attributes {dimension_semantics = [#tpu.dimension_semantics<parallel>], iteration_bounds = array<i64: 1>, scalar_prefetch = 0 : i64, scratch_operands = 0 : i64, tpu.core_type = #tpu.core_type<tc>, window_params = [{transform_indices = @transform_0, window_bounds = array<i64: 2, 8, 32>}, {transform_indices = @transform_1, window_bounds = array<i64: 2, 8, 8, 32>}, {pipeline_mode = #tpu.pipeline_mode<synchronous>, transform_indices = @transform_2, window_bounds = array<i64: 32, 32>}, {pipeline_mode = #tpu.pipeline_mode<synchronous>, transform_indices = @transform_3, window_bounds = array<i64: 1, 32>}, {pipeline_mode = #tpu.pipeline_mode<synchronous>, transform_indices = @transform_4, window_bounds = array<i64: 32, 64>}, {pipeline_mode = #tpu.pipeline_mode<synchronous>, transform_indices = @transform_5, window_bounds = array<i64: 1, 64>}, {pipeline_mode = #tpu.pipeline_mode<synchronous>, transform_indices = @transform_6, window_bounds = array<i64: 1, 32>}, {pipeline_mode = #tpu.pipeline_mode<synchronous>, transform_indices = @transform_7, window_bounds = array<i64: 1, 32>}, {transform_indices = @transform_8, window_bounds = array<i64: 2, 8, 8, 32>}, {transform_indices = @transform_9, window_bounds = array<i64: 1, 1, 32>}, {transform_indices = @transform_10, window_bounds = array<i64: 1, 1, 32>}]} {
    %c0 = arith.constant 0 : index
    %c0_0 = arith.constant 0 : index
    %c0_1 = arith.constant 0 : index
    %c0_2 = arith.constant 0 : index
    %0 = vector.load %arg2[%c0, %c0_0, %c0_1, %c0_2] : memref<2x8x8x32xf32, #tpu.memory_space<vmem>>, vector<2x8x8x32xf32>
    %1 = vector.shape_cast %0 : vector<2x8x8x32xf32> to vector<128x32xf32>
    %c0_3 = arith.constant 0 : index
    %c0_4 = arith.constant 0 : index
    %2 = vector.load %arg3[%c0_3, %c0_4] : memref<32x32xf32, #tpu.memory_space<vmem>>, vector<32x32xf32>
    %cst = arith.constant dense<0.000000e+00> : vector<128x32xf32>
    %3 = tpu.matmul %1, %2, %cst {dimension_numbers = #tpu.dot_dimension_numbers<[1], [0], [0], [1], [0, 0, 1, 1], [], []>} : vector<128x32xf32>, vector<32x32xf32>, vector<128x32xf32> -> vector<128x32xf32>
    %c0_5 = arith.constant 0 : index
    %c0_6 = arith.constant 0 : index
    %4 = vector.load %arg4[%c0_5, %c0_6] : memref<1x32xf32, #tpu.memory_space<vmem>>, vector<1x32xf32>
    %5 = vector.broadcast %4 : vector<1x32xf32> to vector<128x32xf32>
    %6 = arith.addf %3, %5 : vector<128x32xf32>
    %c0_7 = arith.constant 0 : index
    %c0_8 = arith.constant 0 : index
    %c0_9 = arith.constant 0 : index
    %7 = vector.load %arg1[%c0_7, %c0_8, %c0_9] : memref<2x8x32xf32, #tpu.memory_space<vmem>>, vector<2x8x32xf32>
    %8 = vector.shape_cast %7 : vector<2x8x32xf32> to vector<16x32xf32>
    %c0_10 = arith.constant 0 : index
    %c0_11 = arith.constant 0 : index
    %9 = vector.load %arg5[%c0_10, %c0_11] : memref<32x64xf32, #tpu.memory_space<vmem>>, vector<32x64xf32>
    %cst_12 = arith.constant dense<0.000000e+00> : vector<16x64xf32>
    %10 = tpu.matmul %8, %9, %cst_12 {dimension_numbers = #tpu.dot_dimension_numbers<[1], [0], [0], [1], [0, 0, 1, 1], [], []>} : vector<16x32xf32>, vector<32x64xf32>, vector<16x64xf32> -> vector<16x64xf32>
    %c0_13 = arith.constant 0 : index
    %c0_14 = arith.constant 0 : index
    %11 = vector.load %arg6[%c0_13, %c0_14] : memref<1x64xf32, #tpu.memory_space<vmem>>, vector<1x64xf32>
    %12 = vector.broadcast %11 : vector<1x64xf32> to vector<16x64xf32>
    %13 = arith.addf %10, %12 : vector<16x64xf32>
    %14 = vector.extract_strided_slice %13 {offsets = [0, 0], sizes = [16, 32], strides = [1, 1]} : vector<16x64xf32> to vector<16x32xf32>
    %15 = vector.shape_cast %14 : vector<16x32xf32> to vector<2x8x32xf32>
    %16 = vector.shape_cast %15 : vector<2x8x32xf32> to vector<2x1x8x32xf32>
    %17 = vector.extract_strided_slice %13 {offsets = [0, 32], sizes = [16, 32], strides = [1, 1]} : vector<16x64xf32> to vector<16x32xf32>
    %18 = vector.shape_cast %17 : vector<16x32xf32> to vector<2x8x32xf32>
    %19 = vector.shape_cast %18 : vector<2x8x32xf32> to vector<2x8x1x32xf32>
    %20 = vector.shape_cast %6 : vector<128x32xf32> to vector<2x8x8x32xf32>
    %21 = vector.broadcast %16 : vector<2x1x8x32xf32> to vector<2x8x8x32xf32>
    %22 = arith.addf %20, %21 : vector<2x8x8x32xf32>
    %23 = vector.broadcast %19 : vector<2x8x1x32xf32> to vector<2x8x8x32xf32>
    %24 = arith.addf %22, %23 : vector<2x8x8x32xf32>
    %cst_15 = arith.constant 0.000000e+00 : f32
    %25 = vector.broadcast %cst_15 : f32 to vector<2x8x8x32xf32>
    %26 = arith.subf %25, %24 : vector<2x8x8x32xf32>
    %27 = math.exp %26 : vector<2x8x8x32xf32>
    %cst_16 = arith.constant 1.000000e+00 : f32
    %28 = vector.broadcast %cst_16 : f32 to vector<2x8x8x32xf32>
    %29 = arith.addf %28, %27 : vector<2x8x8x32xf32>
    %30 = tpu.reciprocal %29 {approx = true} : vector<2x8x8x32xf32> -> vector<2x8x8x32xf32>
    %c0_17 = arith.constant 0 : index
    %c0_18 = arith.constant 0 : index
    %31 = vector.load %arg7[%c0_17, %c0_18] : memref<1x32xf32, #tpu.memory_space<vmem>>, vector<1x32xf32>
    %32 = vector.shape_cast %31 : vector<1x32xf32> to vector<1x1x1x32xf32>
    %33 = vector.broadcast %32 : vector<1x1x1x32xf32> to vector<2x8x8x32xf32>
    %34 = arith.mulf %0, %33 : vector<2x8x8x32xf32>
    %c0_19 = arith.constant 0 : index
    %c0_20 = arith.constant 0 : index
    %35 = vector.load %arg8[%c0_19, %c0_20] : memref<1x32xf32, #tpu.memory_space<vmem>>, vector<1x32xf32>
    %36 = vector.shape_cast %35 : vector<1x32xf32> to vector<1x1x1x32xf32>
    %37 = vector.broadcast %36 : vector<1x1x1x32xf32> to vector<2x8x8x32xf32>
    %38 = arith.addf %34, %37 : vector<2x8x8x32xf32>
    %39 = arith.addf %30, %38 : vector<2x8x8x32xf32>
    %c0_21 = arith.constant 0 : index
    %c0_22 = arith.constant 0 : index
    %c0_23 = arith.constant 0 : index
    %c0_24 = arith.constant 0 : index
    %40 = vector.load %arg9[%c0_21, %c0_22, %c0_23, %c0_24] : memref<2x8x8x32xf32, #tpu.memory_space<vmem>>, vector<2x8x8x32xf32>
    tpu.vector_store %arg9[%c0_21, %c0_22, %c0_23, %c0_24], %39 {strides = array<i32>} : memref<2x8x8x32xf32, #tpu.memory_space<vmem>>, vector<2x8x8x32xf32>,
    %41 = vector.shape_cast %39 : vector<2x8x8x32xf32> to vector<128x32xf32>
    %cst_25 = arith.constant dense<0.000000e+00> : vector<32xf32>
    %42 = vector.multi_reduction <add>, %41, %cst_25 [0] : vector<128x32xf32> to vector<32xf32>
    %43 = vector.shape_cast %42 : vector<32xf32> to vector<1x32xf32>
    %44 = vector.shape_cast %43 : vector<1x32xf32> to vector<1x1x32xf32>
    %c0_26 = arith.constant 0 : index
    %c0_27 = arith.constant 0 : index
    %c0_28 = arith.constant 0 : index
    %45 = vector.load %arg10[%c0_26, %c0_27, %c0_28] : memref<1x1x32xf32, #tpu.memory_space<vmem>>, vector<1x1x32xf32>
    tpu.vector_store %arg10[%c0_26, %c0_27, %c0_28], %44 {strides = array<i32>} : memref<1x1x32xf32, #tpu.memory_space<vmem>>, vector<1x1x32xf32>,
    %46 = arith.mulf %41, %41 : vector<128x32xf32>
    %cst_29 = arith.constant dense<0.000000e+00> : vector<32xf32>
    %47 = vector.multi_reduction <add>, %46, %cst_29 [0] : vector<128x32xf32> to vector<32xf32>
    %48 = vector.shape_cast %47 : vector<32xf32> to vector<1x32xf32>
    %49 = vector.shape_cast %48 : vector<1x32xf32> to vector<1x1x32xf32>
    %c0_30 = arith.constant 0 : index
    %c0_31 = arith.constant 0 : index
    %c0_32 = arith.constant 0 : index
    %50 = vector.load %arg11[%c0_30, %c0_31, %c0_32] : memref<1x1x32xf32, #tpu.memory_space<vmem>>, vector<1x1x32xf32>
    tpu.vector_store %arg11[%c0_30, %c0_31, %c0_32], %49 {strides = array<i32>} : memref<1x1x32xf32, #tpu.memory_space<vmem>>, vector<1x1x32xf32>,
    return
  }
  func.func @transform_0(%arg0: i32) -> (i32, i32, i32) {
    %c0_i32 = arith.constant 0 : i32
    %c0_i32_0 = arith.constant 0 : i32
    %c0_i32_1 = arith.constant 0 : i32
    return %arg0, %c0_i32, %c0_i32_0 : i32, i32, i32
  }
  func.func @transform_1(%arg0: i32) -> (i32, i32, i32, i32) {
    %c0_i32 = arith.constant 0 : i32
    %c0_i32_0 = arith.constant 0 : i32
    %c0_i32_1 = arith.constant 0 : i32
    %c0_i32_2 = arith.constant 0 : i32
    return %arg0, %c0_i32, %c0_i32_0, %c0_i32_1 : i32, i32, i32, i32
  }
  func.func @transform_2(%arg0: i32) -> (i32, i32) {
    %c0_i32 = arith.constant 0 : i32
    %c0_i32_0 = arith.constant 0 : i32
    %c0_i32_1 = arith.constant 0 : i32
    return %c0_i32, %c0_i32_0 : i32, i32
  }
  func.func @transform_3(%arg0: i32) -> (i32, i32) {
    %c0_i32 = arith.constant 0 : i32
    %c0_i32_0 = arith.constant 0 : i32
    %c0_i32_1 = arith.constant 0 : i32
    return %c0_i32, %c0_i32_0 : i32, i32
  }
  func.func @transform_4(%arg0: i32) -> (i32, i32) {
    %c0_i32 = arith.constant 0 : i32
    %c0_i32_0 = arith.constant 0 : i32
    %c0_i32_1 = arith.constant 0 : i32
    return %c0_i32, %c0_i32_0 : i32, i32
  }
  func.func @transform_5(%arg0: i32) -> (i32, i32) {
    %c0_i32 = arith.constant 0 : i32
    %c0_i32_0 = arith.constant 0 : i32
    %c0_i32_1 = arith.constant 0 : i32
    return %c0_i32, %c0_i32_0 : i32, i32
  }
  func.func @transform_6(%arg0: i32) -> (i32, i32) {
    %c0_i32 = arith.constant 0 : i32
    %c0_i32_0 = arith.constant 0 : i32
    %c0_i32_1 = arith.constant 0 : i32
    return %c0_i32, %c0_i32_0 : i32, i32
  }
  func.func @transform_7(%arg0: i32) -> (i32, i32) {
    %c0_i32 = arith.constant 0 : i32
    %c0_i32_0 = arith.constant 0 : i32
    %c0_i32_1 = arith.constant 0 : i32
    return %c0_i32, %c0_i32_0 : i32, i32
  }
  func.func @transform_8(%arg0: i32) -> (i32, i32, i32, i32) {
    %c0_i32 = arith.constant 0 : i32
    %c0_i32_0 = arith.constant 0 : i32
    %c0_i32_1 = arith.constant 0 : i32
    %c0_i32_2 = arith.constant 0 : i32
    return %arg0, %c0_i32, %c0_i32_0, %c0_i32_1 : i32, i32, i32, i32
  }
  func.func @transform_9(%arg0: i32) -> (i32, i32, i32) {
    %c0_i32 = arith.constant 0 : i32
    %c0_i32_0 = arith.constant 0 : i32
    %c0_i32_1 = arith.constant 0 : i32
    return %arg0, %c0_i32, %c0_i32_0 : i32, i32, i32
  }
  func.func @transform_10(%arg0: i32) -> (i32, i32, i32) {
    %c0_i32 = arith.constant 0 : i32
    %c0_i32_0 = arith.constant 0 : i32
    %c0_i32_1 = arith.constant 0 : i32
    return %arg0, %c0_i32, %c0_i32_0 : i32, i32, i32
  }
}

module attributes {stable_mosaic.version = 11 : i64} {
  func.func @_mha_kernel(%arg0: i32, %arg1: memref<2x1x32xf32, #tpu.memory_space<vmem>>, %arg2: memref<2x8x32xf32, #tpu.memory_space<vmem>>, %arg3: memref<32x32xf32, #tpu.memory_space<vmem>>, %arg4: memref<1x32xf32, #tpu.memory_space<vmem>>, %arg5: memref<32x64xf32, #tpu.memory_space<vmem>>, %arg6: memref<1x64xf32, #tpu.memory_space<vmem>>, %arg7: memref<32x32xf32, #tpu.memory_space<vmem>>, %arg8: memref<1x32xf32, #tpu.memory_space<vmem>>, %arg9: memref<32x4xf32, #tpu.memory_space<vmem>>, %arg10: memref<4x32xf32, #tpu.memory_space<vmem>>, %arg11: memref<2x1x32xf32, #tpu.memory_space<vmem>>, %arg12: memref<2x1x8xf32, #tpu.memory_space<vmem>>) attributes {dimension_semantics = [#tpu.dimension_semantics<parallel>], iteration_bounds = array<i64: 1>, scalar_prefetch = 0 : i64, scratch_operands = 0 : i64, tpu.core_type = #tpu.core_type<tc>, window_params = [{transform_indices = @transform_0, window_bounds = array<i64: 2, 1, 32>}, {transform_indices = @transform_1, window_bounds = array<i64: 2, 8, 32>}, {pipeline_mode = #tpu.pipeline_mode<synchronous>, transform_indices = @transform_2, window_bounds = array<i64: 32, 32>}, {pipeline_mode = #tpu.pipeline_mode<synchronous>, transform_indices = @transform_3, window_bounds = array<i64: 1, 32>}, {pipeline_mode = #tpu.pipeline_mode<synchronous>, transform_indices = @transform_4, window_bounds = array<i64: 32, 64>}, {pipeline_mode = #tpu.pipeline_mode<synchronous>, transform_indices = @transform_5, window_bounds = array<i64: 1, 64>}, {pipeline_mode = #tpu.pipeline_mode<synchronous>, transform_indices = @transform_6, window_bounds = array<i64: 32, 32>}, {pipeline_mode = #tpu.pipeline_mode<synchronous>, transform_indices = @transform_7, window_bounds = array<i64: 1, 32>}, {pipeline_mode = #tpu.pipeline_mode<synchronous>, transform_indices = @transform_8, window_bounds = array<i64: 32, 4>}, {pipeline_mode = #tpu.pipeline_mode<synchronous>, transform_indices = @transform_9, window_bounds = array<i64: 4, 32>}, {transform_indices = @transform_10, window_bounds = array<i64: 2, 1, 32>}, {transform_indices = @transform_11, window_bounds = array<i64: 2, 1, 8>}]} {
    %c0 = arith.constant 0 : index
    %c0_0 = arith.constant 0 : index
    %c0_1 = arith.constant 0 : index
    %0 = vector.load %arg1[%c0, %c0_0, %c0_1] : memref<2x1x32xf32, #tpu.memory_space<vmem>>, vector<2x1x32xf32>
    %1 = vector.shape_cast %0 : vector<2x1x32xf32> to vector<2x32xf32>
    %c0_2 = arith.constant 0 : index
    %c0_3 = arith.constant 0 : index
    %2 = vector.load %arg3[%c0_2, %c0_3] : memref<32x32xf32, #tpu.memory_space<vmem>>, vector<32x32xf32>
    %cst = arith.constant dense<0.000000e+00> : vector<2x32xf32>
    %3 = tpu.matmul %1, %2, %cst {dimension_numbers = #tpu.dot_dimension_numbers<[1], [0], [0], [1], [0, 0, 1, 1], [], []>} : vector<2x32xf32>, vector<32x32xf32>, vector<2x32xf32> -> vector<2x32xf32>
    %c0_4 = arith.constant 0 : index
    %c0_5 = arith.constant 0 : index
    %4 = vector.load %arg4[%c0_4, %c0_5] : memref<1x32xf32, #tpu.memory_space<vmem>>, vector<1x32xf32>
    %5 = vector.broadcast %4 : vector<1x32xf32> to vector<2x32xf32>
    %6 = arith.addf %3, %5 : vector<2x32xf32>
    %c0_6 = arith.constant 0 : index
    %c0_7 = arith.constant 0 : index
    %c0_8 = arith.constant 0 : index
    %7 = vector.load %arg2[%c0_6, %c0_7, %c0_8] : memref<2x8x32xf32, #tpu.memory_space<vmem>>, vector<2x8x32xf32>
    %8 = vector.shape_cast %7 : vector<2x8x32xf32> to vector<16x32xf32>
    %c0_9 = arith.constant 0 : index
    %c0_10 = arith.constant 0 : index
    %9 = vector.load %arg5[%c0_9, %c0_10] : memref<32x64xf32, #tpu.memory_space<vmem>>, vector<32x64xf32>
    %cst_11 = arith.constant dense<0.000000e+00> : vector<16x64xf32>
    %10 = tpu.matmul %8, %9, %cst_11 {dimension_numbers = #tpu.dot_dimension_numbers<[1], [0], [0], [1], [0, 0, 1, 1], [], []>} : vector<16x32xf32>, vector<32x64xf32>, vector<16x64xf32> -> vector<16x64xf32>
    %c0_12 = arith.constant 0 : index
    %c0_13 = arith.constant 0 : index
    %11 = vector.load %arg6[%c0_12, %c0_13] : memref<1x64xf32, #tpu.memory_space<vmem>>, vector<1x64xf32>
    %12 = vector.broadcast %11 : vector<1x64xf32> to vector<16x64xf32>
    %13 = arith.addf %10, %12 : vector<16x64xf32>
    %14 = vector.extract_strided_slice %13 {offsets = [0, 0], sizes = [16, 32], strides = [1, 1]} : vector<16x64xf32> to vector<16x32xf32>
    %15 = vector.shape_cast %14 : vector<16x32xf32> to vector<2x8x32xf32>
    %16 = vector.extract_strided_slice %13 {offsets = [0, 32], sizes = [16, 32], strides = [1, 1]} : vector<16x64xf32> to vector<16x32xf32>
    %cst_14 = arith.constant 0.353553385 : f32
    %17 = vector.broadcast %cst_14 : f32 to vector<2x32xf32>
    %18 = arith.mulf %6, %17 : vector<2x32xf32>
    %19 = vector.shape_cast %18 : vector<2x32xf32> to vector<2x1x32xf32>
    %20 = vector.broadcast %19 : vector<2x1x32xf32> to vector<2x8x32xf32>
    %21 = arith.mulf %15, %20 : vector<2x8x32xf32>
    %22 = vector.shape_cast %21 : vector<2x8x32xf32> to vector<16x32xf32>
    %c0_15 = arith.constant 0 : index
    %c0_16 = arith.constant 0 : index
    %23 = vector.load %arg9[%c0_15, %c0_16] : memref<32x4xf32, #tpu.memory_space<vmem>>, vector<32x4xf32>
    %cst_17 = arith.constant dense<0.000000e+00> : vector<16x4xf32>
    %24 = tpu.matmul %22, %23, %cst_17 {dimension_numbers = #tpu.dot_dimension_numbers<[1], [0], [0], [1], [0, 0, 1, 1], [], []>} : vector<16x32xf32>, vector<32x4xf32>, vector<16x4xf32> -> vector<16x4xf32>
    %25 = vector.shape_cast %24 : vector<16x4xf32> to vector<2x8x4xf32>
    %cst_18 = arith.constant dense<0xFF800000> : vector<2x4xf32>
    %26 = vector.multi_reduction <maximumf>, %25, %cst_18 [1] : vector<2x8x4xf32> to vector<2x4xf32>
    %27 = vector.shape_cast %26 : vector<2x4xf32> to vector<2x1x4xf32>
    %28 = vector.broadcast %27 : vector<2x1x4xf32> to vector<2x8x4xf32>
    %29 = arith.subf %25, %28 : vector<2x8x4xf32>
    %30 = math.exp %29 : vector<2x8x4xf32>
    %cst_19 = arith.constant dense<0.000000e+00> : vector<2x4xf32>
    %31 = vector.multi_reduction <add>, %30, %cst_19 [1] : vector<2x8x4xf32> to vector<2x4xf32>
    %32 = vector.shape_cast %31 : vector<2x4xf32> to vector<2x1x4xf32>
    %33 = tpu.reciprocal %32 {approx = true} : vector<2x1x4xf32> -> vector<2x1x4xf32>
    %34 = vector.broadcast %33 : vector<2x1x4xf32> to vector<2x8x4xf32>
    %35 = arith.mulf %30, %34 : vector<2x8x4xf32>
    %cst_20 = arith.constant dense<0.000000e+00> : vector<2x8xf32>
    %36 = vector.multi_reduction <add>, %35, %cst_20 [2] : vector<2x8x4xf32> to vector<2x8xf32>
    %cst_21 = arith.constant 2.500000e-01 : f32
    %37 = vector.broadcast %cst_21 : f32 to vector<2x8xf32>
    %38 = arith.mulf %36, %37 : vector<2x8xf32>
    %39 = vector.shape_cast %38 : vector<2x8xf32> to vector<2x1x8xf32>
    %c0_22 = arith.constant 0 : index
    %c0_23 = arith.constant 0 : index
    %c0_24 = arith.constant 0 : index
    %40 = vector.load %arg12[%c0_22, %c0_23, %c0_24] : memref<2x1x8xf32, #tpu.memory_space<vmem>>, vector<2x1x8xf32>
    tpu.vector_store %arg12[%c0_22, %c0_23, %c0_24], %39 {strides = array<i32>} : memref<2x1x8xf32, #tpu.memory_space<vmem>>, vector<2x1x8xf32>,
    %41 = vector.shape_cast %35 : vector<2x8x4xf32> to vector<16x4xf32>
    %c0_25 = arith.constant 0 : index
    %c0_26 = arith.constant 0 : index
    %42 = vector.load %arg10[%c0_25, %c0_26] : memref<4x32xf32, #tpu.memory_space<vmem>>, vector<4x32xf32>
    %cst_27 = arith.constant dense<0.000000e+00> : vector<16x32xf32>
    %43 = tpu.matmul %41, %42, %cst_27 {dimension_numbers = #tpu.dot_dimension_numbers<[1], [0], [0], [1], [0, 0, 1, 1], [], []>} : vector<16x4xf32>, vector<4x32xf32>, vector<16x32xf32> -> vector<16x32xf32>
    %44 = arith.mulf %43, %16 : vector<16x32xf32>
    %45 = vector.shape_cast %44 : vector<16x32xf32> to vector<2x8x32xf32>
    %cst_28 = arith.constant dense<0.000000e+00> : vector<2x32xf32>
    %46 = vector.multi_reduction <add>, %45, %cst_28 [1] : vector<2x8x32xf32> to vector<2x32xf32>
    %c0_29 = arith.constant 0 : index
    %c0_30 = arith.constant 0 : index
    %47 = vector.load %arg7[%c0_29, %c0_30] : memref<32x32xf32, #tpu.memory_space<vmem>>, vector<32x32xf32>
    %cst_31 = arith.constant dense<0.000000e+00> : vector<2x32xf32>
    %48 = tpu.matmul %46, %47, %cst_31 {dimension_numbers = #tpu.dot_dimension_numbers<[1], [0], [0], [1], [0, 0, 1, 1], [], []>} : vector<2x32xf32>, vector<32x32xf32>, vector<2x32xf32> -> vector<2x32xf32>
    %c0_32 = arith.constant 0 : index
    %c0_33 = arith.constant 0 : index
    %49 = vector.load %arg8[%c0_32, %c0_33] : memref<1x32xf32, #tpu.memory_space<vmem>>, vector<1x32xf32>
    %50 = vector.broadcast %49 : vector<1x32xf32> to vector<2x32xf32>
    %51 = arith.addf %48, %50 : vector<2x32xf32>
    %52 = arith.addf %51, %1 : vector<2x32xf32>
    %53 = vector.shape_cast %52 : vector<2x32xf32> to vector<2x1x32xf32>
    %c0_34 = arith.constant 0 : index
    %c0_35 = arith.constant 0 : index
    %c0_36 = arith.constant 0 : index
    %54 = vector.load %arg11[%c0_34, %c0_35, %c0_36] : memref<2x1x32xf32, #tpu.memory_space<vmem>>, vector<2x1x32xf32>
    tpu.vector_store %arg11[%c0_34, %c0_35, %c0_36], %53 {strides = array<i32>} : memref<2x1x32xf32, #tpu.memory_space<vmem>>, vector<2x1x32xf32>,
    return
  }
  func.func @transform_0(%arg0: i32) -> (i32, i32, i32) {
    %c0_i32 = arith.constant 0 : i32
    %c0_i32_0 = arith.constant 0 : i32
    %c0_i32_1 = arith.constant 0 : i32
    return %arg0, %c0_i32, %c0_i32_0 : i32, i32, i32
  }
  func.func @transform_1(%arg0: i32) -> (i32, i32, i32) {
    %c0_i32 = arith.constant 0 : i32
    %c0_i32_0 = arith.constant 0 : i32
    %c0_i32_1 = arith.constant 0 : i32
    return %arg0, %c0_i32, %c0_i32_0 : i32, i32, i32
  }
  func.func @transform_2(%arg0: i32) -> (i32, i32) {
    %c0_i32 = arith.constant 0 : i32
    %c0_i32_0 = arith.constant 0 : i32
    %c0_i32_1 = arith.constant 0 : i32
    return %c0_i32, %c0_i32_0 : i32, i32
  }
  func.func @transform_3(%arg0: i32) -> (i32, i32) {
    %c0_i32 = arith.constant 0 : i32
    %c0_i32_0 = arith.constant 0 : i32
    %c0_i32_1 = arith.constant 0 : i32
    return %c0_i32, %c0_i32_0 : i32, i32
  }
  func.func @transform_4(%arg0: i32) -> (i32, i32) {
    %c0_i32 = arith.constant 0 : i32
    %c0_i32_0 = arith.constant 0 : i32
    %c0_i32_1 = arith.constant 0 : i32
    return %c0_i32, %c0_i32_0 : i32, i32
  }
  func.func @transform_5(%arg0: i32) -> (i32, i32) {
    %c0_i32 = arith.constant 0 : i32
    %c0_i32_0 = arith.constant 0 : i32
    %c0_i32_1 = arith.constant 0 : i32
    return %c0_i32, %c0_i32_0 : i32, i32
  }
  func.func @transform_6(%arg0: i32) -> (i32, i32) {
    %c0_i32 = arith.constant 0 : i32
    %c0_i32_0 = arith.constant 0 : i32
    %c0_i32_1 = arith.constant 0 : i32
    return %c0_i32, %c0_i32_0 : i32, i32
  }
  func.func @transform_7(%arg0: i32) -> (i32, i32) {
    %c0_i32 = arith.constant 0 : i32
    %c0_i32_0 = arith.constant 0 : i32
    %c0_i32_1 = arith.constant 0 : i32
    return %c0_i32, %c0_i32_0 : i32, i32
  }
  func.func @transform_8(%arg0: i32) -> (i32, i32) {
    %c0_i32 = arith.constant 0 : i32
    %c0_i32_0 = arith.constant 0 : i32
    %c0_i32_1 = arith.constant 0 : i32
    return %c0_i32, %c0_i32_0 : i32, i32
  }
  func.func @transform_9(%arg0: i32) -> (i32, i32) {
    %c0_i32 = arith.constant 0 : i32
    %c0_i32_0 = arith.constant 0 : i32
    %c0_i32_1 = arith.constant 0 : i32
    return %c0_i32, %c0_i32_0 : i32, i32
  }
  func.func @transform_10(%arg0: i32) -> (i32, i32, i32) {
    %c0_i32 = arith.constant 0 : i32
    %c0_i32_0 = arith.constant 0 : i32
    %c0_i32_1 = arith.constant 0 : i32
    return %arg0, %c0_i32, %c0_i32_0 : i32, i32, i32
  }
  func.func @transform_11(%arg0: i32) -> (i32, i32, i32) {
    %c0_i32 = arith.constant 0 : i32
    %c0_i32_0 = arith.constant 0 : i32
    %c0_i32_1 = arith.constant 0 : i32
    return %arg0, %c0_i32, %c0_i32_0 : i32, i32, i32
  }
}

module attributes {stable_mosaic.version = 11 : i64} {
  func.func @_gat_kernel(%arg0: i32, %arg1: memref<2x8x32xf32, #tpu.memory_space<vmem>>, %arg2: memref<2x8x8xf32, #tpu.memory_space<vmem>>, %arg3: memref<2x8x8x32xf32, #tpu.memory_space<vmem>>, %arg4: memref<32x32xf32, #tpu.memory_space<vmem>>, %arg5: memref<1x32xf32, #tpu.memory_space<vmem>>, %arg6: memref<32x8xf32, #tpu.memory_space<vmem>>, %arg7: memref<32x4xf32, #tpu.memory_space<vmem>>, %arg8: memref<1x4xf32, #tpu.memory_space<vmem>>, %arg9: memref<1x32xf32, #tpu.memory_space<vmem>>, %arg10: memref<1x32xf32, #tpu.memory_space<vmem>>, %arg11: memref<2x8x32xf32, #tpu.memory_space<vmem>>, %arg12: memref<1x1x32xf32, #tpu.memory_space<vmem>>, %arg13: memref<1x1x32xf32, #tpu.memory_space<vmem>>) attributes {dimension_semantics = [#tpu.dimension_semantics<parallel>], iteration_bounds = array<i64: 1>, scalar_prefetch = 0 : i64, scratch_operands = 0 : i64, tpu.core_type = #tpu.core_type<tc>, window_params = [{transform_indices = @transform_0, window_bounds = array<i64: 2, 8, 32>}, {transform_indices = @transform_1, window_bounds = array<i64: 2, 8, 8>}, {transform_indices = @transform_2, window_bounds = array<i64: 2, 8, 8, 32>}, {pipeline_mode = #tpu.pipeline_mode<synchronous>, transform_indices = @transform_3, window_bounds = array<i64: 32, 32>}, {pipeline_mode = #tpu.pipeline_mode<synchronous>, transform_indices = @transform_4, window_bounds = array<i64: 1, 32>}, {pipeline_mode = #tpu.pipeline_mode<synchronous>, transform_indices = @transform_5, window_bounds = array<i64: 32, 8>}, {pipeline_mode = #tpu.pipeline_mode<synchronous>, transform_indices = @transform_6, window_bounds = array<i64: 32, 4>}, {pipeline_mode = #tpu.pipeline_mode<synchronous>, transform_indices = @transform_7, window_bounds = array<i64: 1, 4>}, {pipeline_mode = #tpu.pipeline_mode<synchronous>, transform_indices = @transform_8, window_bounds = array<i64: 1, 32>}, {pipeline_mode = #tpu.pipeline_mode<synchronous>, transform_indices = @transform_9, window_bounds = array<i64: 1, 32>}, {transform_indices = @transform_10, window_bounds = array<i64: 2, 8, 32>}, {transform_indices = @transform_11, window_bounds = array<i64: 1, 1, 32>}, {transform_indices = @transform_12, window_bounds = array<i64: 1, 1, 32>}]} {
    %c0 = arith.constant 0 : index
    %c0_0 = arith.constant 0 : index
    %c0_1 = arith.constant 0 : index
    %0 = vector.load %arg1[%c0, %c0_0, %c0_1] : memref<2x8x32xf32, #tpu.memory_space<vmem>>, vector<2x8x32xf32>
    %1 = vector.shape_cast %0 : vector<2x8x32xf32> to vector<16x32xf32>
    %c0_2 = arith.constant 0 : index
    %c0_3 = arith.constant 0 : index
    %2 = vector.load %arg4[%c0_2, %c0_3] : memref<32x32xf32, #tpu.memory_space<vmem>>, vector<32x32xf32>
    %cst = arith.constant dense<0.000000e+00> : vector<16x32xf32>
    %3 = tpu.matmul %1, %2, %cst {dimension_numbers = #tpu.dot_dimension_numbers<[1], [0], [0], [1], [0, 0, 1, 1], [], []>} : vector<16x32xf32>, vector<32x32xf32>, vector<16x32xf32> -> vector<16x32xf32>
    %c0_4 = arith.constant 0 : index
    %c0_5 = arith.constant 0 : index
    %4 = vector.load %arg5[%c0_4, %c0_5] : memref<1x32xf32, #tpu.memory_space<vmem>>, vector<1x32xf32>
    %5 = vector.broadcast %4 : vector<1x32xf32> to vector<16x32xf32>
    %6 = arith.addf %3, %5 : vector<16x32xf32>
    %c0_6 = arith.constant 0 : index
    %c0_7 = arith.constant 0 : index
    %7 = vector.load %arg6[%c0_6, %c0_7] : memref<32x8xf32, #tpu.memory_space<vmem>>, vector<32x8xf32>
    %cst_8 = arith.constant dense<0.000000e+00> : vector<16x8xf32>
    %8 = tpu.matmul %6, %7, %cst_8 {dimension_numbers = #tpu.dot_dimension_numbers<[1], [0], [0], [1], [0, 0, 1, 1], [], []>} : vector<16x32xf32>, vector<32x8xf32>, vector<16x8xf32> -> vector<16x8xf32>
    %c0_9 = arith.constant 0 : index
    %c0_10 = arith.constant 0 : index
    %c0_11 = arith.constant 0 : index
    %c0_12 = arith.constant 0 : index
    %9 = vector.load %arg3[%c0_9, %c0_10, %c0_11, %c0_12] : memref<2x8x8x32xf32, #tpu.memory_space<vmem>>, vector<2x8x8x32xf32>
    %10 = vector.shape_cast %9 : vector<2x8x8x32xf32> to vector<128x32xf32>
    %c0_13 = arith.constant 0 : index
    %c0_14 = arith.constant 0 : index
    %11 = vector.load %arg7[%c0_13, %c0_14] : memref<32x4xf32, #tpu.memory_space<vmem>>, vector<32x4xf32>
    %cst_15 = arith.constant dense<0.000000e+00> : vector<128x4xf32>
    %12 = tpu.matmul %10, %11, %cst_15 {dimension_numbers = #tpu.dot_dimension_numbers<[1], [0], [0], [1], [0, 0, 1, 1], [], []>} : vector<128x32xf32>, vector<32x4xf32>, vector<128x4xf32> -> vector<128x4xf32>
    %c0_16 = arith.constant 0 : index
    %c0_17 = arith.constant 0 : index
    %13 = vector.load %arg8[%c0_16, %c0_17] : memref<1x4xf32, #tpu.memory_space<vmem>>, vector<1x4xf32>
    %14 = vector.broadcast %13 : vector<1x4xf32> to vector<128x4xf32>
    %15 = arith.addf %12, %14 : vector<128x4xf32>
    %16 = vector.shape_cast %6 : vector<16x32xf32> to vector<2x8x32xf32>
    %17 = vector.shape_cast %8 : vector<16x8xf32> to vector<2x8x8xf32>
    %18 = vector.shape_cast %15 : vector<128x4xf32> to vector<2x8x8x4xf32>
    %c0_18 = arith.constant 0 : index
    %c0_19 = arith.constant 0 : index
    %c0_20 = arith.constant 0 : index
    %19 = vector.load %arg2[%c0_18, %c0_19, %c0_20] : memref<2x8x8xf32, #tpu.memory_space<vmem>>, vector<2x8x8xf32>
    %cst_21 = arith.constant 0.000000e+00 : f32
    %20 = vector.broadcast %cst_21 : f32 to vector<2x8x8xf32>
    %21 = arith.cmpf oeq, %19, %20 : vector<2x8x8xf32>
    %22 = vector.extract_strided_slice %17 {offsets = [0, 0, 0], sizes = [2, 8, 1], strides = [1, 1, 1]} : vector<2x8x8xf32> to vector<2x8x1xf32>
    %23 = vector.extract_strided_slice %17 {offsets = [0, 0, 4], sizes = [2, 8, 1], strides = [1, 1, 1]} : vector<2x8x8xf32> to vector<2x8x1xf32>
    %24 = vector.shape_cast %23 : vector<2x8x1xf32> to vector<2x8xf32>
    %25 = vector.shape_cast %24 : vector<2x8xf32> to vector<2x1x8xf32>
    %26 = vector.broadcast %22 : vector<2x8x1xf32> to vector<2x8x8xf32>
    %27 = vector.broadcast %25 : vector<2x1x8xf32> to vector<2x8x8xf32>
    %28 = arith.addf %26, %27 : vector<2x8x8xf32>
    %29 = vector.extract_strided_slice %18 {offsets = [0, 0, 0, 0], sizes = [2, 8, 8, 1], strides = [1, 1, 1, 1]} : vector<2x8x8x4xf32> to vector<2x8x8x1xf32>
    %30 = vector.shape_cast %29 : vector<2x8x8x1xf32> to vector<2x8x8xf32>
    %31 = arith.addf %28, %30 : vector<2x8x8xf32>
    %cst_22 = arith.constant 0.000000e+00 : f32
    %32 = vector.broadcast %cst_22 : f32 to vector<2x8x8xf32>
    %33 = arith.cmpf oge, %31, %32 : vector<2x8x8xf32>
    %cst_23 = arith.constant 2.000000e-01 : f32
    %34 = vector.broadcast %cst_23 : f32 to vector<2x8x8xf32>
    %35 = arith.mulf %34, %31 : vector<2x8x8xf32>
    %36 = arith.select %33, %31, %35 : vector<2x8x8xi1>, vector<2x8x8xf32>
    %cst_24 = arith.constant -1.000000e+30 : f32
    %37 = vector.broadcast %cst_24 : f32 to vector<2x8x8xf32>
    %38 = arith.select %21, %37, %36 : vector<2x8x8xi1>, vector<2x8x8xf32>
    %cst_25 = arith.constant dense<0xFF800000> : vector<2x8xf32>
    %39 = vector.multi_reduction <maximumf>, %38, %cst_25 [2] : vector<2x8x8xf32> to vector<2x8xf32>
    %40 = vector.shape_cast %39 : vector<2x8xf32> to vector<2x8x1xf32>
    %41 = vector.broadcast %40 : vector<2x8x1xf32> to vector<2x8x8xf32>
    %42 = arith.subf %38, %41 : vector<2x8x8xf32>
    %43 = math.exp %42 : vector<2x8x8xf32>
    %cst_26 = arith.constant dense<0.000000e+00> : vector<2x8xf32>
    %44 = vector.multi_reduction <add>, %43, %cst_26 [2] : vector<2x8x8xf32> to vector<2x8xf32>
    %45 = vector.shape_cast %44 : vector<2x8xf32> to vector<2x8x1xf32>
    %46 = tpu.reciprocal %45 {approx = true} : vector<2x8x1xf32> -> vector<2x8x1xf32>
    %47 = vector.broadcast %46 : vector<2x8x1xf32> to vector<2x8x8xf32>
    %48 = arith.mulf %43, %47 : vector<2x8x8xf32>
    %49 = vector.extract_strided_slice %16 {offsets = [0, 0, 0], sizes = [2, 8, 8], strides = [1, 1, 1]} : vector<2x8x32xf32> to vector<2x8x8xf32>
    "tpu.trace_start"() <{level = 10 : i32, message = "bij,bjf->bif"}> : () -> ()
    %cst_27 = arith.constant dense<0.000000e+00> : vector<2x8x8xf32>
    %50 = tpu.matmul %48, %49, %cst_27 {dimension_numbers = #tpu.dot_dimension_numbers<[2], [1], [1], [2], [0, 0, 0, 1, 1, 2], [0], [0]>} : vector<2x8x8xf32>, vector<2x8x8xf32>, vector<2x8x8xf32> -> vector<2x8x8xf32>
    "tpu.trace_stop"() : () -> ()
    %51 = vector.extract_strided_slice %17 {offsets = [0, 0, 1], sizes = [2, 8, 1], strides = [1, 1, 1]} : vector<2x8x8xf32> to vector<2x8x1xf32>
    %52 = vector.extract_strided_slice %17 {offsets = [0, 0, 5], sizes = [2, 8, 1], strides = [1, 1, 1]} : vector<2x8x8xf32> to vector<2x8x1xf32>
    %53 = vector.shape_cast %52 : vector<2x8x1xf32> to vector<2x8xf32>
    %54 = vector.shape_cast %53 : vector<2x8xf32> to vector<2x1x8xf32>
    %55 = vector.broadcast %51 : vector<2x8x1xf32> to vector<2x8x8xf32>
    %56 = vector.broadcast %54 : vector<2x1x8xf32> to vector<2x8x8xf32>
    %57 = arith.addf %55, %56 : vector<2x8x8xf32>
    %58 = vector.extract_strided_slice %18 {offsets = [0, 0, 0, 1], sizes = [2, 8, 8, 1], strides = [1, 1, 1, 1]} : vector<2x8x8x4xf32> to vector<2x8x8x1xf32>
    %59 = vector.shape_cast %58 : vector<2x8x8x1xf32> to vector<2x8x8xf32>
    %60 = arith.addf %57, %59 : vector<2x8x8xf32>
    %cst_28 = arith.constant 0.000000e+00 : f32
    %61 = vector.broadcast %cst_28 : f32 to vector<2x8x8xf32>
    %62 = arith.cmpf oge, %60, %61 : vector<2x8x8xf32>
    %cst_29 = arith.constant 2.000000e-01 : f32
    %63 = vector.broadcast %cst_29 : f32 to vector<2x8x8xf32>
    %64 = arith.mulf %63, %60 : vector<2x8x8xf32>
    %65 = arith.select %62, %60, %64 : vector<2x8x8xi1>, vector<2x8x8xf32>
    %cst_30 = arith.constant -1.000000e+30 : f32
    %66 = vector.broadcast %cst_30 : f32 to vector<2x8x8xf32>
    %67 = arith.select %21, %66, %65 : vector<2x8x8xi1>, vector<2x8x8xf32>
    %cst_31 = arith.constant dense<0xFF800000> : vector<2x8xf32>
    %68 = vector.multi_reduction <maximumf>, %67, %cst_31 [2] : vector<2x8x8xf32> to vector<2x8xf32>
    %69 = vector.shape_cast %68 : vector<2x8xf32> to vector<2x8x1xf32>
    %70 = vector.broadcast %69 : vector<2x8x1xf32> to vector<2x8x8xf32>
    %71 = arith.subf %67, %70 : vector<2x8x8xf32>
    %72 = math.exp %71 : vector<2x8x8xf32>
    %cst_32 = arith.constant dense<0.000000e+00> : vector<2x8xf32>
    %73 = vector.multi_reduction <add>, %72, %cst_32 [2] : vector<2x8x8xf32> to vector<2x8xf32>
    %74 = vector.shape_cast %73 : vector<2x8xf32> to vector<2x8x1xf32>
    %75 = tpu.reciprocal %74 {approx = true} : vector<2x8x1xf32> -> vector<2x8x1xf32>
    %76 = vector.broadcast %75 : vector<2x8x1xf32> to vector<2x8x8xf32>
    %77 = arith.mulf %72, %76 : vector<2x8x8xf32>
    %78 = vector.extract_strided_slice %16 {offsets = [0, 0, 8], sizes = [2, 8, 8], strides = [1, 1, 1]} : vector<2x8x32xf32> to vector<2x8x8xf32>
    "tpu.trace_start"() <{level = 10 : i32, message = "bij,bjf->bif"}> : () -> ()
    %cst_33 = arith.constant dense<0.000000e+00> : vector<2x8x8xf32>
    %79 = tpu.matmul %77, %78, %cst_33 {dimension_numbers = #tpu.dot_dimension_numbers<[2], [1], [1], [2], [0, 0, 0, 1, 1, 2], [0], [0]>} : vector<2x8x8xf32>, vector<2x8x8xf32>, vector<2x8x8xf32> -> vector<2x8x8xf32>
    "tpu.trace_stop"() : () -> ()
    %80 = vector.extract_strided_slice %17 {offsets = [0, 0, 2], sizes = [2, 8, 1], strides = [1, 1, 1]} : vector<2x8x8xf32> to vector<2x8x1xf32>
    %81 = vector.extract_strided_slice %17 {offsets = [0, 0, 6], sizes = [2, 8, 1], strides = [1, 1, 1]} : vector<2x8x8xf32> to vector<2x8x1xf32>
    %82 = vector.shape_cast %81 : vector<2x8x1xf32> to vector<2x8xf32>
    %83 = vector.shape_cast %82 : vector<2x8xf32> to vector<2x1x8xf32>
    %84 = vector.broadcast %80 : vector<2x8x1xf32> to vector<2x8x8xf32>
    %85 = vector.broadcast %83 : vector<2x1x8xf32> to vector<2x8x8xf32>
    %86 = arith.addf %84, %85 : vector<2x8x8xf32>
    %87 = vector.extract_strided_slice %18 {offsets = [0, 0, 0, 2], sizes = [2, 8, 8, 1], strides = [1, 1, 1, 1]} : vector<2x8x8x4xf32> to vector<2x8x8x1xf32>
    %88 = vector.shape_cast %87 : vector<2x8x8x1xf32> to vector<2x8x8xf32>
    %89 = arith.addf %86, %88 : vector<2x8x8xf32>
    %cst_34 = arith.constant 0.000000e+00 : f32
    %90 = vector.broadcast %cst_34 : f32 to vector<2x8x8xf32>
    %91 = arith.cmpf oge, %89, %90 : vector<2x8x8xf32>
    %cst_35 = arith.constant 2.000000e-01 : f32
    %92 = vector.broadcast %cst_35 : f32 to vector<2x8x8xf32>
    %93 = arith.mulf %92, %89 : vector<2x8x8xf32>
    %94 = arith.select %91, %89, %93 : vector<2x8x8xi1>, vector<2x8x8xf32>
    %cst_36 = arith.constant -1.000000e+30 : f32
    %95 = vector.broadcast %cst_36 : f32 to vector<2x8x8xf32>
    %96 = arith.select %21, %95, %94 : vector<2x8x8xi1>, vector<2x8x8xf32>
    %cst_37 = arith.constant dense<0xFF800000> : vector<2x8xf32>
    %97 = vector.multi_reduction <maximumf>, %96, %cst_37 [2] : vector<2x8x8xf32> to vector<2x8xf32>
    %98 = vector.shape_cast %97 : vector<2x8xf32> to vector<2x8x1xf32>
    %99 = vector.broadcast %98 : vector<2x8x1xf32> to vector<2x8x8xf32>
    %100 = arith.subf %96, %99 : vector<2x8x8xf32>
    %101 = math.exp %100 : vector<2x8x8xf32>
    %cst_38 = arith.constant dense<0.000000e+00> : vector<2x8xf32>
    %102 = vector.multi_reduction <add>, %101, %cst_38 [2] : vector<2x8x8xf32> to vector<2x8xf32>
    %103 = vector.shape_cast %102 : vector<2x8xf32> to vector<2x8x1xf32>
    %104 = tpu.reciprocal %103 {approx = true} : vector<2x8x1xf32> -> vector<2x8x1xf32>
    %105 = vector.broadcast %104 : vector<2x8x1xf32> to vector<2x8x8xf32>
    %106 = arith.mulf %101, %105 : vector<2x8x8xf32>
    %107 = vector.extract_strided_slice %16 {offsets = [0, 0, 16], sizes = [2, 8, 8], strides = [1, 1, 1]} : vector<2x8x32xf32> to vector<2x8x8xf32>
    "tpu.trace_start"() <{level = 10 : i32, message = "bij,bjf->bif"}> : () -> ()
    %cst_39 = arith.constant dense<0.000000e+00> : vector<2x8x8xf32>
    %108 = tpu.matmul %106, %107, %cst_39 {dimension_numbers = #tpu.dot_dimension_numbers<[2], [1], [1], [2], [0, 0, 0, 1, 1, 2], [0], [0]>} : vector<2x8x8xf32>, vector<2x8x8xf32>, vector<2x8x8xf32> -> vector<2x8x8xf32>
    "tpu.trace_stop"() : () -> ()
    %109 = vector.extract_strided_slice %17 {offsets = [0, 0, 3], sizes = [2, 8, 1], strides = [1, 1, 1]} : vector<2x8x8xf32> to vector<2x8x1xf32>
    %110 = vector.extract_strided_slice %17 {offsets = [0, 0, 7], sizes = [2, 8, 1], strides = [1, 1, 1]} : vector<2x8x8xf32> to vector<2x8x1xf32>
    %111 = vector.shape_cast %110 : vector<2x8x1xf32> to vector<2x8xf32>
    %112 = vector.shape_cast %111 : vector<2x8xf32> to vector<2x1x8xf32>
    %113 = vector.broadcast %109 : vector<2x8x1xf32> to vector<2x8x8xf32>
    %114 = vector.broadcast %112 : vector<2x1x8xf32> to vector<2x8x8xf32>
    %115 = arith.addf %113, %114 : vector<2x8x8xf32>
    %116 = vector.extract_strided_slice %18 {offsets = [0, 0, 0, 3], sizes = [2, 8, 8, 1], strides = [1, 1, 1, 1]} : vector<2x8x8x4xf32> to vector<2x8x8x1xf32>
    %117 = vector.shape_cast %116 : vector<2x8x8x1xf32> to vector<2x8x8xf32>
    %118 = arith.addf %115, %117 : vector<2x8x8xf32>
    %cst_40 = arith.constant 0.000000e+00 : f32
    %119 = vector.broadcast %cst_40 : f32 to vector<2x8x8xf32>
    %120 = arith.cmpf oge, %118, %119 : vector<2x8x8xf32>
    %cst_41 = arith.constant 2.000000e-01 : f32
    %121 = vector.broadcast %cst_41 : f32 to vector<2x8x8xf32>
    %122 = arith.mulf %121, %118 : vector<2x8x8xf32>
    %123 = arith.select %120, %118, %122 : vector<2x8x8xi1>, vector<2x8x8xf32>
    %cst_42 = arith.constant -1.000000e+30 : f32
    %124 = vector.broadcast %cst_42 : f32 to vector<2x8x8xf32>
    %125 = arith.select %21, %124, %123 : vector<2x8x8xi1>, vector<2x8x8xf32>
    %cst_43 = arith.constant dense<0xFF800000> : vector<2x8xf32>
    %126 = vector.multi_reduction <maximumf>, %125, %cst_43 [2] : vector<2x8x8xf32> to vector<2x8xf32>
    %127 = vector.shape_cast %126 : vector<2x8xf32> to vector<2x8x1xf32>
    %128 = vector.broadcast %127 : vector<2x8x1xf32> to vector<2x8x8xf32>
    %129 = arith.subf %125, %128 : vector<2x8x8xf32>
    %130 = math.exp %129 : vector<2x8x8xf32>
    %cst_44 = arith.constant dense<0.000000e+00> : vector<2x8xf32>
    %131 = vector.multi_reduction <add>, %130, %cst_44 [2] : vector<2x8x8xf32> to vector<2x8xf32>
    %132 = vector.shape_cast %131 : vector<2x8xf32> to vector<2x8x1xf32>
    %133 = tpu.reciprocal %132 {approx = true} : vector<2x8x1xf32> -> vector<2x8x1xf32>
    %134 = vector.broadcast %133 : vector<2x8x1xf32> to vector<2x8x8xf32>
    %135 = arith.mulf %130, %134 : vector<2x8x8xf32>
    %136 = vector.extract_strided_slice %16 {offsets = [0, 0, 24], sizes = [2, 8, 8], strides = [1, 1, 1]} : vector<2x8x32xf32> to vector<2x8x8xf32>
    "tpu.trace_start"() <{level = 10 : i32, message = "bij,bjf->bif"}> : () -> ()
    %cst_45 = arith.constant dense<0.000000e+00> : vector<2x8x8xf32>
    %137 = tpu.matmul %135, %136, %cst_45 {dimension_numbers = #tpu.dot_dimension_numbers<[2], [1], [1], [2], [0, 0, 0, 1, 1, 2], [0], [0]>} : vector<2x8x8xf32>, vector<2x8x8xf32>, vector<2x8x8xf32> -> vector<2x8x8xf32>
    "tpu.trace_stop"() : () -> ()
    %138 = tpu.concatenate %50, %79, %108, %137 in 2 : vector<2x8x8xf32>, vector<2x8x8xf32>, vector<2x8x8xf32>, vector<2x8x8xf32> -> vector<2x8x32xf32>
    %c0_46 = arith.constant 0 : index
    %c0_47 = arith.constant 0 : index
    %139 = vector.load %arg9[%c0_46, %c0_47] : memref<1x32xf32, #tpu.memory_space<vmem>>, vector<1x32xf32>
    %140 = vector.shape_cast %139 : vector<1x32xf32> to vector<1x1x32xf32>
    %141 = vector.broadcast %140 : vector<1x1x32xf32> to vector<2x8x32xf32>
    %142 = arith.mulf %0, %141 : vector<2x8x32xf32>
    %c0_48 = arith.constant 0 : index
    %c0_49 = arith.constant 0 : index
    %143 = vector.load %arg10[%c0_48, %c0_49] : memref<1x32xf32, #tpu.memory_space<vmem>>, vector<1x32xf32>
    %144 = vector.shape_cast %143 : vector<1x32xf32> to vector<1x1x32xf32>
    %145 = vector.broadcast %144 : vector<1x1x32xf32> to vector<2x8x32xf32>
    %146 = arith.addf %142, %145 : vector<2x8x32xf32>
    %147 = arith.addf %138, %146 : vector<2x8x32xf32>
    %c0_50 = arith.constant 0 : index
    %c0_51 = arith.constant 0 : index
    %c0_52 = arith.constant 0 : index
    %148 = vector.load %arg11[%c0_50, %c0_51, %c0_52] : memref<2x8x32xf32, #tpu.memory_space<vmem>>, vector<2x8x32xf32>
    tpu.vector_store %arg11[%c0_50, %c0_51, %c0_52], %147 {strides = array<i32>} : memref<2x8x32xf32, #tpu.memory_space<vmem>>, vector<2x8x32xf32>,
    %149 = vector.shape_cast %147 : vector<2x8x32xf32> to vector<16x32xf32>
    %cst_53 = arith.constant dense<0.000000e+00> : vector<32xf32>
    %150 = vector.multi_reduction <add>, %149, %cst_53 [0] : vector<16x32xf32> to vector<32xf32>
    %151 = vector.shape_cast %150 : vector<32xf32> to vector<1x32xf32>
    %152 = vector.shape_cast %151 : vector<1x32xf32> to vector<1x1x32xf32>
    %c0_54 = arith.constant 0 : index
    %c0_55 = arith.constant 0 : index
    %c0_56 = arith.constant 0 : index
    %153 = vector.load %arg12[%c0_54, %c0_55, %c0_56] : memref<1x1x32xf32, #tpu.memory_space<vmem>>, vector<1x1x32xf32>
    tpu.vector_store %arg12[%c0_54, %c0_55, %c0_56], %152 {strides = array<i32>} : memref<1x1x32xf32, #tpu.memory_space<vmem>>, vector<1x1x32xf32>,
    %154 = arith.mulf %149, %149 : vector<16x32xf32>
    %cst_57 = arith.constant dense<0.000000e+00> : vector<32xf32>
    %155 = vector.multi_reduction <add>, %154, %cst_57 [0] : vector<16x32xf32> to vector<32xf32>
    %156 = vector.shape_cast %155 : vector<32xf32> to vector<1x32xf32>
    %157 = vector.shape_cast %156 : vector<1x32xf32> to vector<1x1x32xf32>
    %c0_58 = arith.constant 0 : index
    %c0_59 = arith.constant 0 : index
    %c0_60 = arith.constant 0 : index
    %158 = vector.load %arg13[%c0_58, %c0_59, %c0_60] : memref<1x1x32xf32, #tpu.memory_space<vmem>>, vector<1x1x32xf32>
    tpu.vector_store %arg13[%c0_58, %c0_59, %c0_60], %157 {strides = array<i32>} : memref<1x1x32xf32, #tpu.memory_space<vmem>>, vector<1x1x32xf32>,
    return
  }
  func.func @transform_0(%arg0: i32) -> (i32, i32, i32) {
    %c0_i32 = arith.constant 0 : i32
    %c0_i32_0 = arith.constant 0 : i32
    %c0_i32_1 = arith.constant 0 : i32
    return %arg0, %c0_i32, %c0_i32_0 : i32, i32, i32
  }
  func.func @transform_1(%arg0: i32) -> (i32, i32, i32) {
    %c0_i32 = arith.constant 0 : i32
    %c0_i32_0 = arith.constant 0 : i32
    %c0_i32_1 = arith.constant 0 : i32
    return %arg0, %c0_i32, %c0_i32_0 : i32, i32, i32
  }
  func.func @transform_2(%arg0: i32) -> (i32, i32, i32, i32) {
    %c0_i32 = arith.constant 0 : i32
    %c0_i32_0 = arith.constant 0 : i32
    %c0_i32_1 = arith.constant 0 : i32
    %c0_i32_2 = arith.constant 0 : i32
    return %arg0, %c0_i32, %c0_i32_0, %c0_i32_1 : i32, i32, i32, i32
  }
  func.func @transform_3(%arg0: i32) -> (i32, i32) {
    %c0_i32 = arith.constant 0 : i32
    %c0_i32_0 = arith.constant 0 : i32
    %c0_i32_1 = arith.constant 0 : i32
    return %c0_i32, %c0_i32_0 : i32, i32
  }
  func.func @transform_4(%arg0: i32) -> (i32, i32) {
    %c0_i32 = arith.constant 0 : i32
    %c0_i32_0 = arith.constant 0 : i32
    %c0_i32_1 = arith.constant 0 : i32
    return %c0_i32, %c0_i32_0 : i32, i32
  }
  func.func @transform_5(%arg0: i32) -> (i32, i32) {
    %c0_i32 = arith.constant 0 : i32
    %c0_i32_0 = arith.constant 0 : i32
    %c0_i32_1 = arith.constant 0 : i32
    return %c0_i32, %c0_i32_0 : i32, i32
  }
  func.func @transform_6(%arg0: i32) -> (i32, i32) {
    %c0_i32 = arith.constant 0 : i32
    %c0_i32_0 = arith.constant 0 : i32
    %c0_i32_1 = arith.constant 0 : i32
    return %c0_i32, %c0_i32_0 : i32, i32
  }
  func.func @transform_7(%arg0: i32) -> (i32, i32) {
    %c0_i32 = arith.constant 0 : i32
    %c0_i32_0 = arith.constant 0 : i32
    %c0_i32_1 = arith.constant 0 : i32
    return %c0_i32, %c0_i32_0 : i32, i32
  }
  func.func @transform_8(%arg0: i32) -> (i32, i32) {
    %c0_i32 = arith.constant 0 : i32
    %c0_i32_0 = arith.constant 0 : i32
    %c0_i32_1 = arith.constant 0 : i32
    return %c0_i32, %c0_i32_0 : i32, i32
  }
  func.func @transform_9(%arg0: i32) -> (i32, i32) {
    %c0_i32 = arith.constant 0 : i32
    %c0_i32_0 = arith.constant 0 : i32
    %c0_i32_1 = arith.constant 0 : i32
    return %c0_i32, %c0_i32_0 : i32, i32
  }
  func.func @transform_10(%arg0: i32) -> (i32, i32, i32) {
    %c0_i32 = arith.constant 0 : i32
    %c0_i32_0 = arith.constant 0 : i32
    %c0_i32_1 = arith.constant 0 : i32
    return %arg0, %c0_i32, %c0_i32_0 : i32, i32, i32
  }
  func.func @transform_11(%arg0: i32) -> (i32, i32, i32) {
    %c0_i32 = arith.constant 0 : i32
    %c0_i32_0 = arith.constant 0 : i32
    %c0_i32_1 = arith.constant 0 : i32
    return %arg0, %c0_i32, %c0_i32_0 : i32, i32, i32
  }
  func.func @transform_12(%arg0: i32) -> (i32, i32, i32) {
    %c0_i32 = arith.constant 0 : i32
    %c0_i32_0 = arith.constant 0 : i32
    %c0_i32_1 = arith.constant 0 : i32
    return %arg0, %c0_i32, %c0_i32_0 : i32, i32, i32
  }
}

module attributes {stable_mosaic.version = 11 : i64} {
  func.func @_affine_kernel(%arg0: i32, %arg1: memref<2x64x32xf32, #tpu.memory_space<vmem>>, %arg2: memref<1x32xf32, #tpu.memory_space<vmem>>, %arg3: memref<1x32xf32, #tpu.memory_space<vmem>>, %arg4: memref<2x64x32xf32, #tpu.memory_space<vmem>>) attributes {dimension_semantics = [#tpu.dimension_semantics<parallel>], iteration_bounds = array<i64: 1>, scalar_prefetch = 0 : i64, scratch_operands = 0 : i64, tpu.core_type = #tpu.core_type<tc>, window_params = [{transform_indices = @transform_0, window_bounds = array<i64: 2, 64, 32>}, {pipeline_mode = #tpu.pipeline_mode<synchronous>, transform_indices = @transform_1, window_bounds = array<i64: 1, 32>}, {pipeline_mode = #tpu.pipeline_mode<synchronous>, transform_indices = @transform_2, window_bounds = array<i64: 1, 32>}, {transform_indices = @transform_3, window_bounds = array<i64: 2, 64, 32>}]} {
    %c0 = arith.constant 0 : index
    %c0_0 = arith.constant 0 : index
    %0 = vector.load %arg2[%c0, %c0_0] : memref<1x32xf32, #tpu.memory_space<vmem>>, vector<1x32xf32>
    %1 = vector.shape_cast %0 : vector<1x32xf32> to vector<1x1x32xf32>
    %c0_1 = arith.constant 0 : index
    %c0_2 = arith.constant 0 : index
    %2 = vector.load %arg3[%c0_1, %c0_2] : memref<1x32xf32, #tpu.memory_space<vmem>>, vector<1x32xf32>
    %3 = vector.shape_cast %2 : vector<1x32xf32> to vector<1x1x32xf32>
    %c0_3 = arith.constant 0 : index
    %c0_4 = arith.constant 0 : index
    %c0_5 = arith.constant 0 : index
    %4 = vector.load %arg1[%c0_3, %c0_4, %c0_5] : memref<2x64x32xf32, #tpu.memory_space<vmem>>, vector<2x64x32xf32>
    %5 = vector.broadcast %1 : vector<1x1x32xf32> to vector<2x64x32xf32>
    %6 = arith.mulf %4, %5 : vector<2x64x32xf32>
    %7 = vector.broadcast %3 : vector<1x1x32xf32> to vector<2x64x32xf32>
    %8 = arith.addf %6, %7 : vector<2x64x32xf32>
    %c0_6 = arith.constant 0 : index
    %c0_7 = arith.constant 0 : index
    %c0_8 = arith.constant 0 : index
    %9 = vector.load %arg4[%c0_6, %c0_7, %c0_8] : memref<2x64x32xf32, #tpu.memory_space<vmem>>, vector<2x64x32xf32>
    tpu.vector_store %arg4[%c0_6, %c0_7, %c0_8], %8 {strides = array<i32>} : memref<2x64x32xf32, #tpu.memory_space<vmem>>, vector<2x64x32xf32>,
    return
  }
  func.func @transform_0(%arg0: i32) -> (i32, i32, i32) {
    %c0_i32 = arith.constant 0 : i32
    %c0_i32_0 = arith.constant 0 : i32
    %c0_i32_1 = arith.constant 0 : i32
    return %arg0, %c0_i32, %c0_i32_0 : i32, i32, i32
  }
  func.func @transform_1(%arg0: i32) -> (i32, i32) {
    %c0_i32 = arith.constant 0 : i32
    %c0_i32_0 = arith.constant 0 : i32
    %c0_i32_1 = arith.constant 0 : i32
    return %c0_i32, %c0_i32_0 : i32, i32
  }
  func.func @transform_2(%arg0: i32) -> (i32, i32) {
    %c0_i32 = arith.constant 0 : i32
    %c0_i32_0 = arith.constant 0 : i32
    %c0_i32_1 = arith.constant 0 : i32
    return %c0_i32, %c0_i32_0 : i32, i32
  }
  func.func @transform_3(%arg0: i32) -> (i32, i32, i32) {
    %c0_i32 = arith.constant 0 : i32
    %c0_i32_0 = arith.constant 0 : i32
    %c0_i32_1 = arith.constant 0 : i32
    return %arg0, %c0_i32, %c0_i32_0 : i32, i32, i32
  }
}

</mosaic_0001>

<llo_original>
// kernel: graph_attention_encoder.11
$region0: #{graph_attention_encoder.11}
  #allocation0 [shape = 'u32[]', space=smem, size = 0x4, offset = 0x4, fixed_abs, tag = 'smem constant byte address 0x4 - core index']
  #allocation1 [shape = 'u32[72,128]{1,0:T(1,128)}', space=vmem, size = 0x9000, scoped, tag = 'internal scratch']
  %s0 = inlined_call_operand.vmem [shape: f32[2,1,32], index: 0, kind: input, shape index: {}]
  %s1 = inlined_call_operand.vmem [shape: f32[1,32], index: 1, kind: input, shape index: {}]
  %s2 = inlined_call_operand.vmem [shape: f32[1,32], index: 2, kind: input, shape index: {}]
  %s3 = inlined_call_operand.vmem [shape: f32[2,1,32], index: 3, kind: output, shape index: {}]
  %s4 = sld [smem:[#allocation0]]
  $region22: #{graph_attention_encoder.11} parent=0
    _
  %s6 = ssub.s32 1, %s4
  %s7 = scalar_select 0, %s6, %s4
  // Predicated region
  $region2: #{graph_attention_encoder.11} parent=0 // pred_check
    _
  $region3: #{graph_attention_encoder.11} parent=0 // pred_check_branch
    %9 = sbr.rel (0) target = $region5
  $region4: #{graph_attention_encoder.11} parent=0 // pred_region
    _
  $region5: #{graph_attention_encoder.11} parent=0 // pred_fallthru
    _
  // Predicated region
  $region6: #{graph_attention_encoder.11} parent=0 // pred_check
    _
  $region7: #{graph_attention_encoder.11} parent=0 // pred_check_branch
    %11 = sbr.rel (0) target = $region9
  $region8: #{graph_attention_encoder.11} parent=0 // pred_region
    _
  $region9: #{graph_attention_encoder.11} parent=0 // pred_fallthru
    _
  // Predicated region
  $region10: #{graph_attention_encoder.11} parent=0 // pred_check
    _
  $region11: #{graph_attention_encoder.11} parent=0 // pred_check_branch
    %13 = sbr.rel (0) target = $region13
  $region12: #{graph_attention_encoder.11} parent=0 // pred_region
    _
  $region13: #{graph_attention_encoder.11} parent=0 // pred_fallthru
    _
  %v14 = vld [vmem:[%s0] sm:$0x1]
  %v15 = vld [vmem:[%s0 + $0x1] sm:$0x1]
  %vm16 = vcmask 253952
  %v17 = vsel %vm16, %v14, 0.0
  %v18 = vsel %vm16, %v15, 0.0
  %v19 = vadd.f32 %v17, %v18
  %v20 = vmul.f32 %v19, 0.5
  %v21 = vsub.f32 %v14, %v20
  %v22 = vsub.f32 %v15, %v20
  %v23 = vmul.f32 %v21, %v21
  %v24 = vmul.f32 %v22, %v22
  %v25 = vsel %vm16, %v23, 0.0
  %v26 = vsel %vm16, %v24, 0.0
  %v27 = vadd.f32 %v25, %v26
  %v28 = vmul.f32 %v27, 0.5
  %v29 = vadd.f32 %v28, 1e-05
  %v30 = vrsqrt.pop %v29
  %v31 = vmul.f32 %v30, %v29
  %v32 = vmul.f32 %v31, %v30
  %v33 = vmul.f32 0.5, %v32
  %v34 = vsub.f32 1.5, %v33
  %v35 = vmul.f32 %v30, %v34
  %vm36 = vweird.f32 %v29
  %vm37 = vweird.f32 %v30
  %vm38 = vmor %vm36, %vm37
  %v39 = vsel %vm38, %v30, %v35
  %v40 = vld [vmem:[%s1] sm:$0x1]
  %v41 = vld [vmem:[%s2] sm:$0x1]
  %v42 = vmul.f32 %v21, %v39
  %v43 = vmul.f32 %v22, %v39
  %v44 = vmul.f32 %v42, %v40
  %v45 = vmul.f32 %v43, %v40
  %v46 = vadd.f32 %v44, %v41
  %v47 = vadd.f32 %v45, %v41
  %48 = vst.msk [vmem:[%s3] sm:$0x1] %vm16, %v46
  %49 = vst.msk [vmem:[%s3 + $0x1] sm:$0x1] %vm16, %v47
  // Predicated region
  $region14: #{graph_attention_encoder.11} parent=0 // pred_check
    _
  $region15: #{graph_attention_encoder.11} parent=0 // pred_check_branch
    %51 = sbr.rel (0) target = $region17
  $region16: #{graph_attention_encoder.11} parent=0 // pred_region
    _
  $region17: #{graph_attention_encoder.11} parent=0 // pred_fallthru
    _
  // Predicated region
  $region18: #{graph_attention_encoder.11} parent=0 // pred_check
    _
  $region19: #{graph_attention_encoder.11} parent=0 // pred_check_branch
    %53 = sbr.rel (0) target = $region21
  $region20: #{graph_attention_encoder.11} parent=0 // pred_region
    _
  $region21: #{graph_attention_encoder.11} parent=0 // pred_fallthru
    _

// kernel: graph_attention_encoder.10
$region0: #{graph_attention_encoder.10}
  #allocation0 [shape = 'u32[]', space=smem, size = 0x4, offset = 0x4, fixed_abs, tag = 'smem constant byte address 0x4 - core index']
  #allocation1 [shape = 'u32[72,128]{1,0:T(1,128)}', space=vmem, size = 0x9000, scoped, tag = 'internal scratch']
  %s0 = inlined_call_operand.vmem [shape: f32[2,1,32], index: 0, kind: input, shape index: {}]
  %s1 = inlined_call_operand.vmem [shape: f32[2,8,32], index: 1, kind: input, shape index: {}]
  %s2 = inlined_call_operand.vmem [shape: f32[32,32], index: 2, kind: input, shape index: {}]
  %s3 = inlined_call_operand.vmem [shape: f32[1,32], index: 3, kind: input, shape index: {}]
  %s4 = inlined_call_operand.vmem [shape: f32[32,64], index: 4, kind: input, shape index: {}]
  %s5 = inlined_call_operand.vmem [shape: f32[1,64], index: 5, kind: input, shape index: {}]
  %s6 = inlined_call_operand.vmem [shape: f32[32,32], index: 6, kind: input, shape index: {}]
  %s7 = inlined_call_operand.vmem [shape: f32[1,32], index: 7, kind: input, shape index: {}]
  %s8 = inlined_call_operand.vmem [shape: f32[32,4], index: 8, kind: input, shape index: {}]
  %s9 = inlined_call_operand.vmem [shape: f32[4,32], index: 9, kind: input, shape index: {}]
  %s10 = inlined_call_operand.vmem [shape: f32[2,1,32], index: 10, kind: output, shape index: {0}]
  %s11 = inlined_call_operand.hbm [shape: f32[2,1,8], index: 11, kind: output, shape index: {1}]
  %12 = xla_tuple %s10, %s11
  %s13 = sld [smem:[#allocation0]]
  $region58: #{graph_attention_encoder.10} parent=0
    _
  %s15 = ssub.s32 1, %s13
  %s16 = scalar_select 0, %s15, %s13
  $region1: #{graph_attention_encoder.10} parent=0
    #allocation2 [shape = 'u8[1024]{0}', space=vmem, size = 0x400, scoped, tag = 'output window, operand 1, single buffered']
    #allocation3 [shape = 's32[1]{0}', space=sflag, size = 0x4, scoped, tag = 'scoped memory for graph_attention_encoder.10']
    %17 = vsyncpa [#allocation3], 0
    // Predicated region
    $region2: #{graph_attention_encoder.10} parent=1 // pred_check
      _
    $region3: #{graph_attention_encoder.10} parent=1 // pred_check_branch
      %19 = sbr.rel (0) target = $region5
    $region4: #{graph_attention_encoder.10} parent=1 // pred_region
      _
    $region5: #{graph_attention_encoder.10} parent=1 // pred_fallthru
      _
    // Predicated region
    $region6: #{graph_attention_encoder.10} parent=1 // pred_check
      _
    $region7: #{graph_attention_encoder.10} parent=1 // pred_check_branch
      %21 = sbr.rel (0) target = $region9
    $region8: #{graph_attention_encoder.10} parent=1 // pred_region
      _
    $region9: #{graph_attention_encoder.10} parent=1 // pred_fallthru
      _
    // Predicated region
    $region10: #{graph_attention_encoder.10} parent=1 // pred_check
      _
    $region11: #{graph_attention_encoder.10} parent=1 // pred_check_branch
      %23 = sbr.rel (0) target = $region13
    $region12: #{graph_attention_encoder.10} parent=1 // pred_region
      _
    $region13: #{graph_attention_encoder.10} parent=1 // pred_fallthru
      _
    // Predicated region
    $region14: #{graph_attention_encoder.10} parent=1 // pred_check
      _
    $region15: #{graph_attention_encoder.10} parent=1 // pred_check_branch
      %25 = sbr.rel (0) target = $region17
    $region16: #{graph_attention_encoder.10} parent=1 // pred_region
      _
    $region17: #{graph_attention_encoder.10} parent=1 // pred_fallthru
      _
    // Predicated region
    $region18: #{graph_attention_encoder.10} parent=1 // pred_check
      _
    $region19: #{graph_attention_encoder.10} parent=1 // pred_check_branch
      %27 = sbr.rel (0) target = $region21
    $region20: #{graph_attention_encoder.10} parent=1 // pred_region
      _
    $region21: #{graph_attention_encoder.10} parent=1 // pred_fallthru
      _
    // Predicated region
    $region22: #{graph_attention_encoder.10} parent=1 // pred_check
      _
    $region23: #{graph_attention_encoder.10} parent=1 // pred_check_branch
      %29 = sbr.rel (0) target = $region25
    $region24: #{graph_attention_encoder.10} parent=1 // pred_region
      _
    $region25: #{graph_attention_encoder.10} parent=1 // pred_fallthru
      _
    // Predicated region
    $region26: #{graph_attention_encoder.10} parent=1 // pred_check
      _
    $region27: #{graph_attention_encoder.10} parent=1 // pred_check_branch
      %31 = sbr.rel (0) target = $region29
    $region28: #{graph_attention_encoder.10} parent=1 // pred_region
      _
    $region29: #{graph_attention_encoder.10} parent=1 // pred_fallthru
      _
    // Predicated region
    $region30: #{graph_attention_encoder.10} parent=1 // pred_check
      _
    $region31: #{graph_attention_encoder.10} parent=1 // pred_check_branch
      %33 = sbr.rel (0) target = $region33
    $region32: #{graph_attention_encoder.10} parent=1 // pred_region
      _
    $region33: #{graph_attention_encoder.10} parent=1 // pred_fallthru
      _
    // Predicated region
    $region34: #{graph_attention_encoder.10} parent=1 // pred_check
      _
    $region35: #{graph_attention_encoder.10} parent=1 // pred_check_branch
      %35 = sbr.rel (0) target = $region37
    $region36: #{graph_attention_encoder.10} parent=1 // pred_region
      _
    $region37: #{graph_attention_encoder.10} parent=1 // pred_fallthru
      _
    // Predicated region
    $region38: #{graph_attention_encoder.10} parent=1 // pred_check
      _
    $region39: #{graph_attention_encoder.10} parent=1 // pred_check_branch
      %37 = sbr.rel (0) target = $region41
    $region40: #{graph_attention_encoder.10} parent=1 // pred_region
      _
    $region41: #{graph_attention_encoder.10} parent=1 // pred_fallthru
      _
    %v38 = vld [vmem:[%s0] sm:$0x1]
    %v39 = vld [vmem:[%s0 + $0x1] sm:$0x1]
    %v40 = vld [vmem:[%s2] sm:$0xff]
    %v41 = vld [vmem:[%s2 + $0x8] sm:$0xff]
    %v42 = vld [vmem:[%s2 + $0x10] sm:$0xff]
    %v43 = vld [vmem:[%s2 + $0x18] sm:$0xff]
    %v44 = vld [vmem:[%s3] sm:$0x1]
    %v46 = vperm.slane %v44, 0
    %50 = vst [vmem:[#allocation1] ss:$9 sm:$0xff] %v38
    %s51 = scalar_lea.vmem [#allocation1], 1
    %52 = vst [vmem:[%s51] ss:$9 sm:$0xff] %v39
    %v53 = vld [vmem:[#allocation1] sm:$0xff]
    %vm54 = vcmask 261120
    %v55 = vsel %vm54, %v53, 0
    %57 = vmatpush.msra.mxu0 0.0
    %58 = vmatpush.msra.mxu0 0.0
    %59 = vmatpush.msra.mxu0 0.0
    %60 = vmatpush.msra.mxu0 0.0
    %61 = vmatpush.msra.mxu0 0.0
    %62 = vmatpush.msra.mxu0 0.0
    %63 = vmatpush.msra.mxu0 0.0
    %64 = vmatpush.msra.mxu0 0.0
    %65 = vmatpush.msra.mxu0 0.0
    %66 = vmatpush.msra.mxu0 0.0
    %67 = vmatpush.msra.mxu0 0.0
    %68 = vmatpush.msra.mxu0 0.0
    %69 = vmatpush.msra.mxu0 %v43
    %70 = vmatpush.msra.mxu0 %v42
    %71 = vmatpush.msra.mxu0 %v41
    %72 = vmatpush.msra.mxu0 %v40
    %73 = vmatmul.f32.gmra.mxu0 %v55
    %v74 = vpop.f32.mrf.mxu0
    %v75 = vadd.f32 %v46, %v74
    %76 = vdwg.mxu0
    %v77 = vld [vmem:[%s1] sm:$0xff]
    %v78 = vld [vmem:[%s1 + $0x8] sm:$0xff]
    %v79 = vld [vmem:[%s4] sm:$0xff]
    %v80 = vld [vmem:[%s4 + $0x8] sm:$0xff]
    %v81 = vld [vmem:[%s4 + $0x10] sm:$0xff]
    %v82 = vld [vmem:[%s4 + $0x18] sm:$0xff]
    %v83 = vld [vmem:[%s5] sm:$0x1]
    %v85 = vperm.slane %v83, 0
    %v88 = vsel %vm54, %v77, 0
    %v91 = vsel %vm54, %v78, 0
    %93 = vmatpush.msra.mxu0 0.0
    %94 = vmatpush.msra.mxu0 0.0
    %95 = vmatpush.msra.mxu0 0.0
    %96 = vmatpush.msra.mxu0 0.0
    %97 = vmatpush.msra.mxu0 0.0
    %98 = vmatpush.msra.mxu0 0.0
    %99 = vmatpush.msra.mxu0 0.0
    %100 = vmatpush.msra.mxu0 0.0
    %101 = vmatpush.msra.mxu0 0.0
    %102 = vmatpush.msra.mxu0 0.0
    %103 = vmatpush.msra.mxu0 0.0
    %104 = vmatpush.msra.mxu0 0.0
    %105 = vmatpush.msra.mxu0 %v82
    %106 = vmatpush.msra.mxu0 %v81
    %107 = vmatpush.msra.mxu0 %v80
    %108 = vmatpush.msra.mxu0 %v79
    %109 = vmatmul.f32.gmra.mxu0 %v88
    %v110 = vpop.f32.mrf.mxu0
    %v111 = vadd.f32 %v85, %v110
    %112 = vmatmul.f32.gmra.mxu0 %v91
    %v113 = vpop.f32.mrf.mxu0
    %v114 = vadd.f32 %v85, %v113
    %115 = vdwg.mxu0
    %v116 = vmul.f32 %v75, 0.35355338
    %v118 = vrot.slane %v116, 1
    %v119 = vperm.slane %v116, 0
    %v120 = vperm.slane %v118, 0
    %v123 = vmul.f32 %v111, %v119
    %v124 = vmul.f32 %v114, %v120
    %v125 = vld [vmem:[%s8] sm:$0xff]
    %v126 = vld [vmem:[%s8 + $0x8] sm:$0xff]
    %v127 = vld [vmem:[%s8 + $0x10] sm:$0xff]
    %v128 = vld [vmem:[%s8 + $0x18] sm:$0xff]
    %v130 = vsel %vm54, %v123, 0
    %v133 = vsel %vm54, %v124, 0
    %135 = vmatpush.msra.mxu0 0.0
    %136 = vmatpush.msra.mxu0 0.0
    %137 = vmatpush.msra.mxu0 0.0
    %138 = vmatpush.msra.mxu0 0.0
    %139 = vmatpush.msra.mxu0 0.0
    %140 = vmatpush.msra.mxu0 0.0
    %141 = vmatpush.msra.mxu0 0.0
    %142 = vmatpush.msra.mxu0 0.0
    %143 = vmatpush.msra.mxu0 0.0
    %144 = vmatpush.msra.mxu0 0.0
    %145 = vmatpush.msra.mxu0 0.0
    %146 = vmatpush.msra.mxu0 0.0
    %147 = vmatpush.msra.mxu0 %v128
    %148 = vmatpush.msra.mxu0 %v127
    %149 = vmatpush.msra.mxu0 %v126
    %150 = vmatpush.msra.mxu0 %v125
    %151 = vmatmul.f32.gmra.mxu0 %v130
    %v152 = vpop.f32.mrf.mxu0
    %v153 = vadd.f32 0.0, %v152
    %154 = vmatmul.f32.gmra.mxu0 %v133
    %v155 = vpop.f32.mrf.mxu0
    %v156 = vadd.f32 0.0, %v155
    %157 = vdwg.mxu0
    %vm158 = vcmask 31744
    %v159 = vsel %vm158, %v153, -inf
    %v160 = vrot.slane %v159, 4
    %v161 = vmax.f32 %v159, %v160
    %v162 = vrot.slane %v161, 2
    %v163 = vmax.f32 %v161, %v162
    %v164 = vrot.slane %v163, 1
    %v165 = vmax.f32 %v163, %v164
    %v166 = vsel %vm158, %v156, -inf
    %v167 = vrot.slane %v166, 4
    %v168 = vmax.f32 %v166, %v167
    %v169 = vrot.slane %v168, 2
    %v170 = vmax.f32 %v168, %v169
    %v171 = vrot.slane %v170, 1
    %v172 = vmax.f32 %v170, %v171
    %v173 = vsub.f32 %v153, %v165
    %v174 = vsub.f32 %v156, %v172
    %v175 = vmul.f32 %v173, 1.442695
    %v176 = vpow.pop %v175
    %v177 = vmul.f32 %v174, 1.442695
    %v178 = vpow.pop %v177
    %v179 = vsel %vm158, %v176, 0.0
    %v180 = vrot.slane %v179, 4
    %v181 = vadd.f32 %v179, %v180
    %v182 = vrot.slane %v181, 2
    %v183 = vadd.f32 %v181, %v182
    %v184 = vrot.slane %v183, 1
    %v185 = vadd.f32 %v183, %v184
    %v186 = vsel %vm158, %v178, 0.0
    %v187 = vrot.slane %v186, 4
    %v188 = vadd.f32 %v186, %v187
    %v189 = vrot.slane %v188, 2
    %v190 = vadd.f32 %v188, %v189
    %v191 = vrot.slane %v190, 1
    %v192 = vadd.f32 %v190, %v191
    %v193 = vrcp.pop %v185
    %v194 = vrcp.pop %v192
    %v195 = vmul.f32 %v176, %v193
    %v196 = vmul.f32 %v178, %v194
    %v197 = vsel %vm158, %v195, 0.0
    %198 = vadd.xlane.f32.xlu0 %v197
    %v199 = vpop.xlane.xlu0 %198
    %v200 = vsel %vm158, %v196, 0.0
    %201 = vadd.xlane.f32.xlu0 %v200
    %v202 = vpop.xlane.xlu0 %201
    %v203 = vmul.f32 %v199, 0.25
    %v204 = vmul.f32 %v202, 0.25
    %v207 = vlaneseq
    %v208 = vand.u32 %v207, 127
    %v209 = vperm.slane %v203, %v208
    %v210 = vperm.slane %v204, %v208
    %vm213 = vcmask 57344
    %214 = vst.msk [vmem:[#allocation2] sm:$0x1] %vm213, %v209
    %215 = vst.msk [vmem:[#allocation2 + $0x1] sm:$0x1] %vm213, %v210
    %v216 = vld [vmem:[%s9] sm:$0xf]
    %v218 = vsel %vm158, %v195, 0
    %v221 = vsel %vm158, %v196, 0
    %vm223 = vcmask 1043456
    %v225 = vsel %vm223, %v216, 0
    %227 = vmatpush.msra.mxu0 0.0
    %228 = vmatpush.msra.mxu0 0.0
    %229 = vmatpush.msra.mxu0 0.0
    %230 = vmatpush.msra.mxu0 0.0
    %231 = vmatpush.msra.mxu0 0.0
    %232 = vmatpush.msra.mxu0 0.0
    %233 = vmatpush.msra.mxu0 0.0
    %234 = vmatpush.msra.mxu0 0.0
    %235 = vmatpush.msra.mxu0 0.0
    %236 = vmatpush.msra.mxu0 0.0
    %237 = vmatpush.msra.mxu0 0.0
    %238 = vmatpush.msra.mxu0 0.0
    %239 = vmatpush.msra.mxu0 0.0
    %240 = vmatpush.msra.mxu0 0.0
    %241 = vmatpush.msra.mxu0 0.0
    %242 = vmatpush.msra.mxu0 %v225
    %243 = vmatmul.f32.gmra.mxu0 %v218
    %v244 = vpop.f32.mrf.mxu0
    %v245 = vadd.f32 0.0, %v244
    %246 = vmatmul.f32.gmra.mxu0 %v221
    %v247 = vpop.f32.mrf.mxu0
    %v248 = vadd.f32 0.0, %v247
    %249 = vdwg.mxu0
    %252 = vrot.lane.b32.xlu0 %v111, 96
    %v253 = vpop.permute.xlu0 %252
    %254 = vrot.lane.b32.xlu0 %v114, 96
    %v255 = vpop.permute.xlu0 %254
    %v258 = vmul.f32 %v245, %v253
    %v259 = vmul.f32 %v248, %v255
    %v260 = vsel %vm54, %v258, 0.0
    %v261 = vrot.slane %v260, 4
    %v262 = vadd.f32 %v260, %v261
    %v263 = vrot.slane %v262, 2
    %v264 = vadd.f32 %v262, %v263
    %v265 = vrot.slane %v264, 1
    %v266 = vadd.f32 %v264, %v265
    %v267 = vsel %vm54, %v259, 0.0
    %v268 = vrot.slane %v267, 4
    %v269 = vadd.f32 %v267, %v268
    %v270 = vrot.slane %v269, 2
    %v271 = vadd.f32 %v269, %v270
    %v272 = vrot.slane %v271, 1
    %v273 = vadd.f32 %v271, %v272
    %v274 = vld [vmem:[%s6] sm:$0xff]
    %v275 = vld [vmem:[%s6 + $0x8] sm:$0xff]
    %v276 = vld [vmem:[%s6 + $0x10] sm:$0xff]
    %v277 = vld [vmem:[%s6 + $0x18] sm:$0xff]
    %v278 = vld [vmem:[%s7] sm:$0x1]
    %v280 = vperm.slane %v278, 0
    %vm284 = vcmask 1041409
    %v285 = vsel %vm284, %v273, %v266
    %v286 = vsel %vm54, %v285, 0
    %288 = vmatpush.msra.mxu0 0.0
    %289 = vmatpush.msra.mxu0 0.0
    %290 = vmatpush.msra.mxu0 0.0
    %291 = vmatpush.msra.mxu0 0.0
    %292 = vmatpush.msra.mxu0 0.0
    %293 = vmatpush.msra.mxu0 0.0
    %294 = vmatpush.msra.mxu0 0.0
    %295 = vmatpush.msra.mxu0 0.0
    %296 = vmatpush.msra.mxu0 0.0
    %297 = vmatpush.msra.mxu0 0.0
    %298 = vmatpush.msra.mxu0 0.0
    %299 = vmatpush.msra.mxu0 0.0
    %300 = vmatpush.msra.mxu0 %v277
    %301 = vmatpush.msra.mxu0 %v276
    %302 = vmatpush.msra.mxu0 %v275
    %303 = vmatpush.msra.mxu0 %v274
    %304 = vmatmul.f32.gmra.mxu0 %v286
    %v305 = vpop.f32.mrf.mxu0
    %v306 = vadd.f32 %v280, %v305
    %307 = vdwg.mxu0
    %308 = vst [vmem:[#allocation1] ss:$9 sm:$0xff] %v38
    %s309 = scalar_lea.vmem [#allocation1], 1
    %310 = vst [vmem:[%s309] ss:$9 sm:$0xff] %v39
    %v311 = vld [vmem:[#allocation1] sm:$0xff]
    %v313 = vadd.f32 %v306, %v311
    %v315 = vrot.slane %v313, 1
    %vm317 = vcmask 253952
    %318 = vst.msk [vmem:[%s10] sm:$0x1] %vm317, %v313
    %319 = vst.msk [vmem:[%s10 + $0x1] sm:$0x1] %vm317, %v315
    // Predicated region
    $region42: #{graph_attention_encoder.10} parent=1 // pred_check
      _
    $region43: #{graph_attention_encoder.10} parent=1 // pred_check_branch
      %321 = sbr.rel (0) target = $region45
    $region44: #{graph_attention_encoder.10} parent=1 // pred_region
      _
    $region45: #{graph_attention_encoder.10} parent=1 // pred_fallthru
      _
    // Predicated region
    $region46: #{graph_attention_encoder.10} parent=1 // pred_check
      _
    $region47: #{graph_attention_encoder.10} parent=1 // pred_check_branch
      %323 = sbr.rel (0) target = $region49
    $region48: #{graph_attention_encoder.10} parent=1 // pred_region
      %325 = vsyncadd [#allocation3], 0
      %s326 = sshll.u32 [#allocation2], 4
      %s327 = int_to_ptr.vmem [resolvable:$true] %s326
      %s328 = sshll.u32 %s11, 4
      %s329 = int_to_ptr.hbm [resolvable:$true] %s328
      %334 = dma.vmem_to_hbm [thread:$0]  %s327, 32, %s329, [#allocation3], 16, 16, 1
    $region49: #{graph_attention_encoder.10} parent=1 // pred_fallthru
      _
    // Predicated region
    $region50: #{graph_attention_encoder.10} parent=1 // pred_check
      _
    $region51: #{graph_attention_encoder.10} parent=1 // pred_check_branch
      %336 = sbr.rel (0) target = $region53
    $region52: #{graph_attention_encoder.10} parent=1 // pred_region
      _
    $region53: #{graph_attention_encoder.10} parent=1 // pred_fallthru
      _
    // Predicated region
    $region54: #{graph_attention_encoder.10} parent=1 // pred_check
      _
    $region55: #{graph_attention_encoder.10} parent=1 // pred_check_branch
      %338 = sbr.rel (0) target = $region57
    $region56: #{graph_attention_encoder.10} parent=1 // pred_region
      %340 = dma.done [#allocation3], 32
    $region57: #{graph_attention_encoder.10} parent=1 // pred_fallthru
      _
    %341 = vsyncpa [#allocation3], 1

// kernel: graph_attention_encoder.9
$region0: #{graph_attention_encoder.9}
  #allocation0 [shape = 'u32[]', space=smem, size = 0x4, offset = 0x4, fixed_abs, tag = 'smem constant byte address 0x4 - core index']
  #allocation1 [shape = 'u32[72,128]{1,0:T(1,128)}', space=vmem, size = 0x9000, scoped, tag = 'internal scratch']
  %s0 = inlined_call_operand.vmem [shape: f32[2,8,32], index: 0, kind: input, shape index: {}]
  %s1 = inlined_call_operand.vmem [shape: f32[2,8,8,32], index: 1, kind: input, shape index: {}]
  %s2 = inlined_call_operand.vmem [shape: f32[32,32], index: 2, kind: input, shape index: {}]
  %s3 = inlined_call_operand.vmem [shape: f32[1,32], index: 3, kind: input, shape index: {}]
  %s4 = inlined_call_operand.vmem [shape: f32[32,64], index: 4, kind: input, shape index: {}]
  %s5 = inlined_call_operand.vmem [shape: f32[1,64], index: 5, kind: input, shape index: {}]
  %s6 = inlined_call_operand.vmem [shape: f32[1,32], index: 6, kind: input, shape index: {}]
  %s7 = inlined_call_operand.vmem [shape: f32[1,32], index: 7, kind: input, shape index: {}]
  %s8 = inlined_call_operand.vmem [shape: f32[2,8,8,32], index: 8, kind: output, shape index: {0}]
  %s9 = inlined_call_operand.vmem [shape: f32[1,1,32], index: 9, kind: output, shape index: {1}]
  %s10 = inlined_call_operand.vmem [shape: f32[1,1,32], index: 10, kind: output, shape index: {2}]
  %11 = xla_tuple %s8, %s9, %s10
  %s12 = sld [smem:[#allocation0]]
  $region58: #{graph_attention_encoder.9} parent=0
    _
  %s14 = ssub.s32 1, %s12
  %s15 = scalar_select 0, %s14, %s12
  // Predicated region
  $region2: #{graph_attention_encoder.9} parent=0 // pred_check
    _
  $region3: #{graph_attention_encoder.9} parent=0 // pred_check_branch
    %17 = sbr.rel (0) target = $region5
  $region4: #{graph_attention_encoder.9} parent=0 // pred_region
    _
  $region5: #{graph_attention_encoder.9} parent=0 // pred_fallthru
    _
  // Predicated region
  $region6: #{graph_attention_encoder.9} parent=0 // pred_check
    _
  $region7: #{graph_attention_encoder.9} parent=0 // pred_check_branch
    %19 = sbr.rel (0) target = $region9
  $region8: #{graph_attention_encoder.9} parent=0 // pred_region
    _
  $region9: #{graph_attention_encoder.9} parent=0 // pred_fallthru
    _
  // Predicated region
  $region10: #{graph_attention_encoder.9} parent=0 // pred_check
    _
  $region11: #{graph_attention_encoder.9} parent=0 // pred_check_branch
    %21 = sbr.rel (0) target = $region13
  $region12: #{graph_attention_encoder.9} parent=0 // pred_region
    _
  $region13: #{graph_attention_encoder.9} parent=0 // pred_fallthru
    _
  // Predicated region
  $region14: #{graph_attention_encoder.9} parent=0 // pred_check
    _
  $region15: #{graph_attention_encoder.9} parent=0 // pred_check_branch
    %23 = sbr.rel (0) target = $region17
  $region16: #{graph_attention_encoder.9} parent=0 // pred_region
    _
  $region17: #{graph_attention_encoder.9} parent=0 // pred_fallthru
    _
  // Predicated region
  $region18: #{graph_attention_encoder.9} parent=0 // pred_check
    _
  $region19: #{graph_attention_encoder.9} parent=0 // pred_check_branch
    %25 = sbr.rel (0) target = $region21
  $region20: #{graph_attention_encoder.9} parent=0 // pred_region
    _
  $region21: #{graph_attention_encoder.9} parent=0 // pred_fallthru
    _
  // Predicated region
  $region22: #{graph_attention_encoder.9} parent=0 // pred_check
    _
  $region23: #{graph_attention_encoder.9} parent=0 // pred_check_branch
    %27 = sbr.rel (0) target = $region25
  $region24: #{graph_attention_encoder.9} parent=0 // pred_region
    _
  $region25: #{graph_attention_encoder.9} parent=0 // pred_fallthru
    _
  // Predicated region
  $region26: #{graph_attention_encoder.9} parent=0 // pred_check
    _
  $region27: #{graph_attention_encoder.9} parent=0 // pred_check_branch
    %29 = sbr.rel (0) target = $region29
  $region28: #{graph_attention_encoder.9} parent=0 // pred_region
    _
  $region29: #{graph_attention_encoder.9} parent=0 // pred_fallthru
    _
  // Predicated region
  $region30: #{graph_attention_encoder.9} parent=0 // pred_check
    _
  $region31: #{graph_attention_encoder.9} parent=0 // pred_check_branch
    %31 = sbr.rel (0) target = $region33
  $region32: #{graph_attention_encoder.9} parent=0 // pred_region
    _
  $region33: #{graph_attention_encoder.9} parent=0 // pred_fallthru
    _
  %v32 = vld [vmem:[%s1] sm:$0xff]
  %v33 = vld [vmem:[%s1 + $0x8] sm:$0xff]
  %v34 = vld [vmem:[%s1 + $0x10] sm:$0xff]
  %v35 = vld [vmem:[%s1 + $0x18] sm:$0xff]
  %v36 = vld [vmem:[%s1 + $0x20] sm:$0xff]
  %v37 = vld [vmem:[%s1 + $0x28] sm:$0xff]
  %v38 = vld [vmem:[%s1 + $0x30] sm:$0xff]
  %v39 = vld [vmem:[%s1 + $0x38] sm:$0xff]
  %v40 = vld [vmem:[%s1 + $0x40] sm:$0xff]
  %v41 = vld [vmem:[%s1 + $0x48] sm:$0xff]
  %v42 = vld [vmem:[%s1 + $0x50] sm:$0xff]
  %v43 = vld [vmem:[%s1 + $0x58] sm:$0xff]
  %v44 = vld [vmem:[%s1 + $0x60] sm:$0xff]
  %v45 = vld [vmem:[%s1 + $0x68] sm:$0xff]
  %v46 = vld [vmem:[%s1 + $0x70] sm:$0xff]
  %v47 = vld [vmem:[%s1 + $0x78] sm:$0xff]
  %v48 = vld [vmem:[%s2] sm:$0xff]
  %v49 = vld [vmem:[%s2 + $0x8] sm:$0xff]
  %v50 = vld [vmem:[%s2 + $0x10] sm:$0xff]
  %v51 = vld [vmem:[%s2 + $0x18] sm:$0xff]
  %v52 = vld [vmem:[%s3] sm:$0x1]
  %v54 = vperm.slane %v52, 0
  %vm56 = vcmask 261120
  %v58 = vsel %vm56, %v32, 0
  %v61 = vsel %vm56, %v33, 0
  %v64 = vsel %vm56, %v34, 0
  %v67 = vsel %vm56, %v35, 0
  %v70 = vsel %vm56, %v36, 0
  %v73 = vsel %vm56, %v37, 0
  %v76 = vsel %vm56, %v38, 0
  %v79 = vsel %vm56, %v39, 0
  %v82 = vsel %vm56, %v40, 0
  %v85 = vsel %vm56, %v41, 0
  %v88 = vsel %vm56, %v42, 0
  %v91 = vsel %vm56, %v43, 0
  %v94 = vsel %vm56, %v44, 0
  %v97 = vsel %vm56, %v45, 0
  %v100 = vsel %vm56, %v46, 0
  %v103 = vsel %vm56, %v47, 0
  %105 = vmatpush.msra.mxu0 0.0
  %106 = vmatpush.msra.mxu0 0.0
  %107 = vmatpush.msra.mxu0 0.0
  %108 = vmatpush.msra.mxu0 0.0
  %109 = vmatpush.msra.mxu0 0.0
  %110 = vmatpush.msra.mxu0 0.0
  %111 = vmatpush.msra.mxu0 0.0
  %112 = vmatpush.msra.mxu0 0.0
  %113 = vmatpush.msra.mxu0 0.0
  %114 = vmatpush.msra.mxu0 0.0
  %115 = vmatpush.msra.mxu0 0.0
  %116 = vmatpush.msra.mxu0 0.0
  %117 = vmatpush.msra.mxu0 %v51
  %118 = vmatpush.msra.mxu0 %v50
  %119 = vmatpush.msra.mxu0 %v49
  %120 = vmatpush.msra.mxu0 %v48
  %121 = vmatmul.f32.gmra.mxu0 %v58
  %v122 = vpop.f32.mrf.mxu0
  %v123 = vadd.f32 %v54, %v122
  %124 = vmatmul.f32.gmra.mxu0 %v61
  %v125 = vpop.f32.mrf.mxu0
  %v126 = vadd.f32 %v54, %v125
  %127 = vmatmul.f32.gmra.mxu0 %v64
  %v128 = vpop.f32.mrf.mxu0
  %v129 = vadd.f32 %v54, %v128
  %130 = vmatmul.f32.gmra.mxu0 %v67
  %v131 = vpop.f32.mrf.mxu0
  %v132 = vadd.f32 %v54, %v131
  %133 = vmatmul.f32.gmra.mxu0 %v70
  %v134 = vpop.f32.mrf.mxu0
  %v135 = vadd.f32 %v54, %v134
  %136 = vmatmul.f32.gmra.mxu0 %v73
  %v137 = vpop.f32.mrf.mxu0
  %v138 = vadd.f32 %v54, %v137
  %139 = vmatmul.f32.gmra.mxu0 %v76
  %v140 = vpop.f32.mrf.mxu0
  %v141 = vadd.f32 %v54, %v140
  %142 = vmatmul.f32.gmra.mxu0 %v79
  %v143 = vpop.f32.mrf.mxu0
  %v144 = vadd.f32 %v54, %v143
  %145 = vmatmul.f32.gmra.mxu0 %v82
  %v146 = vpop.f32.mrf.mxu0
  %v147 = vadd.f32 %v54, %v146
  %148 = vmatmul.f32.gmra.mxu0 %v85
  %v149 = vpop.f32.mrf.mxu0
  %v150 = vadd.f32 %v54, %v149
  %151 = vmatmul.f32.gmra.mxu0 %v88
  %v152 = vpop.f32.mrf.mxu0
  %v153 = vadd.f32 %v54, %v152
  %154 = vmatmul.f32.gmra.mxu0 %v91
  %v155 = vpop.f32.mrf.mxu0
  %v156 = vadd.f32 %v54, %v155
  %157 = vmatmul.f32.gmra.mxu0 %v94
  %v158 = vpop.f32.mrf.mxu0
  %v159 = vadd.f32 %v54, %v158
  %160 = vmatmul.f32.gmra.mxu0 %v97
  %v161 = vpop.f32.mrf.mxu0
  %v162 = vadd.f32 %v54, %v161
  %163 = vmatmul.f32.gmra.mxu0 %v100
  %v164 = vpop.f32.mrf.mxu0
  %v165 = vadd.f32 %v54, %v164
  %166 = vmatmul.f32.gmra.mxu0 %v103
  %v167 = vpop.f32.mrf.mxu0
  %v168 = vadd.f32 %v54, %v167
  %169 = vdwg.mxu0
  %v170 = vld [vmem:[%s0] sm:$0xff]
  %v171 = vld [vmem:[%s0 + $0x8] sm:$0xff]
  %v172 = vld [vmem:[%s4] sm:$0xff]
  %v173 = vld [vmem:[%s4 + $0x8] sm:$0xff]
  %v174 = vld [vmem:[%s4 + $0x10] sm:$0xff]
  %v175 = vld [vmem:[%s4 + $0x18] sm:$0xff]
  %v176 = vld [vmem:[%s5] sm:$0x1]
  %v178 = vperm.slane %v176, 0
  %v181 = vsel %vm56, %v170, 0
  %v184 = vsel %vm56, %v171, 0
  %186 = vmatpush.msra.mxu0 0.0
  %187 = vmatpush.msra.mxu0 0.0
  %188 = vmatpush.msra.mxu0 0.0
  %189 = vmatpush.msra.mxu0 0.0
  %190 = vmatpush.msra.mxu0 0.0
  %191 = vmatpush.msra.mxu0 0.0
  %192 = vmatpush.msra.mxu0 0.0
  %193 = vmatpush.msra.mxu0 0.0
  %194 = vmatpush.msra.mxu0 0.0
  %195 = vmatpush.msra.mxu0 0.0
  %196 = vmatpush.msra.mxu0 0.0
  %197 = vmatpush.msra.mxu0 0.0
  %198 = vmatpush.msra.mxu0 %v175
  %199 = vmatpush.msra.mxu0 %v174
  %200 = vmatpush.msra.mxu0 %v173
  %201 = vmatpush.msra.mxu0 %v172
  %202 = vmatmul.f32.gmra.mxu0 %v181
  %v203 = vpop.f32.mrf.mxu0
  %v204 = vadd.f32 %v178, %v203
  %205 = vmatmul.f32.gmra.mxu0 %v184
  %v206 = vpop.f32.mrf.mxu0
  %v207 = vadd.f32 %v178, %v206
  %208 = vdwg.mxu0
  %v211 = vrot.slane %v204, 1
  %v212 = vrot.slane %v204, 2
  %v213 = vrot.slane %v204, 3
  %v214 = vrot.slane %v204, 4
  %v215 = vrot.slane %v204, 5
  %v216 = vrot.slane %v204, 6
  %v217 = vrot.slane %v204, 7
  %v218 = vrot.slane %v207, 1
  %v219 = vrot.slane %v207, 2
  %v220 = vrot.slane %v207, 3
  %v221 = vrot.slane %v207, 4
  %v222 = vrot.slane %v207, 5
  %v223 = vrot.slane %v207, 6
  %v224 = vrot.slane %v207, 7
  %v225 = vadd.f32 %v123, %v204
  %v226 = vadd.f32 %v126, %v204
  %v227 = vadd.f32 %v129, %v204
  %v228 = vadd.f32 %v132, %v204
  %v229 = vadd.f32 %v135, %v204
  %v230 = vadd.f32 %v138, %v204
  %v231 = vadd.f32 %v141, %v204
  %v232 = vadd.f32 %v144, %v204
  %v233 = vadd.f32 %v147, %v207
  %v234 = vadd.f32 %v150, %v207
  %v235 = vadd.f32 %v153, %v207
  %v236 = vadd.f32 %v156, %v207
  %v237 = vadd.f32 %v159, %v207
  %v238 = vadd.f32 %v162, %v207
  %v239 = vadd.f32 %v165, %v207
  %v240 = vadd.f32 %v168, %v207
  %v241 = vperm.slane %v204, 0
  %v242 = vperm.slane %v211, 0
  %v243 = vperm.slane %v212, 0
  %v244 = vperm.slane %v213, 0
  %v245 = vperm.slane %v214, 0
  %v246 = vperm.slane %v215, 0
  %v247 = vperm.slane %v216, 0
  %v248 = vperm.slane %v217, 0
  %v249 = vperm.slane %v207, 0
  %v250 = vperm.slane %v218, 0
  %v251 = vperm.slane %v219, 0
  %v252 = vperm.slane %v220, 0
  %v253 = vperm.slane %v221, 0
  %v254 = vperm.slane %v222, 0
  %v255 = vperm.slane %v223, 0
  %v256 = vperm.slane %v224, 0
  %257 = vrot.lane.b32.xlu0 %v241, 96
  %v258 = vpop.permute.xlu0 %257
  %259 = vrot.lane.b32.xlu0 %v242, 96
  %v260 = vpop.permute.xlu0 %259
  %261 = vrot.lane.b32.xlu0 %v243, 96
  %v262 = vpop.permute.xlu0 %261
  %263 = vrot.lane.b32.xlu0 %v244, 96
  %v264 = vpop.permute.xlu0 %263
  %265 = vrot.lane.b32.xlu0 %v245, 96
  %v266 = vpop.permute.xlu0 %265
  %267 = vrot.lane.b32.xlu0 %v246, 96
  %v268 = vpop.permute.xlu0 %267
  %269 = vrot.lane.b32.xlu0 %v247, 96
  %v270 = vpop.permute.xlu0 %269
  %271 = vrot.lane.b32.xlu0 %v248, 96
  %v272 = vpop.permute.xlu0 %271
  %273 = vrot.lane.b32.xlu0 %v249, 96
  %v274 = vpop.permute.xlu0 %273
  %275 = vrot.lane.b32.xlu0 %v250, 96
  %v276 = vpop.permute.xlu0 %275
  %277 = vrot.lane.b32.xlu0 %v251, 96
  %v278 = vpop.permute.xlu0 %277
  %279 = vrot.lane.b32.xlu0 %v252, 96
  %v280 = vpop.permute.xlu0 %279
  %281 = vrot.lane.b32.xlu0 %v253, 96
  %v282 = vpop.permute.xlu0 %281
  %283 = vrot.lane.b32.xlu0 %v254, 96
  %v284 = vpop.permute.xlu0 %283
  %285 = vrot.lane.b32.xlu0 %v255, 96
  %v286 = vpop.permute.xlu0 %285
  %287 = vrot.lane.b32.xlu0 %v256, 96
  %v288 = vpop.permute.xlu0 %287
  %v305 = vadd.f32 %v225, %v258
  %v306 = vadd.f32 %v226, %v260
  %v307 = vadd.f32 %v227, %v262
  %v308 = vadd.f32 %v228, %v264
  %v309 = vadd.f32 %v229, %v266
  %v310 = vadd.f32 %v230, %v268
  %v311 = vadd.f32 %v231, %v270
  %v312 = vadd.f32 %v232, %v272
  %v313 = vadd.f32 %v233, %v274
  %v314 = vadd.f32 %v234, %v276
  %v315 = vadd.f32 %v235, %v278
  %v316 = vadd.f32 %v236, %v280
  %v317 = vadd.f32 %v237, %v282
  %v318 = vadd.f32 %v238, %v284
  %v319 = vadd.f32 %v239, %v286
  %v320 = vadd.f32 %v240, %v288
  %v321 = vsub.f32 0.0, %v305
  %v322 = vsub.f32 0.0, %v306
  %v323 = vsub.f32 0.0, %v307
  %v324 = vsub.f32 0.0, %v308
  %v325 = vsub.f32 0.0, %v309
  %v326 = vsub.f32 0.0, %v310
  %v327 = vsub.f32 0.0, %v311
  %v328 = vsub.f32 0.0, %v312
  %v329 = vsub.f32 0.0, %v313
  %v330 = vsub.f32 0.0, %v314
  %v331 = vsub.f32 0.0, %v315
  %v332 = vsub.f32 0.0, %v316
  %v333 = vsub.f32 0.0, %v317
  %v334 = vsub.f32 0.0, %v318
  %v335 = vsub.f32 0.0, %v319
  %v336 = vsub.f32 0.0, %v320
  %v337 = vmul.f32 %v321, 1.442695
  %v338 = vpow.pop %v337
  %v339 = vmul.f32 %v322, 1.442695
  %v340 = vpow.pop %v339
  %v341 = vmul.f32 %v323, 1.442695
  %v342 = vpow.pop %v341
  %v343 = vmul.f32 %v324, 1.442695
  %v344 = vpow.pop %v343
  %v345 = vmul.f32 %v325, 1.442695
  %v346 = vpow.pop %v345
  %v347 = vmul.f32 %v326, 1.442695
  %v348 = vpow.pop %v347
  %v349 = vmul.f32 %v327, 1.442695
  %v350 = vpow.pop %v349
  %v351 = vmul.f32 %v328, 1.442695
  %v352 = vpow.pop %v351
  %v353 = vmul.f32 %v329, 1.442695
  %v354 = vpow.pop %v353
  %v355 = vmul.f32 %v330, 1.442695
  %v356 = vpow.pop %v355
  %v357 = vmul.f32 %v331, 1.442695
  %v358 = vpow.pop %v357
  %v359 = vmul.f32 %v332, 1.442695
  %v360 = vpow.pop %v359
  %v361 = vmul.f32 %v333, 1.442695
  %v362 = vpow.pop %v361
  %v363 = vmul.f32 %v334, 1.442695
  %v364 = vpow.pop %v363
  %v365 = vmul.f32 %v335, 1.442695
  %v366 = vpow.pop %v365
  %v367 = vmul.f32 %v336, 1.442695
  %v368 = vpow.pop %v367
  %v369 = vadd.f32 %v338, 1.0
  %v370 = vadd.f32 %v340, 1.0
  %v371 = vadd.f32 %v342, 1.0
  %v372 = vadd.f32 %v344, 1.0
  %v373 = vadd.f32 %v346, 1.0
  %v374 = vadd.f32 %v348, 1.0
  %v375 = vadd.f32 %v350, 1.0
  %v376 = vadd.f32 %v352, 1.0
  %v377 = vadd.f32 %v354, 1.0
  %v378 = vadd.f32 %v356, 1.0
  %v379 = vadd.f32 %v358, 1.0
  %v380 = vadd.f32 %v360, 1.0
  %v381 = vadd.f32 %v362, 1.0
  %v382 = vadd.f32 %v364, 1.0
  %v383 = vadd.f32 %v366, 1.0
  %v384 = vadd.f32 %v368, 1.0
  %v385 = vrcp.pop %v369
  %v386 = vrcp.pop %v370
  %v387 = vrcp.pop %v371
  %v388 = vrcp.pop %v372
  %v389 = vrcp.pop %v373
  %v390 = vrcp.pop %v374
  %v391 = vrcp.pop %v375
  %v392 = vrcp.pop %v376
  %v393 = vrcp.pop %v377
  %v394 = vrcp.pop %v378
  %v395 = vrcp.pop %v379
  %v396 = vrcp.pop %v380
  %v397 = vrcp.pop %v381
  %v398 = vrcp.pop %v382
  %v399 = vrcp.pop %v383
  %v400 = vrcp.pop %v384
  %v401 = vld [vmem:[%s6] sm:$0x1]
  %v403 = vperm.slane %v401, 0
  %v405 = vmul.f32 %v32, %v403
  %v406 = vmul.f32 %v33, %v403
  %v407 = vmul.f32 %v34, %v403
  %v408 = vmul.f32 %v35, %v403
  %v409 = vmul.f32 %v36, %v403
  %v410 = vmul.f32 %v37, %v403
  %v411 = vmul.f32 %v38, %v403
  %v412 = vmul.f32 %v39, %v403
  %v413 = vmul.f32 %v40, %v403
  %v414 = vmul.f32 %v41, %v403
  %v415 = vmul.f32 %v42, %v403
  %v416 = vmul.f32 %v43, %v403
  %v417 = vmul.f32 %v44, %v403
  %v418 = vmul.f32 %v45, %v403
  %v419 = vmul.f32 %v46, %v403
  %v420 = vmul.f32 %v47, %v403
  %v421 = vld [vmem:[%s7] sm:$0x1]
  %v423 = vperm.slane %v421, 0
  %v425 = vadd.f32 %v405, %v423
  %v426 = vadd.f32 %v406, %v423
  %v427 = vadd.f32 %v407, %v423
  %v428 = vadd.f32 %v408, %v423
  %v429 = vadd.f32 %v409, %v423
  %v430 = vadd.f32 %v410, %v423
  %v431 = vadd.f32 %v411, %v423
  %v432 = vadd.f32 %v412, %v423
  %v433 = vadd.f32 %v413, %v423
  %v434 = vadd.f32 %v414, %v423
  %v435 = vadd.f32 %v415, %v423
  %v436 = vadd.f32 %v416, %v423
  %v437 = vadd.f32 %v417, %v423
  %v438 = vadd.f32 %v418, %v423
  %v439 = vadd.f32 %v419, %v423
  %v440 = vadd.f32 %v420, %v423
  %v441 = vadd.f32 %v385, %v425
  %v442 = vadd.f32 %v386, %v426
  %v443 = vadd.f32 %v387, %v427
  %v444 = vadd.f32 %v388, %v428
  %v445 = vadd.f32 %v389, %v429
  %v446 = vadd.f32 %v390, %v430
  %v447 = vadd.f32 %v391, %v431
  %v448 = vadd.f32 %v392, %v432
  %v449 = vadd.f32 %v393, %v433
  %v450 = vadd.f32 %v394, %v434
  %v451 = vadd.f32 %v395, %v435
  %v452 = vadd.f32 %v396, %v436
  %v453 = vadd.f32 %v397, %v437
  %v454 = vadd.f32 %v398, %v438
  %v455 = vadd.f32 %v399, %v439
  %v456 = vadd.f32 %v400, %v440
  %457 = vst.msk [vmem:[%s8] sm:$0xff] %vm56, %v441
  %458 = vst.msk [vmem:[%s8 + $0x8] sm:$0xff] %vm56, %v442
  %459 = vst.msk [vmem:[%s8 + $0x10] sm:$0xff] %vm56, %v443
  %460 = vst.msk [vmem:[%s8 + $0x18] sm:$0xff] %vm56, %v444
  %461 = vst.msk [vmem:[%s8 + $0x20] sm:$0xff] %vm56, %v445
  %462 = vst.msk [vmem:[%s8 + $0x28] sm:$0xff] %vm56, %v446
  %463 = vst.msk [vmem:[%s8 + $0x30] sm:$0xff] %vm56, %v447
  %464 = vst.msk [vmem:[%s8 + $0x38] sm:$0xff] %vm56, %v448
  %465 = vst.msk [vmem:[%s8 + $0x40] sm:$0xff] %vm56, %v449
  %466 = vst.msk [vmem:[%s8 + $0x48] sm:$0xff] %vm56, %v450
  %467 = vst.msk [vmem:[%s8 + $0x50] sm:$0xff] %vm56, %v451
  %468 = vst.msk [vmem:[%s8 + $0x58] sm:$0xff] %vm56, %v452
  %469 = vst.msk [vmem:[%s8 + $0x60] sm:$0xff] %vm56, %v453
  %470 = vst.msk [vmem:[%s8 + $0x68] sm:$0xff] %vm56, %v454
  %471 = vst.msk [vmem:[%s8 + $0x70] sm:$0xff] %vm56, %v455
  %472 = vst.msk [vmem:[%s8 + $0x78] sm:$0xff] %vm56, %v456
  %v473 = vsel %vm56, %v441, 0.0
  %v474 = vsel %vm56, %v442, 0.0
  %v475 = vadd.f32 %v473, %v474
  %v476 = vsel %vm56, %v443, 0.0
  %v477 = vadd.f32 %v475, %v476
  %v478 = vsel %vm56, %v444, 0.0
  %v479 = vadd.f32 %v477, %v478
  %v480 = vsel %vm56, %v445, 0.0
  %v481 = vadd.f32 %v479, %v480
  %v482 = vsel %vm56, %v446, 0.0
  %v483 = vadd.f32 %v481, %v482
  %v484 = vsel %vm56, %v447, 0.0
  %v485 = vadd.f32 %v483, %v484
  %v486 = vsel %vm56, %v448, 0.0
  %v487 = vadd.f32 %v485, %v486
  %v488 = vsel %vm56, %v449, 0.0
  %v489 = vadd.f32 %v487, %v488
  %v490 = vsel %vm56, %v450, 0.0
  %v491 = vadd.f32 %v489, %v490
  %v492 = vsel %vm56, %v451, 0.0
  %v493 = vadd.f32 %v491, %v492
  %v494 = vsel %vm56, %v452, 0.0
  %v495 = vadd.f32 %v493, %v494
  %v496 = vsel %vm56, %v453, 0.0
  %v497 = vadd.f32 %v495, %v496
  %v498 = vsel %vm56, %v454, 0.0
  %v499 = vadd.f32 %v497, %v498
  %v500 = vsel %vm56, %v455, 0.0
  %v501 = vadd.f32 %v499, %v500
  %v502 = vsel %vm56, %v456, 0.0
  %v503 = vadd.f32 %v501, %v502
  %v504 = vrot.slane %v503, 4
  %v505 = vadd.f32 %v503, %v504
  %v506 = vrot.slane %v505, 2
  %v507 = vadd.f32 %v505, %v506
  %v508 = vrot.slane %v507, 1
  %v509 = vadd.f32 %v507, %v508
  %vm510 = vcmask 253952
  %511 = vst.msk [vmem:[%s9] sm:$0x1] %vm510, %v509
  %v512 = vmul.f32 %v441, %v441
  %v513 = vmul.f32 %v442, %v442
  %v514 = vmul.f32 %v443, %v443
  %v515 = vmul.f32 %v444, %v444
  %v516 = vmul.f32 %v445, %v445
  %v517 = vmul.f32 %v446, %v446
  %v518 = vmul.f32 %v447, %v447
  %v519 = vmul.f32 %v448, %v448
  %v520 = vmul.f32 %v449, %v449
  %v521 = vmul.f32 %v450, %v450
  %v522 = vmul.f32 %v451, %v451
  %v523 = vmul.f32 %v452, %v452
  %v524 = vmul.f32 %v453, %v453
  %v525 = vmul.f32 %v454, %v454
  %v526 = vmul.f32 %v455, %v455
  %v527 = vmul.f32 %v456, %v456
  %v528 = vsel %vm56, %v512, 0.0
  %v529 = vsel %vm56, %v513, 0.0
  %v530 = vadd.f32 %v528, %v529
  %v531 = vsel %vm56, %v514, 0.0
  %v532 = vadd.f32 %v530, %v531
  %v533 = vsel %vm56, %v515, 0.0
  %v534 = vadd.f32 %v532, %v533
  %v535 = vsel %vm56, %v516, 0.0
  %v536 = vadd.f32 %v534, %v535
  %v537 = vsel %vm56, %v517, 0.0
  %v538 = vadd.f32 %v536, %v537
  %v539 = vsel %vm56, %v518, 0.0
  %v540 = vadd.f32 %v538, %v539
  %v541 = vsel %vm56, %v519, 0.0
  %v542 = vadd.f32 %v540, %v541
  %v543 = vsel %vm56, %v520, 0.0
  %v544 = vadd.f32 %v542, %v543
  %v545 = vsel %vm56, %v521, 0.0
  %v546 = vadd.f32 %v544, %v545
  %v547 = vsel %vm56, %v522, 0.0
  %v548 = vadd.f32 %v546, %v547
  %v549 = vsel %vm56, %v523, 0.0
  %v550 = vadd.f32 %v548, %v549
  %v551 = vsel %vm56, %v524, 0.0
  %v552 = vadd.f32 %v550, %v551
  %v553 = vsel %vm56, %v525, 0.0
  %v554 = vadd.f32 %v552, %v553
  %v555 = vsel %vm56, %v526, 0.0
  %v556 = vadd.f32 %v554, %v555
  %v557 = vsel %vm56, %v527, 0.0
  %v558 = vadd.f32 %v556, %v557
  %v559 = vrot.slane %v558, 4
  %v560 = vadd.f32 %v558, %v559
  %v561 = vrot.slane %v560, 2
  %v562 = vadd.f32 %v560, %v561
  %v563 = vrot.slane %v562, 1
  %v564 = vadd.f32 %v562, %v563
  %565 = vst.msk [vmem:[%s10] sm:$0x1] %vm510, %v564
  // Predicated region
  $region34: #{graph_attention_encoder.9} parent=0 // pred_check
    _
  $region35: #{graph_attention_encoder.9} parent=0 // pred_check_branch
    %567 = sbr.rel (0) target = $region37
  $region36: #{graph_attention_encoder.9} parent=0 // pred_region
    _
  $region37: #{graph_attention_encoder.9} parent=0 // pred_fallthru
    _
  // Predicated region
  $region38: #{graph_attention_encoder.9} parent=0 // pred_check
    _
  $region39: #{graph_attention_encoder.9} parent=0 // pred_check_branch
    %569 = sbr.rel (0) target = $region41
  $region40: #{graph_attention_encoder.9} parent=0 // pred_region
    _
  $region41: #{graph_attention_encoder.9} parent=0 // pred_fallthru
    _
  // Predicated region
  $region42: #{graph_attention_encoder.9} parent=0 // pred_check
    _
  $region43: #{graph_attention_encoder.9} parent=0 // pred_check_branch
    %571 = sbr.rel (0) target = $region45
  $region44: #{graph_attention_encoder.9} parent=0 // pred_region
    _
  $region45: #{graph_attention_encoder.9} parent=0 // pred_fallthru
    _
  // Predicated region
  $region46: #{graph_attention_encoder.9} parent=0 // pred_check
    _
  $region47: #{graph_attention_encoder.9} parent=0 // pred_check_branch
    %573 = sbr.rel (0) target = $region49
  $region48: #{graph_attention_encoder.9} parent=0 // pred_region
    _
  $region49: #{graph_attention_encoder.9} parent=0 // pred_fallthru
    _
  // Predicated region
  $region50: #{graph_attention_encoder.9} parent=0 // pred_check
    _
  $region51: #{graph_attention_encoder.9} parent=0 // pred_check_branch
    %575 = sbr.rel (0) target = $region53
  $region52: #{graph_attention_encoder.9} parent=0 // pred_region
    _
  $region53: #{graph_attention_encoder.9} parent=0 // pred_fallthru
    _
  // Predicated region
  $region54: #{graph_attention_encoder.9} parent=0 // pred_check
    _
  $region55: #{graph_attention_encoder.9} parent=0 // pred_check_branch
    %577 = sbr.rel (0) target = $region57
  $region56: #{graph_attention_encoder.9} parent=0 // pred_region
    _
  $region57: #{graph_attention_encoder.9} parent=0 // pred_fallthru
    _

// kernel: graph_attention_encoder.8
$region0: #{graph_attention_encoder.8}
  #allocation0 [shape = 'u32[]', space=smem, size = 0x4, offset = 0x4, fixed_abs, tag = 'smem constant byte address 0x4 - core index']
  #allocation1 [shape = 'u32[72,128]{1,0:T(1,128)}', space=vmem, size = 0x9000, scoped, tag = 'internal scratch']
  %s0 = inlined_call_operand.vmem [shape: f32[2,8,32], index: 0, kind: input, shape index: {}]
  %s1 = inlined_call_operand.vmem [shape: f32[2,8,8], index: 1, kind: input, shape index: {}]
  %s2 = inlined_call_operand.hbm [shape: f32[2,8,8,32], index: 2, kind: input, shape index: {}]
  %s3 = inlined_call_operand.vmem [shape: f32[32,32], index: 3, kind: input, shape index: {}]
  %s4 = inlined_call_operand.vmem [shape: f32[1,32], index: 4, kind: input, shape index: {}]
  %s5 = inlined_call_operand.vmem [shape: f32[32,8], index: 5, kind: input, shape index: {}]
  %s6 = inlined_call_operand.vmem [shape: f32[32,4], index: 6, kind: input, shape index: {}]
  %s7 = inlined_call_operand.vmem [shape: f32[1,4], index: 7, kind: input, shape index: {}]
  %s8 = inlined_call_operand.vmem [shape: f32[1,32], index: 8, kind: input, shape index: {}]
  %s9 = inlined_call_operand.vmem [shape: f32[1,32], index: 9, kind: input, shape index: {}]
  %s10 = inlined_call_operand.vmem [shape: f32[2,8,32], index: 10, kind: output, shape index: {0}]
  %s11 = inlined_call_operand.vmem [shape: f32[1,1,32], index: 11, kind: output, shape index: {1}]
  %s12 = inlined_call_operand.vmem [shape: f32[1,1,32], index: 12, kind: output, shape index: {2}]
  %13 = xla_tuple %s10, %s11, %s12
  %s14 = sld [smem:[#allocation0]]
  $region70: #{graph_attention_encoder.8} parent=0
    _
  %s16 = ssub.s32 1, %s14
  %s17 = scalar_select 0, %s16, %s14
  $region1: #{graph_attention_encoder.8} parent=0
    #allocation2 [shape = 'u8[65536]{0}', space=vmem, size = 0x10000, scoped, tag = 'input window, operand 2, single buffered']
    #allocation3 [shape = 's32[1]{0}', space=sflag, size = 0x4, scoped, tag = 'scoped memory for graph_attention_encoder.8']
    %18 = vsyncpa [#allocation3], 0
    // Predicated region
    $region2: #{graph_attention_encoder.8} parent=1 // pred_check
      _
    $region3: #{graph_attention_encoder.8} parent=1 // pred_check_branch
      %20 = sbr.rel (0) target = $region5
    $region4: #{graph_attention_encoder.8} parent=1 // pred_region
      _
    $region5: #{graph_attention_encoder.8} parent=1 // pred_fallthru
      _
    // Predicated region
    $region6: #{graph_attention_encoder.8} parent=1 // pred_check
      _
    $region7: #{graph_attention_encoder.8} parent=1 // pred_check_branch
      %22 = sbr.rel (0) target = $region9
    $region8: #{graph_attention_encoder.8} parent=1 // pred_region
      _
    $region9: #{graph_attention_encoder.8} parent=1 // pred_fallthru
      _
    // Predicated region
    $region10: #{graph_attention_encoder.8} parent=1 // pred_check
      _
    $region11: #{graph_attention_encoder.8} parent=1 // pred_check_branch
      %24 = sbr.rel (0) target = $region13
    $region12: #{graph_attention_encoder.8} parent=1 // pred_region
      %26 = vsyncadd [#allocation3], 0
      %s27 = sshll.u32 %s2, 4
      %s28 = int_to_ptr.hbm [resolvable:$true] %s27
      %s29 = sshll.u32 [#allocation2], 4
      %s30 = int_to_ptr.vmem [resolvable:$true] %s29
      %35 = dma.hbm_to_vmem [thread:$0]  %s28, 2048, %s30, [#allocation3], 128, 128, 8
    $region13: #{graph_attention_encoder.8} parent=1 // pred_fallthru
      _
    // Predicated region
    $region14: #{graph_attention_encoder.8} parent=1 // pred_check
      _
    $region15: #{graph_attention_encoder.8} parent=1 // pred_check_branch
      %37 = sbr.rel (0) target = $region17
    $region16: #{graph_attention_encoder.8} parent=1 // pred_region
      _
    $region17: #{graph_attention_encoder.8} parent=1 // pred_fallthru
      _
    // Predicated region
    $region18: #{graph_attention_encoder.8} parent=1 // pred_check
      _
    $region19: #{graph_attention_encoder.8} parent=1 // pred_check_branch
      %39 = sbr.rel (0) target = $region21
    $region20: #{graph_attention_encoder.8} parent=1 // pred_region
      _
    $region21: #{graph_attention_encoder.8} parent=1 // pred_fallthru
      _
    // Predicated region
    $region22: #{graph_attention_encoder.8} parent=1 // pred_check
      _
    $region23: #{graph_attention_encoder.8} parent=1 // pred_check_branch
      %41 = sbr.rel (0) target = $region25
    $region24: #{graph_attention_encoder.8} parent=1 // pred_region
      _
    $region25: #{graph_attention_encoder.8} parent=1 // pred_fallthru
      _
    // Predicated region
    $region26: #{graph_attention_encoder.8} parent=1 // pred_check
      _
    $region27: #{graph_attention_encoder.8} parent=1 // pred_check_branch
      %43 = sbr.rel (0) target = $region29
    $region28: #{graph_attention_encoder.8} parent=1 // pred_region
      _
    $region29: #{graph_attention_encoder.8} parent=1 // pred_fallthru
      _
    // Predicated region
    $region30: #{graph_attention_encoder.8} parent=1 // pred_check
      _
    $region31: #{graph_attention_encoder.8} parent=1 // pred_check_branch
      %45 = sbr.rel (0) target = $region33
    $region32: #{graph_attention_encoder.8} parent=1 // pred_region
      _
    $region33: #{graph_attention_encoder.8} parent=1 // pred_fallthru
      _
    // Predicated region
    $region34: #{graph_attention_encoder.8} parent=1 // pred_check
      _
    $region35: #{graph_attention_encoder.8} parent=1 // pred_check_branch
      %47 = sbr.rel (0) target = $region37
    $region36: #{graph_attention_encoder.8} parent=1 // pred_region
      _
    $region37: #{graph_attention_encoder.8} parent=1 // pred_fallthru
      _
    // Predicated region
    $region38: #{graph_attention_encoder.8} parent=1 // pred_check
      _
    $region39: #{graph_attention_encoder.8} parent=1 // pred_check_branch
      %49 = sbr.rel (0) target = $region41
    $region40: #{graph_attention_encoder.8} parent=1 // pred_region
      _
    $region41: #{graph_attention_encoder.8} parent=1 // pred_fallthru
      _
    // Predicated region
    $region42: #{graph_attention_encoder.8} parent=1 // pred_check
      _
    $region43: #{graph_attention_encoder.8} parent=1 // pred_check_branch
      %51 = sbr.rel (0) target = $region45
    $region44: #{graph_attention_encoder.8} parent=1 // pred_region
      %53 = dma.done [#allocation3], 2048
    $region45: #{graph_attention_encoder.8} parent=1 // pred_fallthru
      _
    %v54 = vld [vmem:[%s0] sm:$0xff]
    %v55 = vld [vmem:[%s0 + $0x8] sm:$0xff]
    %v56 = vld [vmem:[%s3] sm:$0xff]
    %v57 = vld [vmem:[%s3 + $0x8] sm:$0xff]
    %v58 = vld [vmem:[%s3 + $0x10] sm:$0xff]
    %v59 = vld [vmem:[%s3 + $0x18] sm:$0xff]
    %v60 = vld [vmem:[%s4] sm:$0x1]
    %v62 = vperm.slane %v60, 0
    %vm64 = vcmask 261120
    %v66 = vsel %vm64, %v54, 0
    %v69 = vsel %vm64, %v55, 0
    %71 = vmatpush.msra.mxu0 0.0
    %72 = vmatpush.msra.mxu0 0.0
    %73 = vmatpush.msra.mxu0 0.0
    %74 = vmatpush.msra.mxu0 0.0
    %75 = vmatpush.msra.mxu0 0.0
    %76 = vmatpush.msra.mxu0 0.0
    %77 = vmatpush.msra.mxu0 0.0
    %78 = vmatpush.msra.mxu0 0.0
    %79 = vmatpush.msra.mxu0 0.0
    %80 = vmatpush.msra.mxu0 0.0
    %81 = vmatpush.msra.mxu0 0.0
    %82 = vmatpush.msra.mxu0 0.0
    %83 = vmatpush.msra.mxu0 %v59
    %84 = vmatpush.msra.mxu0 %v58
    %85 = vmatpush.msra.mxu0 %v57
    %86 = vmatpush.msra.mxu0 %v56
    %87 = vmatmul.f32.gmra.mxu0 %v66
    %v88 = vpop.f32.mrf.mxu0
    %v89 = vadd.f32 %v62, %v88
    %90 = vmatmul.f32.gmra.mxu0 %v69
    %v91 = vpop.f32.mrf.mxu0
    %v92 = vadd.f32 %v62, %v91
    %93 = vdwg.mxu0
    %v94 = vld [vmem:[%s5] sm:$0xff]
    %v95 = vld [vmem:[%s5 + $0x8] sm:$0xff]
    %v96 = vld [vmem:[%s5 + $0x10] sm:$0xff]
    %v97 = vld [vmem:[%s5 + $0x18] sm:$0xff]
    %v99 = vsel %vm64, %v89, 0
    %v102 = vsel %vm64, %v92, 0
    %104 = vmatpush.msra.mxu0 0.0
    %105 = vmatpush.msra.mxu0 0.0
    %106 = vmatpush.msra.mxu0 0.0
    %107 = vmatpush.msra.mxu0 0.0
    %108 = vmatpush.msra.mxu0 0.0
    %109 = vmatpush.msra.mxu0 0.0
    %110 = vmatpush.msra.mxu0 0.0
    %111 = vmatpush.msra.mxu0 0.0
    %112 = vmatpush.msra.mxu0 0.0
    %113 = vmatpush.msra.mxu0 0.0
    %114 = vmatpush.msra.mxu0 0.0
    %115 = vmatpush.msra.mxu0 0.0
    %116 = vmatpush.msra.mxu0 %v97
    %117 = vmatpush.msra.mxu0 %v96
    %118 = vmatpush.msra.mxu0 %v95
    %119 = vmatpush.msra.mxu0 %v94
    %120 = vmatmul.f32.gmra.mxu0 %v99
    %v121 = vpop.f32.mrf.mxu0
    %v122 = vadd.f32 0.0, %v121
    %123 = vmatmul.f32.gmra.mxu0 %v102
    %v124 = vpop.f32.mrf.mxu0
    %v125 = vadd.f32 0.0, %v124
    %126 = vdwg.mxu0
    %v127 = vld [vmem:[#allocation2] sm:$0xff]
    %v128 = vld [vmem:[#allocation2 + $0x8] sm:$0xff]
    %v129 = vld [vmem:[#allocation2 + $0x10] sm:$0xff]
    %v130 = vld [vmem:[#allocation2 + $0x18] sm:$0xff]
    %v131 = vld [vmem:[#allocation2 + $0x20] sm:$0xff]
    %v132 = vld [vmem:[#allocation2 + $0x28] sm:$0xff]
    %v133 = vld [vmem:[#allocation2 + $0x30] sm:$0xff]
    %v134 = vld [vmem:[#allocation2 + $0x38] sm:$0xff]
    %v135 = vld [vmem:[#allocation2 + $0x40] sm:$0xff]
    %v136 = vld [vmem:[#allocation2 + $0x48] sm:$0xff]
    %v137 = vld [vmem:[#allocation2 + $0x50] sm:$0xff]
    %v138 = vld [vmem:[#allocation2 + $0x58] sm:$0xff]
    %v139 = vld [vmem:[#allocation2 + $0x60] sm:$0xff]
    %v140 = vld [vmem:[#allocation2 + $0x68] sm:$0xff]
    %v141 = vld [vmem:[#allocation2 + $0x70] sm:$0xff]
    %v142 = vld [vmem:[#allocation2 + $0x78] sm:$0xff]
    %v143 = vld [vmem:[%s6] sm:$0xff]
    %v144 = vld [vmem:[%s6 + $0x8] sm:$0xff]
    %v145 = vld [vmem:[%s6 + $0x10] sm:$0xff]
    %v146 = vld [vmem:[%s6 + $0x18] sm:$0xff]
    %v147 = vld [vmem:[%s7] sm:$0x1]
    %v149 = vperm.slane %v147, 0
    %v152 = vsel %vm64, %v127, 0
    %v155 = vsel %vm64, %v128, 0
    %v158 = vsel %vm64, %v129, 0
    %v161 = vsel %vm64, %v130, 0
    %v164 = vsel %vm64, %v131, 0
    %v167 = vsel %vm64, %v132, 0
    %v170 = vsel %vm64, %v133, 0
    %v173 = vsel %vm64, %v134, 0
    %v176 = vsel %vm64, %v135, 0
    %v179 = vsel %vm64, %v136, 0
    %v182 = vsel %vm64, %v137, 0
    %v185 = vsel %vm64, %v138, 0
    %v188 = vsel %vm64, %v139, 0
    %v191 = vsel %vm64, %v140, 0
    %v194 = vsel %vm64, %v141, 0
    %v197 = vsel %vm64, %v142, 0
    %199 = vmatpush.msra.mxu0 0.0
    %200 = vmatpush.msra.mxu0 0.0
    %201 = vmatpush.msra.mxu0 0.0
    %202 = vmatpush.msra.mxu0 0.0
    %203 = vmatpush.msra.mxu0 0.0
    %204 = vmatpush.msra.mxu0 0.0
    %205 = vmatpush.msra.mxu0 0.0
    %206 = vmatpush.msra.mxu0 0.0
    %207 = vmatpush.msra.mxu0 0.0
    %208 = vmatpush.msra.mxu0 0.0
    %209 = vmatpush.msra.mxu0 0.0
    %210 = vmatpush.msra.mxu0 0.0
    %211 = vmatpush.msra.mxu0 %v146
    %212 = vmatpush.msra.mxu0 %v145
    %213 = vmatpush.msra.mxu0 %v144
    %214 = vmatpush.msra.mxu0 %v143
    %215 = vmatmul.f32.gmra.mxu0 %v152
    %v216 = vpop.f32.mrf.mxu0
    %v217 = vadd.f32 %v149, %v216
    %218 = vmatmul.f32.gmra.mxu0 %v155
    %v219 = vpop.f32.mrf.mxu0
    %v220 = vadd.f32 %v149, %v219
    %221 = vmatmul.f32.gmra.mxu0 %v158
    %v222 = vpop.f32.mrf.mxu0
    %v223 = vadd.f32 %v149, %v222
    %224 = vmatmul.f32.gmra.mxu0 %v161
    %v225 = vpop.f32.mrf.mxu0
    %v226 = vadd.f32 %v149, %v225
    %227 = vmatmul.f32.gmra.mxu0 %v164
    %v228 = vpop.f32.mrf.mxu0
    %v229 = vadd.f32 %v149, %v228
    %230 = vmatmul.f32.gmra.mxu0 %v167
    %v231 = vpop.f32.mrf.mxu0
    %v232 = vadd.f32 %v149, %v231
    %233 = vmatmul.f32.gmra.mxu0 %v170
    %v234 = vpop.f32.mrf.mxu0
    %v235 = vadd.f32 %v149, %v234
    %236 = vmatmul.f32.gmra.mxu0 %v173
    %v237 = vpop.f32.mrf.mxu0
    %v238 = vadd.f32 %v149, %v237
    %239 = vmatmul.f32.gmra.mxu0 %v176
    %v240 = vpop.f32.mrf.mxu0
    %v241 = vadd.f32 %v149, %v240
    %242 = vmatmul.f32.gmra.mxu0 %v179
    %v243 = vpop.f32.mrf.mxu0
    %v244 = vadd.f32 %v149, %v243
    %245 = vmatmul.f32.gmra.mxu0 %v182
    %v246 = vpop.f32.mrf.mxu0
    %v247 = vadd.f32 %v149, %v246
    %248 = vmatmul.f32.gmra.mxu0 %v185
    %v249 = vpop.f32.mrf.mxu0
    %v250 = vadd.f32 %v149, %v249
    %251 = vmatmul.f32.gmra.mxu0 %v188
    %v252 = vpop.f32.mrf.mxu0
    %v253 = vadd.f32 %v149, %v252
    %254 = vmatmul.f32.gmra.mxu0 %v191
    %v255 = vpop.f32.mrf.mxu0
    %v256 = vadd.f32 %v149, %v255
    %257 = vmatmul.f32.gmra.mxu0 %v194
    %v258 = vpop.f32.mrf.mxu0
    %v259 = vadd.f32 %v149, %v258
    %260 = vmatmul.f32.gmra.mxu0 %v197
    %v261 = vpop.f32.mrf.mxu0
    %v262 = vadd.f32 %v149, %v261
    %263 = vdwg.mxu0
    %v264 = vld [vmem:[%s1] sm:$0xff]
    %v265 = vld [vmem:[%s1 + $0x8] sm:$0xff]
    %vm266 = vcmp.eq.f32.partialorder %v264, 0.0
    %vm267 = vcmp.eq.f32.partialorder %v265, 0.0
    %269 = vset.pattern.permute.xlu0 0
    %270 = vperm.xlu0 %269, %v122
    %v271 = vpop.permute.xlu0 %270
    %274 = vset.pattern.permute.xlu0 0
    %275 = vperm.xlu0 %274, %v125
    %v276 = vpop.permute.xlu0 %275
    %278 = vset.pattern.permute.xlu0 4
    %279 = vperm.xlu0 %278, %v122
    %v280 = vpop.permute.xlu0 %279
    %281 = vset.pattern.permute.xlu0 4
    %282 = vperm.xlu0 %281, %v125
    %v283 = vpop.permute.xlu0 %282
    %v284 = vlaneseq
    %v285 = vand.u32 %v284, 127
    %v286 = vperm.slane %v280, %v285
    %v287 = vperm.slane %v283, %v285
    %vm288 = vcmask 1041409
    %vm289 = vcmask 1042434
    %v290 = vsel %vm289, %v286, %v286
    %vm291 = vcmask 1043459
    %v292 = vsel %vm291, %v286, %v290
    %vm293 = vcmask 1044484
    %v294 = vsel %vm293, %v286, %v292
    %vm295 = vcmask 1045509
    %v296 = vsel %vm295, %v286, %v294
    %vm297 = vcmask 1046534
    %v298 = vsel %vm297, %v286, %v296
    %vm299 = vcmask 1047559
    %v300 = vsel %vm299, %v286, %v298
    %v301 = vsel %vm289, %v287, %v287
    %v302 = vsel %vm291, %v287, %v301
    %v303 = vsel %vm293, %v287, %v302
    %v304 = vsel %vm295, %v287, %v303
    %v305 = vsel %vm297, %v287, %v304
    %v306 = vsel %vm299, %v287, %v305
    %v309 = vadd.f32 %v271, %v300
    %v310 = vadd.f32 %v276, %v306
    %327 = vset.pattern.permute.xlu0 0
    %328 = vperm.xlu0 %327, %v217
    %v329 = vpop.permute.xlu0 %328
    %330 = vset.pattern.permute.xlu0 0
    %331 = vperm.xlu0 %330, %v220
    %v332 = vpop.permute.xlu0 %331
    %333 = vset.pattern.permute.xlu0 0
    %334 = vperm.xlu0 %333, %v223
    %v335 = vpop.permute.xlu0 %334
    %336 = vset.pattern.permute.xlu0 0
    %337 = vperm.xlu0 %336, %v226
    %v338 = vpop.permute.xlu0 %337
    %339 = vset.pattern.permute.xlu0 0
    %340 = vperm.xlu0 %339, %v229
    %v341 = vpop.permute.xlu0 %340
    %342 = vset.pattern.permute.xlu0 0
    %343 = vperm.xlu0 %342, %v232
    %v344 = vpop.permute.xlu0 %343
    %345 = vset.pattern.permute.xlu0 0
    %346 = vperm.xlu0 %345, %v235
    %v347 = vpop.permute.xlu0 %346
    %348 = vset.pattern.permute.xlu0 0
    %349 = vperm.xlu0 %348, %v238
    %v350 = vpop.permute.xlu0 %349
    %351 = vset.pattern.permute.xlu0 0
    %352 = vperm.xlu0 %351, %v241
    %v353 = vpop.permute.xlu0 %352
    %354 = vset.pattern.permute.xlu0 0
    %355 = vperm.xlu0 %354, %v244
    %v356 = vpop.permute.xlu0 %355
    %357 = vset.pattern.permute.xlu0 0
    %358 = vperm.xlu0 %357, %v247
    %v359 = vpop.permute.xlu0 %358
    %360 = vset.pattern.permute.xlu0 0
    %361 = vperm.xlu0 %360, %v250
    %v362 = vpop.permute.xlu0 %361
    %363 = vset.pattern.permute.xlu0 0
    %364 = vperm.xlu0 %363, %v253
    %v365 = vpop.permute.xlu0 %364
    %366 = vset.pattern.permute.xlu0 0
    %367 = vperm.xlu0 %366, %v256
    %v368 = vpop.permute.xlu0 %367
    %369 = vset.pattern.permute.xlu0 0
    %370 = vperm.xlu0 %369, %v259
    %v371 = vpop.permute.xlu0 %370
    %372 = vset.pattern.permute.xlu0 0
    %373 = vperm.xlu0 %372, %v262
    %v374 = vpop.permute.xlu0 %373
    %v375 = vperm.slane %v329, %v285
    %v376 = vperm.slane %v332, %v285
    %v377 = vperm.slane %v335, %v285
    %v378 = vperm.slane %v338, %v285
    %v379 = vperm.slane %v341, %v285
    %v380 = vperm.slane %v344, %v285
    %v381 = vperm.slane %v347, %v285
    %v382 = vperm.slane %v350, %v285
    %v383 = vperm.slane %v353, %v285
    %v384 = vperm.slane %v356, %v285
    %v385 = vperm.slane %v359, %v285
    %v386 = vperm.slane %v362, %v285
    %v387 = vperm.slane %v365, %v285
    %v388 = vperm.slane %v368, %v285
    %v389 = vperm.slane %v371, %v285
    %v390 = vperm.slane %v374, %v285
    %v391 = vsel %vm288, %v376, %v375
    %v392 = vsel %vm289, %v377, %v391
    %v393 = vsel %vm291, %v378, %v392
    %v394 = vsel %vm293, %v379, %v393
    %v395 = vsel %vm295, %v380, %v394
    %v396 = vsel %vm297, %v381, %v395
    %v397 = vsel %vm299, %v382, %v396
    %v398 = vsel %vm288, %v384, %v383
    %v399 = vsel %vm289, %v385, %v398
    %v400 = vsel %vm291, %v386, %v399
    %v401 = vsel %vm293, %v387, %v400
    %v402 = vsel %vm295, %v388, %v401
    %v403 = vsel %vm297, %v389, %v402
    %v404 = vsel %vm299, %v390, %v403
    %v407 = vadd.f32 %v309, %v397
    %v408 = vadd.f32 %v310, %v404
    %vm409 = vcmp.ge.f32.partialorder %v407, 0.0
    %vm410 = vcmp.ge.f32.partialorder %v408, 0.0
    %v411 = vmul.f32 %v407, 0.2
    %v412 = vmul.f32 %v408, 0.2
    %v413 = vsel %vm409, %v407, %v411
    %v414 = vsel %vm410, %v408, %v412
    %v415 = vsel %vm266, -1e+30, %v413
    %v416 = vsel %vm267, -1e+30, %v414
    %vm417 = vcmask 64512
    %v418 = vsel %vm417, %v415, -inf
    %419 = vmax.xlane.f32.xlu0 %v418
    %v420 = vpop.xlane.xlu0 %419
    %v421 = vsel %vm417, %v416, -inf
    %422 = vmax.xlane.f32.xlu0 %v421
    %v423 = vpop.xlane.xlu0 %422
    %v424 = vsub.f32 %v415, %v420
    %v425 = vsub.f32 %v416, %v423
    %v426 = vmul.f32 %v424, 1.442695
    %v427 = vpow.pop %v426
    %v428 = vmul.f32 %v425, 1.442695
    %v429 = vpow.pop %v428
    %v430 = vsel %vm417, %v427, 0.0
    %431 = vadd.xlane.f32.xlu0 %v430
    %v432 = vpop.xlane.xlu0 %431
    %v433 = vsel %vm417, %v429, 0.0
    %434 = vadd.xlane.f32.xlu0 %v433
    %v435 = vpop.xlane.xlu0 %434
    %v436 = vrcp.pop %v432
    %v437 = vrcp.pop %v435
    %v438 = vmul.f32 %v427, %v436
    %v439 = vmul.f32 %v429, %v437
    %v441 = vsel %vm417, %v438, 0
    %443 = vmatpush.msra.mxu0 0.0
    %444 = vmatpush.msra.mxu0 0.0
    %445 = vmatpush.msra.mxu0 0.0
    %446 = vmatpush.msra.mxu0 0.0
    %447 = vmatpush.msra.mxu0 0.0
    %448 = vmatpush.msra.mxu0 0.0
    %449 = vmatpush.msra.mxu0 0.0
    %450 = vmatpush.msra.mxu0 0.0
    %451 = vmatpush.msra.mxu0 0.0
    %452 = vmatpush.msra.mxu0 0.0
    %453 = vmatpush.msra.mxu0 0.0
    %454 = vmatpush.msra.mxu0 0.0
    %455 = vmatpush.msra.mxu0 0.0
    %456 = vmatpush.msra.mxu0 0.0
    %457 = vmatpush.msra.mxu0 0.0
    %458 = vmatpush.msra.mxu0 %v89
    %459 = vmatmul.f32.gmra.mxu0 %v441
    %v460 = vpop.f32.mrf.mxu0
    %v461 = vadd.f32 0.0, %v460
    %462 = vdwg.mxu0
    %v464 = vsel %vm417, %v439, 0
    %466 = vmatpush.msra.mxu0 0.0
    %467 = vmatpush.msra.mxu0 0.0
    %468 = vmatpush.msra.mxu0 0.0
    %469 = vmatpush.msra.mxu0 0.0
    %470 = vmatpush.msra.mxu0 0.0
    %471 = vmatpush.msra.mxu0 0.0
    %472 = vmatpush.msra.mxu0 0.0
    %473 = vmatpush.msra.mxu0 0.0
    %474 = vmatpush.msra.mxu0 0.0
    %475 = vmatpush.msra.mxu0 0.0
    %476 = vmatpush.msra.mxu0 0.0
    %477 = vmatpush.msra.mxu0 0.0
    %478 = vmatpush.msra.mxu0 0.0
    %479 = vmatpush.msra.mxu0 0.0
    %480 = vmatpush.msra.mxu0 0.0
    %481 = vmatpush.msra.mxu0 %v92
    %482 = vmatmul.f32.gmra.mxu0 %v464
    %v483 = vpop.f32.mrf.mxu0
    %v484 = vadd.f32 0.0, %v483
    %485 = vdwg.mxu0
    %486 = vset.pattern.permute.xlu0 1
    %487 = vperm.xlu0 %486, %v122
    %v488 = vpop.permute.xlu0 %487
    %490 = vset.pattern.permute.xlu0 1
    %491 = vperm.xlu0 %490, %v125
    %v492 = vpop.permute.xlu0 %491
    %494 = vset.pattern.permute.xlu0 5
    %495 = vperm.xlu0 %494, %v122
    %v496 = vpop.permute.xlu0 %495
    %497 = vset.pattern.permute.xlu0 5
    %498 = vperm.xlu0 %497, %v125
    %v499 = vpop.permute.xlu0 %498
    %v500 = vperm.slane %v496, %v285
    %v501 = vperm.slane %v499, %v285
    %v502 = vsel %vm289, %v500, %v500
    %v503 = vsel %vm291, %v500, %v502
    %v504 = vsel %vm293, %v500, %v503
    %v505 = vsel %vm295, %v500, %v504
    %v506 = vsel %vm297, %v500, %v505
    %v507 = vsel %vm299, %v500, %v506
    %v508 = vsel %vm289, %v501, %v501
    %v509 = vsel %vm291, %v501, %v508
    %v510 = vsel %vm293, %v501, %v509
    %v511 = vsel %vm295, %v501, %v510
    %v512 = vsel %vm297, %v501, %v511
    %v513 = vsel %vm299, %v501, %v512
    %v516 = vadd.f32 %v488, %v507
    %v517 = vadd.f32 %v492, %v513
    %518 = vset.pattern.permute.xlu0 1
    %519 = vperm.xlu0 %518, %v217
    %v520 = vpop.permute.xlu0 %519
    %521 = vset.pattern.permute.xlu0 1
    %522 = vperm.xlu0 %521, %v220
    %v523 = vpop.permute.xlu0 %522
    %524 = vset.pattern.permute.xlu0 1
    %525 = vperm.xlu0 %524, %v223
    %v526 = vpop.permute.xlu0 %525
    %527 = vset.pattern.permute.xlu0 1
    %528 = vperm.xlu0 %527, %v226
    %v529 = vpop.permute.xlu0 %528
    %530 = vset.pattern.permute.xlu0 1
    %531 = vperm.xlu0 %530, %v229
    %v532 = vpop.permute.xlu0 %531
    %533 = vset.pattern.permute.xlu0 1
    %534 = vperm.xlu0 %533, %v232
    %v535 = vpop.permute.xlu0 %534
    %536 = vset.pattern.permute.xlu0 1
    %537 = vperm.xlu0 %536, %v235
    %v538 = vpop.permute.xlu0 %537
    %539 = vset.pattern.permute.xlu0 1
    %540 = vperm.xlu0 %539, %v238
    %v541 = vpop.permute.xlu0 %540
    %542 = vset.pattern.permute.xlu0 1
    %543 = vperm.xlu0 %542, %v241
    %v544 = vpop.permute.xlu0 %543
    %545 = vset.pattern.permute.xlu0 1
    %546 = vperm.xlu0 %545, %v244
    %v547 = vpop.permute.xlu0 %546
    %548 = vset.pattern.permute.xlu0 1
    %549 = vperm.xlu0 %548, %v247
    %v550 = vpop.permute.xlu0 %549
    %551 = vset.pattern.permute.xlu0 1
    %552 = vperm.xlu0 %551, %v250
    %v553 = vpop.permute.xlu0 %552
    %554 = vset.pattern.permute.xlu0 1
    %555 = vperm.xlu0 %554, %v253
    %v556 = vpop.permute.xlu0 %555
    %557 = vset.pattern.permute.xlu0 1
    %558 = vperm.xlu0 %557, %v256
    %v559 = vpop.permute.xlu0 %558
    %560 = vset.pattern.permute.xlu0 1
    %561 = vperm.xlu0 %560, %v259
    %v562 = vpop.permute.xlu0 %561
    %563 = vset.pattern.permute.xlu0 1
    %564 = vperm.xlu0 %563, %v262
    %v565 = vpop.permute.xlu0 %564
    %v566 = vperm.slane %v520, %v285
    %v567 = vperm.slane %v523, %v285
    %v568 = vperm.slane %v526, %v285
    %v569 = vperm.slane %v529, %v285
    %v570 = vperm.slane %v532, %v285
    %v571 = vperm.slane %v535, %v285
    %v572 = vperm.slane %v538, %v285
    %v573 = vperm.slane %v541, %v285
    %v574 = vperm.slane %v544, %v285
    %v575 = vperm.slane %v547, %v285
    %v576 = vperm.slane %v550, %v285
    %v577 = vperm.slane %v553, %v285
    %v578 = vperm.slane %v556, %v285
    %v579 = vperm.slane %v559, %v285
    %v580 = vperm.slane %v562, %v285
    %v581 = vperm.slane %v565, %v285
    %v582 = vsel %vm288, %v567, %v566
    %v583 = vsel %vm289, %v568, %v582
    %v584 = vsel %vm291, %v569, %v583
    %v585 = vsel %vm293, %v570, %v584
    %v586 = vsel %vm295, %v571, %v585
    %v587 = vsel %vm297, %v572, %v586
    %v588 = vsel %vm299, %v573, %v587
    %v589 = vsel %vm288, %v575, %v574
    %v590 = vsel %vm289, %v576, %v589
    %v591 = vsel %vm291, %v577, %v590
    %v592 = vsel %vm293, %v578, %v591
    %v593 = vsel %vm295, %v579, %v592
    %v594 = vsel %vm297, %v580, %v593
    %v595 = vsel %vm299, %v581, %v594
    %v598 = vadd.f32 %v516, %v588
    %v599 = vadd.f32 %v517, %v595
    %vm600 = vcmp.ge.f32.partialorder %v598, 0.0
    %vm601 = vcmp.ge.f32.partialorder %v599, 0.0
    %v602 = vmul.f32 %v598, 0.2
    %v603 = vmul.f32 %v599, 0.2
    %v604 = vsel %vm600, %v598, %v602
    %v605 = vsel %vm601, %v599, %v603
    %v606 = vsel %vm266, -1e+30, %v604
    %v607 = vsel %vm267, -1e+30, %v605
    %v608 = vsel %vm417, %v606, -inf
    %609 = vmax.xlane.f32.xlu0 %v608
    %v610 = vpop.xlane.xlu0 %609
    %v611 = vsel %vm417, %v607, -inf
    %612 = vmax.xlane.f32.xlu0 %v611
    %v613 = vpop.xlane.xlu0 %612
    %v614 = vsub.f32 %v606, %v610
    %v615 = vsub.f32 %v607, %v613
    %v616 = vmul.f32 %v614, 1.442695
    %v617 = vpow.pop %v616
    %v618 = vmul.f32 %v615, 1.442695
    %v619 = vpow.pop %v618
    %v620 = vsel %vm417, %v617, 0.0
    %621 = vadd.xlane.f32.xlu0 %v620
    %v622 = vpop.xlane.xlu0 %621
    %v623 = vsel %vm417, %v619, 0.0
    %624 = vadd.xlane.f32.xlu0 %v623
    %v625 = vpop.xlane.xlu0 %624
    %v626 = vrcp.pop %v622
    %v627 = vrcp.pop %v625
    %v628 = vmul.f32 %v617, %v626
    %v629 = vmul.f32 %v619, %v627
    %630 = vrot.lane.b32.xlu0 %v89, 120
    %v631 = vpop.permute.xlu0 %630
    %v634 = vsel %vm417, %v628, 0
    %636 = vmatpush.msra.mxu0 0.0
    %637 = vmatpush.msra.mxu0 0.0
    %638 = vmatpush.msra.mxu0 0.0
    %639 = vmatpush.msra.mxu0 0.0
    %640 = vmatpush.msra.mxu0 0.0
    %641 = vmatpush.msra.mxu0 0.0
    %642 = vmatpush.msra.mxu0 0.0
    %643 = vmatpush.msra.mxu0 0.0
    %644 = vmatpush.msra.mxu0 0.0
    %645 = vmatpush.msra.mxu0 0.0
    %646 = vmatpush.msra.mxu0 0.0
    %647 = vmatpush.msra.mxu0 0.0
    %648 = vmatpush.msra.mxu0 0.0
    %649 = vmatpush.msra.mxu0 0.0
    %650 = vmatpush.msra.mxu0 0.0
    %651 = vmatpush.msra.mxu0 %v631
    %652 = vmatmul.f32.gmra.mxu0 %v634
    %v653 = vpop.f32.mrf.mxu0
    %v654 = vadd.f32 0.0, %v653
    %655 = vdwg.mxu0
    %656 = vrot.lane.b32.xlu0 %v92, 120
    %v657 = vpop.permute.xlu0 %656
    %v660 = vsel %vm417, %v629, 0
    %662 = vmatpush.msra.mxu0 0.0
    %663 = vmatpush.msra.mxu0 0.0
    %664 = vmatpush.msra.mxu0 0.0
    %665 = vmatpush.msra.mxu0 0.0
    %666 = vmatpush.msra.mxu0 0.0
    %667 = vmatpush.msra.mxu0 0.0
    %668 = vmatpush.msra.mxu0 0.0
    %669 = vmatpush.msra.mxu0 0.0
    %670 = vmatpush.msra.mxu0 0.0
    %671 = vmatpush.msra.mxu0 0.0
    %672 = vmatpush.msra.mxu0 0.0
    %673 = vmatpush.msra.mxu0 0.0
    %674 = vmatpush.msra.mxu0 0.0
    %675 = vmatpush.msra.mxu0 0.0
    %676 = vmatpush.msra.mxu0 0.0
    %677 = vmatpush.msra.mxu0 %v657
    %678 = vmatmul.f32.gmra.mxu0 %v660
    %v679 = vpop.f32.mrf.mxu0
    %v680 = vadd.f32 0.0, %v679
    %681 = vdwg.mxu0
    %682 = vset.pattern.permute.xlu0 2
    %683 = vperm.xlu0 %682, %v122
    %v684 = vpop.permute.xlu0 %683
    %686 = vset.pattern.permute.xlu0 2
    %687 = vperm.xlu0 %686, %v125
    %v688 = vpop.permute.xlu0 %687
    %690 = vset.pattern.permute.xlu0 6
    %691 = vperm.xlu0 %690, %v122
    %v692 = vpop.permute.xlu0 %691
    %693 = vset.pattern.permute.xlu0 6
    %694 = vperm.xlu0 %693, %v125
    %v695 = vpop.permute.xlu0 %694
    %v696 = vperm.slane %v692, %v285
    %v697 = vperm.slane %v695, %v285
    %v698 = vsel %vm289, %v696, %v696
    %v699 = vsel %vm291, %v696, %v698
    %v700 = vsel %vm293, %v696, %v699
    %v701 = vsel %vm295, %v696, %v700
    %v702 = vsel %vm297, %v696, %v701
    %v703 = vsel %vm299, %v696, %v702
    %v704 = vsel %vm289, %v697, %v697
    %v705 = vsel %vm291, %v697, %v704
    %v706 = vsel %vm293, %v697, %v705
    %v707 = vsel %vm295, %v697, %v706
    %v708 = vsel %vm297, %v697, %v707
    %v709 = vsel %vm299, %v697, %v708
    %v712 = vadd.f32 %v684, %v703
    %v713 = vadd.f32 %v688, %v709
    %714 = vset.pattern.permute.xlu0 2
    %715 = vperm.xlu0 %714, %v217
    %v716 = vpop.permute.xlu0 %715
    %717 = vset.pattern.permute.xlu0 2
    %718 = vperm.xlu0 %717, %v220
    %v719 = vpop.permute.xlu0 %718
    %720 = vset.pattern.permute.xlu0 2
    %721 = vperm.xlu0 %720, %v223
    %v722 = vpop.permute.xlu0 %721
    %723 = vset.pattern.permute.xlu0 2
    %724 = vperm.xlu0 %723, %v226
    %v725 = vpop.permute.xlu0 %724
    %726 = vset.pattern.permute.xlu0 2
    %727 = vperm.xlu0 %726, %v229
    %v728 = vpop.permute.xlu0 %727
    %729 = vset.pattern.permute.xlu0 2
    %730 = vperm.xlu0 %729, %v232
    %v731 = vpop.permute.xlu0 %730
    %732 = vset.pattern.permute.xlu0 2
    %733 = vperm.xlu0 %732, %v235
    %v734 = vpop.permute.xlu0 %733
    %735 = vset.pattern.permute.xlu0 2
    %736 = vperm.xlu0 %735, %v238
    %v737 = vpop.permute.xlu0 %736
    %738 = vset.pattern.permute.xlu0 2
    %739 = vperm.xlu0 %738, %v241
    %v740 = vpop.permute.xlu0 %739
    %741 = vset.pattern.permute.xlu0 2
    %742 = vperm.xlu0 %741, %v244
    %v743 = vpop.permute.xlu0 %742
    %744 = vset.pattern.permute.xlu0 2
    %745 = vperm.xlu0 %744, %v247
    %v746 = vpop.permute.xlu0 %745
    %747 = vset.pattern.permute.xlu0 2
    %748 = vperm.xlu0 %747, %v250
    %v749 = vpop.permute.xlu0 %748
    %750 = vset.pattern.permute.xlu0 2
    %751 = vperm.xlu0 %750, %v253
    %v752 = vpop.permute.xlu0 %751
    %753 = vset.pattern.permute.xlu0 2
    %754 = vperm.xlu0 %753, %v256
    %v755 = vpop.permute.xlu0 %754
    %756 = vset.pattern.permute.xlu0 2
    %757 = vperm.xlu0 %756, %v259
    %v758 = vpop.permute.xlu0 %757
    %759 = vset.pattern.permute.xlu0 2
    %760 = vperm.xlu0 %759, %v262
    %v761 = vpop.permute.xlu0 %760
    %v762 = vperm.slane %v716, %v285
    %v763 = vperm.slane %v719, %v285
    %v764 = vperm.slane %v722, %v285
    %v765 = vperm.slane %v725, %v285
    %v766 = vperm.slane %v728, %v285
    %v767 = vperm.slane %v731, %v285
    %v768 = vperm.slane %v734, %v285
    %v769 = vperm.slane %v737, %v285
    %v770 = vperm.slane %v740, %v285
    %v771 = vperm.slane %v743, %v285
    %v772 = vperm.slane %v746, %v285
    %v773 = vperm.slane %v749, %v285
    %v774 = vperm.slane %v752, %v285
    %v775 = vperm.slane %v755, %v285
    %v776 = vperm.slane %v758, %v285
    %v777 = vperm.slane %v761, %v285
    %v778 = vsel %vm288, %v763, %v762
    %v779 = vsel %vm289, %v764, %v778
    %v780 = vsel %vm291, %v765, %v779
    %v781 = vsel %vm293, %v766, %v780
    %v782 = vsel %vm295, %v767, %v781
    %v783 = vsel %vm297, %v768, %v782
    %v784 = vsel %vm299, %v769, %v783
    %v785 = vsel %vm288, %v771, %v770
    %v786 = vsel %vm289, %v772, %v785
    %v787 = vsel %vm291, %v773, %v786
    %v788 = vsel %vm293, %v774, %v787
    %v789 = vsel %vm295, %v775, %v788
    %v790 = vsel %vm297, %v776, %v789
    %v791 = vsel %vm299, %v777, %v790
    %v794 = vadd.f32 %v712, %v784
    %v795 = vadd.f32 %v713, %v791
    %vm796 = vcmp.ge.f32.partialorder %v794, 0.0
    %vm797 = vcmp.ge.f32.partialorder %v795, 0.0
    %v798 = vmul.f32 %v794, 0.2
    %v799 = vmul.f32 %v795, 0.2
    %v800 = vsel %vm796, %v794, %v798
    %v801 = vsel %vm797, %v795, %v799
    %v802 = vsel %vm266, -1e+30, %v800
    %v803 = vsel %vm267, -1e+30, %v801
    %v804 = vsel %vm417, %v802, -inf
    %805 = vmax.xlane.f32.xlu0 %v804
    %v806 = vpop.xlane.xlu0 %805
    %v807 = vsel %vm417, %v803, -inf
    %808 = vmax.xlane.f32.xlu0 %v807
    %v809 = vpop.xlane.xlu0 %808
    %v810 = vsub.f32 %v802, %v806
    %v811 = vsub.f32 %v803, %v809
    %v812 = vmul.f32 %v810, 1.442695
    %v813 = vpow.pop %v812
    %v814 = vmul.f32 %v811, 1.442695
    %v815 = vpow.pop %v814
    %v816 = vsel %vm417, %v813, 0.0
    %817 = vadd.xlane.f32.xlu0 %v816
    %v818 = vpop.xlane.xlu0 %817
    %v819 = vsel %vm417, %v815, 0.0
    %820 = vadd.xlane.f32.xlu0 %v819
    %v821 = vpop.xlane.xlu0 %820
    %v822 = vrcp.pop %v818
    %v823 = vrcp.pop %v821
    %v824 = vmul.f32 %v813, %v822
    %v825 = vmul.f32 %v815, %v823
    %826 = vrot.lane.b32.xlu0 %v89, 112
    %v827 = vpop.permute.xlu0 %826
    %v830 = vsel %vm417, %v824, 0
    %832 = vmatpush.msra.mxu0 0.0
    %833 = vmatpush.msra.mxu0 0.0
    %834 = vmatpush.msra.mxu0 0.0
    %835 = vmatpush.msra.mxu0 0.0
    %836 = vmatpush.msra.mxu0 0.0
    %837 = vmatpush.msra.mxu0 0.0
    %838 = vmatpush.msra.mxu0 0.0
    %839 = vmatpush.msra.mxu0 0.0
    %840 = vmatpush.msra.mxu0 0.0
    %841 = vmatpush.msra.mxu0 0.0
    %842 = vmatpush.msra.mxu0 0.0
    %843 = vmatpush.msra.mxu0 0.0
    %844 = vmatpush.msra.mxu0 0.0
    %845 = vmatpush.msra.mxu0 0.0
    %846 = vmatpush.msra.mxu0 0.0
    %847 = vmatpush.msra.mxu0 %v827
    %848 = vmatmul.f32.gmra.mxu0 %v830
    %v849 = vpop.f32.mrf.mxu0
    %v850 = vadd.f32 0.0, %v849
    %851 = vdwg.mxu0
    %852 = vrot.lane.b32.xlu0 %v92, 112
    %v853 = vpop.permute.xlu0 %852
    %v856 = vsel %vm417, %v825, 0
    %858 = vmatpush.msra.mxu0 0.0
    %859 = vmatpush.msra.mxu0 0.0
    %860 = vmatpush.msra.mxu0 0.0
    %861 = vmatpush.msra.mxu0 0.0
    %862 = vmatpush.msra.mxu0 0.0
    %863 = vmatpush.msra.mxu0 0.0
    %864 = vmatpush.msra.mxu0 0.0
    %865 = vmatpush.msra.mxu0 0.0
    %866 = vmatpush.msra.mxu0 0.0
    %867 = vmatpush.msra.mxu0 0.0
    %868 = vmatpush.msra.mxu0 0.0
    %869 = vmatpush.msra.mxu0 0.0
    %870 = vmatpush.msra.mxu0 0.0
    %871 = vmatpush.msra.mxu0 0.0
    %872 = vmatpush.msra.mxu0 0.0
    %873 = vmatpush.msra.mxu0 %v853
    %874 = vmatmul.f32.gmra.mxu0 %v856
    %v875 = vpop.f32.mrf.mxu0
    %v876 = vadd.f32 0.0, %v875
    %877 = vdwg.mxu0
    %878 = vset.pattern.permute.xlu0 3
    %879 = vperm.xlu0 %878, %v122
    %v880 = vpop.permute.xlu0 %879
    %882 = vset.pattern.permute.xlu0 3
    %883 = vperm.xlu0 %882, %v125
    %v884 = vpop.permute.xlu0 %883
    %886 = vset.pattern.permute.xlu0 7
    %887 = vperm.xlu0 %886, %v122
    %v888 = vpop.permute.xlu0 %887
    %889 = vset.pattern.permute.xlu0 7
    %890 = vperm.xlu0 %889, %v125
    %v891 = vpop.permute.xlu0 %890
    %v892 = vperm.slane %v888, %v285
    %v893 = vperm.slane %v891, %v285
    %v894 = vsel %vm289, %v892, %v892
    %v895 = vsel %vm291, %v892, %v894
    %v896 = vsel %vm293, %v892, %v895
    %v897 = vsel %vm295, %v892, %v896
    %v898 = vsel %vm297, %v892, %v897
    %v899 = vsel %vm299, %v892, %v898
    %v900 = vsel %vm289, %v893, %v893
    %v901 = vsel %vm291, %v893, %v900
    %v902 = vsel %vm293, %v893, %v901
    %v903 = vsel %vm295, %v893, %v902
    %v904 = vsel %vm297, %v893, %v903
    %v905 = vsel %vm299, %v893, %v904
    %v908 = vadd.f32 %v880, %v899
    %v909 = vadd.f32 %v884, %v905
    %910 = vset.pattern.permute.xlu0 3
    %911 = vperm.xlu0 %910, %v217
    %v912 = vpop.permute.xlu0 %911
    %913 = vset.pattern.permute.xlu0 3
    %914 = vperm.xlu0 %913, %v220
    %v915 = vpop.permute.xlu0 %914
    %916 = vset.pattern.permute.xlu0 3
    %917 = vperm.xlu0 %916, %v223
    %v918 = vpop.permute.xlu0 %917
    %919 = vset.pattern.permute.xlu0 3
    %920 = vperm.xlu0 %919, %v226
    %v921 = vpop.permute.xlu0 %920
    %922 = vset.pattern.permute.xlu0 3
    %923 = vperm.xlu0 %922, %v229
    %v924 = vpop.permute.xlu0 %923
    %925 = vset.pattern.permute.xlu0 3
    %926 = vperm.xlu0 %925, %v232
    %v927 = vpop.permute.xlu0 %926
    %928 = vset.pattern.permute.xlu0 3
    %929 = vperm.xlu0 %928, %v235
    %v930 = vpop.permute.xlu0 %929
    %931 = vset.pattern.permute.xlu0 3
    %932 = vperm.xlu0 %931, %v238
    %v933 = vpop.permute.xlu0 %932
    %934 = vset.pattern.permute.xlu0 3
    %935 = vperm.xlu0 %934, %v241
    %v936 = vpop.permute.xlu0 %935
    %937 = vset.pattern.permute.xlu0 3
    %938 = vperm.xlu0 %937, %v244
    %v939 = vpop.permute.xlu0 %938
    %940 = vset.pattern.permute.xlu0 3
    %941 = vperm.xlu0 %940, %v247
    %v942 = vpop.permute.xlu0 %941
    %943 = vset.pattern.permute.xlu0 3
    %944 = vperm.xlu0 %943, %v250
    %v945 = vpop.permute.xlu0 %944
    %946 = vset.pattern.permute.xlu0 3
    %947 = vperm.xlu0 %946, %v253
    %v948 = vpop.permute.xlu0 %947
    %949 = vset.pattern.permute.xlu0 3
    %950 = vperm.xlu0 %949, %v256
    %v951 = vpop.permute.xlu0 %950
    %952 = vset.pattern.permute.xlu0 3
    %953 = vperm.xlu0 %952, %v259
    %v954 = vpop.permute.xlu0 %953
    %955 = vset.pattern.permute.xlu0 3
    %956 = vperm.xlu0 %955, %v262
    %v957 = vpop.permute.xlu0 %956
    %v958 = vperm.slane %v912, %v285
    %v959 = vperm.slane %v915, %v285
    %v960 = vperm.slane %v918, %v285
    %v961 = vperm.slane %v921, %v285
    %v962 = vperm.slane %v924, %v285
    %v963 = vperm.slane %v927, %v285
    %v964 = vperm.slane %v930, %v285
    %v965 = vperm.slane %v933, %v285
    %v966 = vperm.slane %v936, %v285
    %v967 = vperm.slane %v939, %v285
    %v968 = vperm.slane %v942, %v285
    %v969 = vperm.slane %v945, %v285
    %v970 = vperm.slane %v948, %v285
    %v971 = vperm.slane %v951, %v285
    %v972 = vperm.slane %v954, %v285
    %v973 = vperm.slane %v957, %v285
    %v974 = vsel %vm288, %v959, %v958
    %v975 = vsel %vm289, %v960, %v974
    %v976 = vsel %vm291, %v961, %v975
    %v977 = vsel %vm293, %v962, %v976
    %v978 = vsel %vm295, %v963, %v977
    %v979 = vsel %vm297, %v964, %v978
    %v980 = vsel %vm299, %v965, %v979
    %v981 = vsel %vm288, %v967, %v966
    %v982 = vsel %vm289, %v968, %v981
    %v983 = vsel %vm291, %v969, %v982
    %v984 = vsel %vm293, %v970, %v983
    %v985 = vsel %vm295, %v971, %v984
    %v986 = vsel %vm297, %v972, %v985
    %v987 = vsel %vm299, %v973, %v986
    %v990 = vadd.f32 %v908, %v980
    %v991 = vadd.f32 %v909, %v987
    %vm992 = vcmp.ge.f32.partialorder %v990, 0.0
    %vm993 = vcmp.ge.f32.partialorder %v991, 0.0
    %v994 = vmul.f32 %v990, 0.2
    %v995 = vmul.f32 %v991, 0.2
    %v996 = vsel %vm992, %v990, %v994
    %v997 = vsel %vm993, %v991, %v995
    %v998 = vsel %vm266, -1e+30, %v996
    %v999 = vsel %vm267, -1e+30, %v997
    %v1000 = vsel %vm417, %v998, -inf
    %1001 = vmax.xlane.f32.xlu0 %v1000
    %v1002 = vpop.xlane.xlu0 %1001
    %v1003 = vsel %vm417, %v999, -inf
    %1004 = vmax.xlane.f32.xlu0 %v1003
    %v1005 = vpop.xlane.xlu0 %1004
    %v1006 = vsub.f32 %v998, %v1002
    %v1007 = vsub.f32 %v999, %v1005
    %v1008 = vmul.f32 %v1006, 1.442695
    %v1009 = vpow.pop %v1008
    %v1010 = vmul.f32 %v1007, 1.442695
    %v1011 = vpow.pop %v1010
    %v1012 = vsel %vm417, %v1009, 0.0
    %1013 = vadd.xlane.f32.xlu0 %v1012
    %v1014 = vpop.xlane.xlu0 %1013
    %v1015 = vsel %vm417, %v1011, 0.0
    %1016 = vadd.xlane.f32.xlu0 %v1015
    %v1017 = vpop.xlane.xlu0 %1016
    %v1018 = vrcp.pop %v1014
    %v1019 = vrcp.pop %v1017
    %v1020 = vmul.f32 %v1009, %v1018
    %v1021 = vmul.f32 %v1011, %v1019
    %1022 = vrot.lane.b32.xlu0 %v89, 104
    %v1023 = vpop.permute.xlu0 %1022
    %v1026 = vsel %vm417, %v1020, 0
    %1028 = vmatpush.msra.mxu0 0.0
    %1029 = vmatpush.msra.mxu0 0.0
    %1030 = vmatpush.msra.mxu0 0.0
    %1031 = vmatpush.msra.mxu0 0.0
    %1032 = vmatpush.msra.mxu0 0.0
    %1033 = vmatpush.msra.mxu0 0.0
    %1034 = vmatpush.msra.mxu0 0.0
    %1035 = vmatpush.msra.mxu0 0.0
    %1036 = vmatpush.msra.mxu0 0.0
    %1037 = vmatpush.msra.mxu0 0.0
    %1038 = vmatpush.msra.mxu0 0.0
    %1039 = vmatpush.msra.mxu0 0.0
    %1040 = vmatpush.msra.mxu0 0.0
    %1041 = vmatpush.msra.mxu0 0.0
    %1042 = vmatpush.msra.mxu0 0.0
    %1043 = vmatpush.msra.mxu0 %v1023
    %1044 = vmatmul.f32.gmra.mxu0 %v1026
    %v1045 = vpop.f32.mrf.mxu0
    %v1046 = vadd.f32 0.0, %v1045
    %1047 = vdwg.mxu0
    %1048 = vrot.lane.b32.xlu0 %v92, 104
    %v1049 = vpop.permute.xlu0 %1048
    %v1052 = vsel %vm417, %v1021, 0
    %1054 = vmatpush.msra.mxu0 0.0
    %1055 = vmatpush.msra.mxu0 0.0
    %1056 = vmatpush.msra.mxu0 0.0
    %1057 = vmatpush.msra.mxu0 0.0
    %1058 = vmatpush.msra.mxu0 0.0
    %1059 = vmatpush.msra.mxu0 0.0
    %1060 = vmatpush.msra.mxu0 0.0
    %1061 = vmatpush.msra.mxu0 0.0
    %1062 = vmatpush.msra.mxu0 0.0
    %1063 = vmatpush.msra.mxu0 0.0
    %1064 = vmatpush.msra.mxu0 0.0
    %1065 = vmatpush.msra.mxu0 0.0
    %1066 = vmatpush.msra.mxu0 0.0
    %1067 = vmatpush.msra.mxu0 0.0
    %1068 = vmatpush.msra.mxu0 0.0
    %1069 = vmatpush.msra.mxu0 %v1049
    %1070 = vmatmul.f32.gmra.mxu0 %v1052
    %v1071 = vpop.f32.mrf.mxu0
    %v1072 = vadd.f32 0.0, %v1071
    %1073 = vdwg.mxu0
    %1076 = vrot.lane.b32.xlu0 %v654, 8
    %v1077 = vpop.permute.xlu0 %1076
    %1078 = vrot.lane.b32.xlu0 %v680, 8
    %v1079 = vpop.permute.xlu0 %1078
    %1084 = vrot.lane.b32.xlu0 %v850, 16
    %v1085 = vpop.permute.xlu0 %1084
    %1086 = vrot.lane.b32.xlu0 %v876, 16
    %v1087 = vpop.permute.xlu0 %1086
    %1092 = vrot.lane.b32.xlu0 %v1046, 24
    %v1093 = vpop.permute.xlu0 %1092
    %1094 = vrot.lane.b32.xlu0 %v1072, 24
    %v1095 = vpop.permute.xlu0 %1094
    %v1098 = vsel %vm417, %v461, %v1077
    %v1099 = vsel %vm417, %v484, %v1079
    %vm1100 = vcmask 130048
    %v1101 = vsel %vm1100, %v1098, %v1085
    %v1102 = vsel %vm1100, %v1099, %v1087
    %vm1103 = vcmask 195584
    %v1104 = vsel %vm1103, %v1101, %v1093
    %v1105 = vsel %vm1103, %v1102, %v1095
    %v1106 = vld [vmem:[%s8] sm:$0x1]
    %v1108 = vperm.slane %v1106, 0
    %v1110 = vmul.f32 %v54, %v1108
    %v1111 = vmul.f32 %v55, %v1108
    %v1112 = vld [vmem:[%s9] sm:$0x1]
    %v1114 = vperm.slane %v1112, 0
    %v1116 = vadd.f32 %v1110, %v1114
    %v1117 = vadd.f32 %v1111, %v1114
    %v1118 = vadd.f32 %v1104, %v1116
    %v1119 = vadd.f32 %v1105, %v1117
    %1120 = vst.msk [vmem:[%s10] sm:$0xff] %vm64, %v1118
    %1121 = vst.msk [vmem:[%s10 + $0x8] sm:$0xff] %vm64, %v1119
    %v1122 = vsel %vm64, %v1118, 0.0
    %v1123 = vsel %vm64, %v1119, 0.0
    %v1124 = vadd.f32 %v1122, %v1123
    %v1125 = vrot.slane %v1124, 4
    %v1126 = vadd.f32 %v1124, %v1125
    %v1127 = vrot.slane %v1126, 2
    %v1128 = vadd.f32 %v1126, %v1127
    %v1129 = vrot.slane %v1128, 1
    %v1130 = vadd.f32 %v1128, %v1129
    %vm1131 = vcmask 253952
    %1132 = vst.msk [vmem:[%s11] sm:$0x1] %vm1131, %v1130
    %v1133 = vmul.f32 %v1118, %v1118
    %v1134 = vmul.f32 %v1119, %v1119
    %v1135 = vsel %vm64, %v1133, 0.0
    %v1136 = vsel %vm64, %v1134, 0.0
    %v1137 = vadd.f32 %v1135, %v1136
    %v1138 = vrot.slane %v1137, 4
    %v1139 = vadd.f32 %v1137, %v1138
    %v1140 = vrot.slane %v1139, 2
    %v1141 = vadd.f32 %v1139, %v1140
    %v1142 = vrot.slane %v1141, 1
    %v1143 = vadd.f32 %v1141, %v1142
    %1144 = vst.msk [vmem:[%s12] sm:$0x1] %vm1131, %v1143
    // Predicated region
    $region46: #{graph_attention_encoder.8} parent=1 // pred_check
      _
    $region47: #{graph_attention_encoder.8} parent=1 // pred_check_branch
      %1146 = sbr.rel (0) target = $region49
    $region48: #{graph_attention_encoder.8} parent=1 // pred_region
      _
    $region49: #{graph_attention_encoder.8} parent=1 // pred_fallthru
      _
    // Predicated region
    $region50: #{graph_attention_encoder.8} parent=1 // pred_check
      _
    $region51: #{graph_attention_encoder.8} parent=1 // pred_check_branch
      %1148 = sbr.rel (0) target = $region53
    $region52: #{graph_attention_encoder.8} parent=1 // pred_region
      _
    $region53: #{graph_attention_encoder.8} parent=1 // pred_fallthru
      _
    // Predicated region
    $region54: #{graph_attention_encoder.8} parent=1 // pred_check
      _
    $region55: #{graph_attention_encoder.8} parent=1 // pred_check_branch
      %1150 = sbr.rel (0) target = $region57
    $region56: #{graph_attention_encoder.8} parent=1 // pred_region
      _
    $region57: #{graph_attention_encoder.8} parent=1 // pred_fallthru
      _
    // Predicated region
    $region58: #{graph_attention_encoder.8} parent=1 // pred_check
      _
    $region59: #{graph_attention_encoder.8} parent=1 // pred_check_branch
      %1152 = sbr.rel (0) target = $region61
    $region60: #{graph_attention_encoder.8} parent=1 // pred_region
      _
    $region61: #{graph_attention_encoder.8} parent=1 // pred_fallthru
      _
    // Predicated region
    $region62: #{graph_attention_encoder.8} parent=1 // pred_check
      _
    $region63: #{graph_attention_encoder.8} parent=1 // pred_check_branch
      %1154 = sbr.rel (0) target = $region65
    $region64: #{graph_attention_encoder.8} parent=1 // pred_region
      _
    $region65: #{graph_attention_encoder.8} parent=1 // pred_fallthru
      _
    // Predicated region
    $region66: #{graph_attention_encoder.8} parent=1 // pred_check
      _
    $region67: #{graph_attention_encoder.8} parent=1 // pred_check_branch
      %1156 = sbr.rel (0) target = $region69
    $region68: #{graph_attention_encoder.8} parent=1 // pred_region
      _
    $region69: #{graph_attention_encoder.8} parent=1 // pred_fallthru
      _
    %1157 = vsyncpa [#allocation3], 1

// kernel: graph_attention_encoder.14
$region0: #{graph_attention_encoder.14}
  #allocation0 [shape = 'u32[]', space=smem, size = 0x4, offset = 0x4, fixed_abs, tag = 'smem constant byte address 0x4 - core index']
  #allocation1 [shape = 'u32[72,128]{1,0:T(1,128)}', space=vmem, size = 0x9000, scoped, tag = 'internal scratch']
  %s0 = inlined_call_operand.vmem [shape: f32[2,1,32], index: 0, kind: input, shape index: {}]
  %s1 = inlined_call_operand.vmem [shape: f32[2,8,32], index: 1, kind: input, shape index: {}]
  %s2 = inlined_call_operand.vmem [shape: f32[32,32], index: 2, kind: input, shape index: {}]
  %s3 = inlined_call_operand.vmem [shape: f32[1,32], index: 3, kind: input, shape index: {}]
  %s4 = inlined_call_operand.vmem [shape: f32[32,64], index: 4, kind: input, shape index: {}]
  %s5 = inlined_call_operand.vmem [shape: f32[1,64], index: 5, kind: input, shape index: {}]
  %s6 = inlined_call_operand.vmem [shape: f32[32,32], index: 6, kind: input, shape index: {}]
  %s7 = inlined_call_operand.vmem [shape: f32[1,32], index: 7, kind: input, shape index: {}]
  %s8 = inlined_call_operand.vmem [shape: f32[32,4], index: 8, kind: input, shape index: {}]
  %s9 = inlined_call_operand.vmem [shape: f32[4,32], index: 9, kind: input, shape index: {}]
  %s10 = inlined_call_operand.hbm [shape: f32[2,1,32], index: 10, kind: output, shape index: {0}]
  %s11 = inlined_call_operand.hbm [shape: f32[2,1,8], index: 11, kind: output, shape index: {1}]
  %12 = xla_tuple %s10, %s11
  %s13 = sld [smem:[#allocation0]]
  $region58: #{graph_attention_encoder.14} parent=0
    _
  %s15 = ssub.s32 1, %s13
  %s16 = scalar_select 0, %s15, %s13
  $region1: #{graph_attention_encoder.14} parent=0
    #allocation2 [shape = 'u8[1024]{0}', space=vmem, size = 0x400, scoped, tag = 'output window, operand 0, single buffered']
    #allocation3 [shape = 's32[1]{0}', space=sflag, size = 0x4, scoped, tag = 'scoped memory for graph_attention_encoder.14']
    #allocation4 [shape = 'u8[1024]{0}', space=vmem, size = 0x400, scoped, tag = 'output window, operand 1, single buffered']
    #allocation5 [shape = 's32[1]{0}', space=sflag, size = 0x4, scoped, tag = 'scoped memory for graph_attention_encoder.14']
    %17 = vsyncpa [#allocation3], 0
    %18 = vsyncpa [#allocation5], 0
    // Predicated region
    $region2: #{graph_attention_encoder.14} parent=1 // pred_check
      _
    $region3: #{graph_attention_encoder.14} parent=1 // pred_check_branch
      %20 = sbr.rel (0) target = $region5
    $region4: #{graph_attention_encoder.14} parent=1 // pred_region
      _
    $region5: #{graph_attention_encoder.14} parent=1 // pred_fallthru
      _
    // Predicated region
    $region6: #{graph_attention_encoder.14} parent=1 // pred_check
      _
    $region7: #{graph_attention_encoder.14} parent=1 // pred_check_branch
      %22 = sbr.rel (0) target = $region9
    $region8: #{graph_attention_encoder.14} parent=1 // pred_region
      _
    $region9: #{graph_attention_encoder.14} parent=1 // pred_fallthru
      _
    // Predicated region
    $region10: #{graph_attention_encoder.14} parent=1 // pred_check
      _
    $region11: #{graph_attention_encoder.14} parent=1 // pred_check_branch
      %24 = sbr.rel (0) target = $region13
    $region12: #{graph_attention_encoder.14} parent=1 // pred_region
      _
    $region13: #{graph_attention_encoder.14} parent=1 // pred_fallthru
      _
    // Predicated region
    $region14: #{graph_attention_encoder.14} parent=1 // pred_check
      _
    $region15: #{graph_attention_encoder.14} parent=1 // pred_check_branch
      %26 = sbr.rel (0) target = $region17
    $region16: #{graph_attention_encoder.14} parent=1 // pred_region
      _
    $region17: #{graph_attention_encoder.14} parent=1 // pred_fallthru
      _
    // Predicated region
    $region18: #{graph_attention_encoder.14} parent=1 // pred_check
      _
    $region19: #{graph_attention_encoder.14} parent=1 // pred_check_branch
      %28 = sbr.rel (0) target = $region21
    $region20: #{graph_attention_encoder.14} parent=1 // pred_region
      _
    $region21: #{graph_attention_encoder.14} parent=1 // pred_fallthru
      _
    // Predicated region
    $region22: #{graph_attention_encoder.14} parent=1 // pred_check
      _
    $region23: #{graph_attention_encoder.14} parent=1 // pred_check_branch
      %30 = sbr.rel (0) target = $region25
    $region24: #{graph_attention_encoder.14} parent=1 // pred_region
      _
    $region25: #{graph_attention_encoder.14} parent=1 // pred_fallthru
      _
    // Predicated region
    $region26: #{graph_attention_encoder.14} parent=1 // pred_check
      _
    $region27: #{graph_attention_encoder.14} parent=1 // pred_check_branch
      %32 = sbr.rel (0) target = $region29
    $region28: #{graph_attention_encoder.14} parent=1 // pred_region
      _
    $region29: #{graph_attention_encoder.14} parent=1 // pred_fallthru
      _
    // Predicated region
    $region30: #{graph_attention_encoder.14} parent=1 // pred_check
      _
    $region31: #{graph_attention_encoder.14} parent=1 // pred_check_branch
      %34 = sbr.rel (0) target = $region33
    $region32: #{graph_attention_encoder.14} parent=1 // pred_region
      _
    $region33: #{graph_attention_encoder.14} parent=1 // pred_fallthru
      _
    // Predicated region
    $region34: #{graph_attention_encoder.14} parent=1 // pred_check
      _
    $region35: #{graph_attention_encoder.14} parent=1 // pred_check_branch
      %36 = sbr.rel (0) target = $region37
    $region36: #{graph_attention_encoder.14} parent=1 // pred_region
      _
    $region37: #{graph_attention_encoder.14} parent=1 // pred_fallthru
      _
    // Predicated region
    $region38: #{graph_attention_encoder.14} parent=1 // pred_check
      _
    $region39: #{graph_attention_encoder.14} parent=1 // pred_check_branch
      %38 = sbr.rel (0) target = $region41
    $region40: #{graph_attention_encoder.14} parent=1 // pred_region
      _
    $region41: #{graph_attention_encoder.14} parent=1 // pred_fallthru
      _
    %v39 = vld [vmem:[%s0] sm:$0x1]
    %v40 = vld [vmem:[%s0 + $0x1] sm:$0x1]
    %v41 = vld [vmem:[%s2] sm:$0xff]
    %v42 = vld [vmem:[%s2 + $0x8] sm:$0xff]
    %v43 = vld [vmem:[%s2 + $0x10] sm:$0xff]
    %v44 = vld [vmem:[%s2 + $0x18] sm:$0xff]
    %v45 = vld [vmem:[%s3] sm:$0x1]
    %v47 = vperm.slane %v45, 0
    %51 = vst [vmem:[#allocation1] ss:$9 sm:$0xff] %v39
    %s52 = scalar_lea.vmem [#allocation1], 1
    %53 = vst [vmem:[%s52] ss:$9 sm:$0xff] %v40
    %v54 = vld [vmem:[#allocation1] sm:$0xff]
    %vm55 = vcmask 261120
    %v56 = vsel %vm55, %v54, 0
    %58 = vmatpush.msra.mxu0 0.0
    %59 = vmatpush.msra.mxu0 0.0
    %60 = vmatpush.msra.mxu0 0.0
    %61 = vmatpush.msra.mxu0 0.0
    %62 = vmatpush.msra.mxu0 0.0
    %63 = vmatpush.msra.mxu0 0.0
    %64 = vmatpush.msra.mxu0 0.0
    %65 = vmatpush.msra.mxu0 0.0
    %66 = vmatpush.msra.mxu0 0.0
    %67 = vmatpush.msra.mxu0 0.0
    %68 = vmatpush.msra.mxu0 0.0
    %69 = vmatpush.msra.mxu0 0.0
    %70 = vmatpush.msra.mxu0 %v44
    %71 = vmatpush.msra.mxu0 %v43
    %72 = vmatpush.msra.mxu0 %v42
    %73 = vmatpush.msra.mxu0 %v41
    %74 = vmatmul.f32.gmra.mxu0 %v56
    %v75 = vpop.f32.mrf.mxu0
    %v76 = vadd.f32 %v47, %v75
    %77 = vdwg.mxu0
    %v78 = vld [vmem:[%s1] sm:$0xff]
    %v79 = vld [vmem:[%s1 + $0x8] sm:$0xff]
    %v80 = vld [vmem:[%s4] sm:$0xff]
    %v81 = vld [vmem:[%s4 + $0x8] sm:$0xff]
    %v82 = vld [vmem:[%s4 + $0x10] sm:$0xff]
    %v83 = vld [vmem:[%s4 + $0x18] sm:$0xff]
    %v84 = vld [vmem:[%s5] sm:$0x1]
    %v86 = vperm.slane %v84, 0
    %v89 = vsel %vm55, %v78, 0
    %v92 = vsel %vm55, %v79, 0
    %94 = vmatpush.msra.mxu0 0.0
    %95 = vmatpush.msra.mxu0 0.0
    %96 = vmatpush.msra.mxu0 0.0
    %97 = vmatpush.msra.mxu0 0.0
    %98 = vmatpush.msra.mxu0 0.0
    %99 = vmatpush.msra.mxu0 0.0
    %100 = vmatpush.msra.mxu0 0.0
    %101 = vmatpush.msra.mxu0 0.0
    %102 = vmatpush.msra.mxu0 0.0
    %103 = vmatpush.msra.mxu0 0.0
    %104 = vmatpush.msra.mxu0 0.0
    %105 = vmatpush.msra.mxu0 0.0
    %106 = vmatpush.msra.mxu0 %v83
    %107 = vmatpush.msra.mxu0 %v82
    %108 = vmatpush.msra.mxu0 %v81
    %109 = vmatpush.msra.mxu0 %v80
    %110 = vmatmul.f32.gmra.mxu0 %v89
    %v111 = vpop.f32.mrf.mxu0
    %v112 = vadd.f32 %v86, %v111
    %113 = vmatmul.f32.gmra.mxu0 %v92
    %v114 = vpop.f32.mrf.mxu0
    %v115 = vadd.f32 %v86, %v114
    %116 = vdwg.mxu0
    %v117 = vmul.f32 %v76, 0.35355338
    %v119 = vrot.slane %v117, 1
    %v120 = vperm.slane %v117, 0
    %v121 = vperm.slane %v119, 0
    %v124 = vmul.f32 %v112, %v120
    %v125 = vmul.f32 %v115, %v121
    %v126 = vld [vmem:[%s8] sm:$0xff]
    %v127 = vld [vmem:[%s8 + $0x8] sm:$0xff]
    %v128 = vld [vmem:[%s8 + $0x10] sm:$0xff]
    %v129 = vld [vmem:[%s8 + $0x18] sm:$0xff]
    %v131 = vsel %vm55, %v124, 0
    %v134 = vsel %vm55, %v125, 0
    %136 = vmatpush.msra.mxu0 0.0
    %137 = vmatpush.msra.mxu0 0.0
    %138 = vmatpush.msra.mxu0 0.0
    %139 = vmatpush.msra.mxu0 0.0
    %140 = vmatpush.msra.mxu0 0.0
    %141 = vmatpush.msra.mxu0 0.0
    %142 = vmatpush.msra.mxu0 0.0
    %143 = vmatpush.msra.mxu0 0.0
    %144 = vmatpush.msra.mxu0 0.0
    %145 = vmatpush.msra.mxu0 0.0
    %146 = vmatpush.msra.mxu0 0.0
    %147 = vmatpush.msra.mxu0 0.0
    %148 = vmatpush.msra.mxu0 %v129
    %149 = vmatpush.msra.mxu0 %v128
    %150 = vmatpush.msra.mxu0 %v127
    %151 = vmatpush.msra.mxu0 %v126
    %152 = vmatmul.f32.gmra.mxu0 %v131
    %v153 = vpop.f32.mrf.mxu0
    %v154 = vadd.f32 0.0, %v153
    %155 = vmatmul.f32.gmra.mxu0 %v134
    %v156 = vpop.f32.mrf.mxu0
    %v157 = vadd.f32 0.0, %v156
    %158 = vdwg.mxu0
    %vm159 = vcmask 31744
    %v160 = vsel %vm159, %v154, -inf
    %v161 = vrot.slane %v160, 4
    %v162 = vmax.f32 %v160, %v161
    %v163 = vrot.slane %v162, 2
    %v164 = vmax.f32 %v162, %v163
    %v165 = vrot.slane %v164, 1
    %v166 = vmax.f32 %v164, %v165
    %v167 = vsel %vm159, %v157, -inf
    %v168 = vrot.slane %v167, 4
    %v169 = vmax.f32 %v167, %v168
    %v170 = vrot.slane %v169, 2
    %v171 = vmax.f32 %v169, %v170
    %v172 = vrot.slane %v171, 1
    %v173 = vmax.f32 %v171, %v172
    %v174 = vsub.f32 %v154, %v166
    %v175 = vsub.f32 %v157, %v173
    %v176 = vmul.f32 %v174, 1.442695
    %v177 = vpow.pop %v176
    %v178 = vmul.f32 %v175, 1.442695
    %v179 = vpow.pop %v178
    %v180 = vsel %vm159, %v177, 0.0
    %v181 = vrot.slane %v180, 4
    %v182 = vadd.f32 %v180, %v181
    %v183 = vrot.slane %v182, 2
    %v184 = vadd.f32 %v182, %v183
    %v185 = vrot.slane %v184, 1
    %v186 = vadd.f32 %v184, %v185
    %v187 = vsel %vm159, %v179, 0.0
    %v188 = vrot.slane %v187, 4
    %v189 = vadd.f32 %v187, %v188
    %v190 = vrot.slane %v189, 2
    %v191 = vadd.f32 %v189, %v190
    %v192 = vrot.slane %v191, 1
    %v193 = vadd.f32 %v191, %v192
    %v194 = vrcp.pop %v186
    %v195 = vrcp.pop %v193
    %v196 = vmul.f32 %v177, %v194
    %v197 = vmul.f32 %v179, %v195
    %v198 = vsel %vm159, %v196, 0.0
    %199 = vadd.xlane.f32.xlu0 %v198
    %v200 = vpop.xlane.xlu0 %199
    %v201 = vsel %vm159, %v197, 0.0
    %202 = vadd.xlane.f32.xlu0 %v201
    %v203 = vpop.xlane.xlu0 %202
    %v204 = vmul.f32 %v200, 0.25
    %v205 = vmul.f32 %v203, 0.25
    %v208 = vlaneseq
    %v209 = vand.u32 %v208, 127
    %v210 = vperm.slane %v204, %v209
    %v211 = vperm.slane %v205, %v209
    %vm214 = vcmask 57344
    %215 = vst.msk [vmem:[#allocation4] sm:$0x1] %vm214, %v210
    %216 = vst.msk [vmem:[#allocation4 + $0x1] sm:$0x1] %vm214, %v211
    %v217 = vld [vmem:[%s9] sm:$0xf]
    %v219 = vsel %vm159, %v196, 0
    %v222 = vsel %vm159, %v197, 0
    %vm224 = vcmask 1043456
    %v226 = vsel %vm224, %v217, 0
    %228 = vmatpush.msra.mxu0 0.0
    %229 = vmatpush.msra.mxu0 0.0
    %230 = vmatpush.msra.mxu0 0.0
    %231 = vmatpush.msra.mxu0 0.0
    %232 = vmatpush.msra.mxu0 0.0
    %233 = vmatpush.msra.mxu0 0.0
    %234 = vmatpush.msra.mxu0 0.0
    %235 = vmatpush.msra.mxu0 0.0
    %236 = vmatpush.msra.mxu0 0.0
    %237 = vmatpush.msra.mxu0 0.0
    %238 = vmatpush.msra.mxu0 0.0
    %239 = vmatpush.msra.mxu0 0.0
    %240 = vmatpush.msra.mxu0 0.0
    %241 = vmatpush.msra.mxu0 0.0
    %242 = vmatpush.msra.mxu0 0.0
    %243 = vmatpush.msra.mxu0 %v226
    %244 = vmatmul.f32.gmra.mxu0 %v219
    %v245 = vpop.f32.mrf.mxu0
    %v246 = vadd.f32 0.0, %v245
    %247 = vmatmul.f32.gmra.mxu0 %v222
    %v248 = vpop.f32.mrf.mxu0
    %v249 = vadd.f32 0.0, %v248
    %250 = vdwg.mxu0
    %253 = vrot.lane.b32.xlu0 %v112, 96
    %v254 = vpop.permute.xlu0 %253
    %255 = vrot.lane.b32.xlu0 %v115, 96
    %v256 = vpop.permute.xlu0 %255
    %v259 = vmul.f32 %v246, %v254
    %v260 = vmul.f32 %v249, %v256
    %v261 = vsel %vm55, %v259, 0.0
    %v262 = vrot.slane %v261, 4
    %v263 = vadd.f32 %v261, %v262
    %v264 = vrot.slane %v263, 2
    %v265 = vadd.f32 %v263, %v264
    %v266 = vrot.slane %v265, 1
    %v267 = vadd.f32 %v265, %v266
    %v268 = vsel %vm55, %v260, 0.0
    %v269 = vrot.slane %v268, 4
    %v270 = vadd.f32 %v268, %v269
    %v271 = vrot.slane %v270, 2
    %v272 = vadd.f32 %v270, %v271
    %v273 = vrot.slane %v272, 1
    %v274 = vadd.f32 %v272, %v273
    %v275 = vld [vmem:[%s6] sm:$0xff]
    %v276 = vld [vmem:[%s6 + $0x8] sm:$0xff]
    %v277 = vld [vmem:[%s6 + $0x10] sm:$0xff]
    %v278 = vld [vmem:[%s6 + $0x18] sm:$0xff]
    %v279 = vld [vmem:[%s7] sm:$0x1]
    %v281 = vperm.slane %v279, 0
    %vm285 = vcmask 1041409
    %v286 = vsel %vm285, %v274, %v267
    %v287 = vsel %vm55, %v286, 0
    %289 = vmatpush.msra.mxu0 0.0
    %290 = vmatpush.msra.mxu0 0.0
    %291 = vmatpush.msra.mxu0 0.0
    %292 = vmatpush.msra.mxu0 0.0
    %293 = vmatpush.msra.mxu0 0.0
    %294 = vmatpush.msra.mxu0 0.0
    %295 = vmatpush.msra.mxu0 0.0
    %296 = vmatpush.msra.mxu0 0.0
    %297 = vmatpush.msra.mxu0 0.0
    %298 = vmatpush.msra.mxu0 0.0
    %299 = vmatpush.msra.mxu0 0.0
    %300 = vmatpush.msra.mxu0 0.0
    %301 = vmatpush.msra.mxu0 %v278
    %302 = vmatpush.msra.mxu0 %v277
    %303 = vmatpush.msra.mxu0 %v276
    %304 = vmatpush.msra.mxu0 %v275
    %305 = vmatmul.f32.gmra.mxu0 %v287
    %v306 = vpop.f32.mrf.mxu0
    %v307 = vadd.f32 %v281, %v306
    %308 = vdwg.mxu0
    %309 = vst [vmem:[#allocation1] ss:$9 sm:$0xff] %v39
    %s310 = scalar_lea.vmem [#allocation1], 1
    %311 = vst [vmem:[%s310] ss:$9 sm:$0xff] %v40
    %v312 = vld [vmem:[#allocation1] sm:$0xff]
    %v314 = vadd.f32 %v307, %v312
    %v316 = vrot.slane %v314, 1
    %vm318 = vcmask 253952
    %319 = vst.msk [vmem:[#allocation2] sm:$0x1] %vm318, %v314
    %320 = vst.msk [vmem:[#allocation2 + $0x1] sm:$0x1] %vm318, %v316
    // Predicated region
    $region42: #{graph_attention_encoder.14} parent=1 // pred_check
      _
    $region43: #{graph_attention_encoder.14} parent=1 // pred_check_branch
      %322 = sbr.rel (0) target = $region45
    $region44: #{graph_attention_encoder.14} parent=1 // pred_region
      %324 = vsyncadd [#allocation3], 0
      %s325 = sshll.u32 [#allocation2], 4
      %s326 = int_to_ptr.vmem [resolvable:$true] %s325
      %s327 = sshll.u32 %s10, 4
      %s328 = int_to_ptr.hbm [resolvable:$true] %s327
      %333 = dma.vmem_to_hbm [thread:$0]  %s326, 32, %s328, [#allocation3], 16, 16, 1
    $region45: #{graph_attention_encoder.14} parent=1 // pred_fallthru
      _
    // Predicated region
    $region46: #{graph_attention_encoder.14} parent=1 // pred_check
      _
    $region47: #{graph_attention_encoder.14} parent=1 // pred_check_branch
      %335 = sbr.rel (0) target = $region49
    $region48: #{graph_attention_encoder.14} parent=1 // pred_region
      %337 = vsyncadd [#allocation5], 0
      %s338 = sshll.u32 [#allocation4], 4
      %s339 = int_to_ptr.vmem [resolvable:$true] %s338
      %s340 = sshll.u32 %s11, 4
      %s341 = int_to_ptr.hbm [resolvable:$true] %s340
      %346 = dma.vmem_to_hbm [thread:$0]  %s339, 32, %s341, [#allocation5], 16, 16, 1
    $region49: #{graph_attention_encoder.14} parent=1 // pred_fallthru
      _
    // Predicated region
    $region50: #{graph_attention_encoder.14} parent=1 // pred_check
      _
    $region51: #{graph_attention_encoder.14} parent=1 // pred_check_branch
      %348 = sbr.rel (0) target = $region53
    $region52: #{graph_attention_encoder.14} parent=1 // pred_region
      %350 = dma.done [#allocation3], 32
    $region53: #{graph_attention_encoder.14} parent=1 // pred_fallthru
      _
    // Predicated region
    $region54: #{graph_attention_encoder.14} parent=1 // pred_check
      _
    $region55: #{graph_attention_encoder.14} parent=1 // pred_check_branch
      %352 = sbr.rel (0) target = $region57
    $region56: #{graph_attention_encoder.14} parent=1 // pred_region
      %354 = dma.done [#allocation5], 32
    $region57: #{graph_attention_encoder.14} parent=1 // pred_fallthru
      _
    %355 = vsyncpa [#allocation3], 1
    %356 = vsyncpa [#allocation5], 1

// kernel: graph_attention_encoder.15
$region0: #{graph_attention_encoder.15}
  #allocation0 [shape = 'u32[]', space=smem, size = 0x4, offset = 0x4, fixed_abs, tag = 'smem constant byte address 0x4 - core index']
  #allocation1 [shape = 'u32[72,128]{1,0:T(1,128)}', space=vmem, size = 0x9000, scoped, tag = 'internal scratch']
  %s0 = inlined_call_operand.vmem [shape: f32[2,64,32], index: 0, kind: input, shape index: {}]
  %s1 = inlined_call_operand.vmem [shape: f32[1,32], index: 1, kind: input, shape index: {}]
  %s2 = inlined_call_operand.vmem [shape: f32[1,32], index: 2, kind: input, shape index: {}]
  %s3 = inlined_call_operand.hbm [shape: f32[2,64,32], index: 3, kind: output, shape index: {}]
  %s4 = sld [smem:[#allocation0]]
  $region22: #{graph_attention_encoder.15} parent=0
    _
  %s6 = ssub.s32 1, %s4
  %s7 = scalar_select 0, %s6, %s4
  $region1: #{graph_attention_encoder.15} parent=0
    #allocation2 [shape = 'u8[65536]{0}', space=vmem, size = 0x10000, scoped, tag = 'output window, operand 0, single buffered']
    #allocation3 [shape = 's32[1]{0}', space=sflag, size = 0x4, scoped, tag = 'scoped memory for graph_attention_encoder.15']
    %8 = vsyncpa [#allocation3], 0
    // Predicated region
    $region2: #{graph_attention_encoder.15} parent=1 // pred_check
      _
    $region3: #{graph_attention_encoder.15} parent=1 // pred_check_branch
      %10 = sbr.rel (0) target = $region5
    $region4: #{graph_attention_encoder.15} parent=1 // pred_region
      _
    $region5: #{graph_attention_encoder.15} parent=1 // pred_fallthru
      _
    // Predicated region
    $region6: #{graph_attention_encoder.15} parent=1 // pred_check
      _
    $region7: #{graph_attention_encoder.15} parent=1 // pred_check_branch
      %12 = sbr.rel (0) target = $region9
    $region8: #{graph_attention_encoder.15} parent=1 // pred_region
      _
    $region9: #{graph_attention_encoder.15} parent=1 // pred_fallthru
      _
    // Predicated region
    $region10: #{graph_attention_encoder.15} parent=1 // pred_check
      _
    $region11: #{graph_attention_encoder.15} parent=1 // pred_check_branch
      %14 = sbr.rel (0) target = $region13
    $region12: #{graph_attention_encoder.15} parent=1 // pred_region
      _
    $region13: #{graph_attention_encoder.15} parent=1 // pred_fallthru
      _
    %v15 = vld [vmem:[%s1] sm:$0x1]
    %v16 = vld [vmem:[%s2] sm:$0x1]
    %v17 = vld [vmem:[%s0] sm:$0xff]
    %v18 = vld [vmem:[%s0 + $0x8] sm:$0xff]
    %v19 = vld [vmem:[%s0 + $0x10] sm:$0xff]
    %v20 = vld [vmem:[%s0 + $0x18] sm:$0xff]
    %v21 = vld [vmem:[%s0 + $0x20] sm:$0xff]
    %v22 = vld [vmem:[%s0 + $0x28] sm:$0xff]
    %v23 = vld [vmem:[%s0 + $0x30] sm:$0xff]
    %v24 = vld [vmem:[%s0 + $0x38] sm:$0xff]
    %v25 = vld [vmem:[%s0 + $0x40] sm:$0xff]
    %v26 = vld [vmem:[%s0 + $0x48] sm:$0xff]
    %v27 = vld [vmem:[%s0 + $0x50] sm:$0xff]
    %v28 = vld [vmem:[%s0 + $0x58] sm:$0xff]
    %v29 = vld [vmem:[%s0 + $0x60] sm:$0xff]
    %v30 = vld [vmem:[%s0 + $0x68] sm:$0xff]
    %v31 = vld [vmem:[%s0 + $0x70] sm:$0xff]
    %v32 = vld [vmem:[%s0 + $0x78] sm:$0xff]
    %v34 = vperm.slane %v15, 0
    %v36 = vmul.f32 %v17, %v34
    %v37 = vmul.f32 %v18, %v34
    %v38 = vmul.f32 %v19, %v34
    %v39 = vmul.f32 %v20, %v34
    %v40 = vmul.f32 %v21, %v34
    %v41 = vmul.f32 %v22, %v34
    %v42 = vmul.f32 %v23, %v34
    %v43 = vmul.f32 %v24, %v34
    %v44 = vmul.f32 %v25, %v34
    %v45 = vmul.f32 %v26, %v34
    %v46 = vmul.f32 %v27, %v34
    %v47 = vmul.f32 %v28, %v34
    %v48 = vmul.f32 %v29, %v34
    %v49 = vmul.f32 %v30, %v34
    %v50 = vmul.f32 %v31, %v34
    %v51 = vmul.f32 %v32, %v34
    %v53 = vperm.slane %v16, 0
    %v55 = vadd.f32 %v36, %v53
    %v56 = vadd.f32 %v37, %v53
    %v57 = vadd.f32 %v38, %v53
    %v58 = vadd.f32 %v39, %v53
    %v59 = vadd.f32 %v40, %v53
    %v60 = vadd.f32 %v41, %v53
    %v61 = vadd.f32 %v42, %v53
    %v62 = vadd.f32 %v43, %v53
    %v63 = vadd.f32 %v44, %v53
    %v64 = vadd.f32 %v45, %v53
    %v65 = vadd.f32 %v46, %v53
    %v66 = vadd.f32 %v47, %v53
    %v67 = vadd.f32 %v48, %v53
    %v68 = vadd.f32 %v49, %v53
    %v69 = vadd.f32 %v50, %v53
    %v70 = vadd.f32 %v51, %v53
    %vm71 = vcmask 261120
    %72 = vst.msk [vmem:[#allocation2] sm:$0xff] %vm71, %v55
    %73 = vst.msk [vmem:[#allocation2 + $0x8] sm:$0xff] %vm71, %v56
    %74 = vst.msk [vmem:[#allocation2 + $0x10] sm:$0xff] %vm71, %v57
    %75 = vst.msk [vmem:[#allocation2 + $0x18] sm:$0xff] %vm71, %v58
    %76 = vst.msk [vmem:[#allocation2 + $0x20] sm:$0xff] %vm71, %v59
    %77 = vst.msk [vmem:[#allocation2 + $0x28] sm:$0xff] %vm71, %v60
    %78 = vst.msk [vmem:[#allocation2 + $0x30] sm:$0xff] %vm71, %v61
    %79 = vst.msk [vmem:[#allocation2 + $0x38] sm:$0xff] %vm71, %v62
    %80 = vst.msk [vmem:[#allocation2 + $0x40] sm:$0xff] %vm71, %v63
    %81 = vst.msk [vmem:[#allocation2 + $0x48] sm:$0xff] %vm71, %v64
    %82 = vst.msk [vmem:[#allocation2 + $0x50] sm:$0xff] %vm71, %v65
    %83 = vst.msk [vmem:[#allocation2 + $0x58] sm:$0xff] %vm71, %v66
    %84 = vst.msk [vmem:[#allocation2 + $0x60] sm:$0xff] %vm71, %v67
    %85 = vst.msk [vmem:[#allocation2 + $0x68] sm:$0xff] %vm71, %v68
    %86 = vst.msk [vmem:[#allocation2 + $0x70] sm:$0xff] %vm71, %v69
    %87 = vst.msk [vmem:[#allocation2 + $0x78] sm:$0xff] %vm71, %v70
    // Predicated region
    $region14: #{graph_attention_encoder.15} parent=1 // pred_check
      _
    $region15: #{graph_attention_encoder.15} parent=1 // pred_check_branch
      %89 = sbr.rel (0) target = $region17
    $region16: #{graph_attention_encoder.15} parent=1 // pred_region
      %91 = vsyncadd [#allocation3], 0
      %s92 = sshll.u32 [#allocation2], 4
      %s93 = int_to_ptr.vmem [resolvable:$true] %s92
      %s94 = sshll.u32 %s3, 4
      %s95 = int_to_ptr.hbm [resolvable:$true] %s94
      %100 = dma.vmem_to_hbm [thread:$0]  %s93, 2048, %s95, [#allocation3], 128, 128, 8
    $region17: #{graph_attention_encoder.15} parent=1 // pred_fallthru
      _
    // Predicated region
    $region18: #{graph_attention_encoder.15} parent=1 // pred_check
      _
    $region19: #{graph_attention_encoder.15} parent=1 // pred_check_branch
      %102 = sbr.rel (0) target = $region21
    $region20: #{graph_attention_encoder.15} parent=1 // pred_region
      %104 = dma.done [#allocation3], 2048
    $region21: #{graph_attention_encoder.15} parent=1 // pred_fallthru
      _
    %105 = vsyncpa [#allocation3], 1

// kernel: graph_attention_encoder.12
$region0: #{graph_attention_encoder.12}
  #allocation0 [shape = 'u32[]', space=smem, size = 0x4, offset = 0x4, fixed_abs, tag = 'smem constant byte address 0x4 - core index']
  #allocation1 [shape = 'u32[72,128]{1,0:T(1,128)}', space=vmem, size = 0x9000, scoped, tag = 'internal scratch']
  %s0 = inlined_call_operand.vmem [shape: f32[2,8,32], index: 0, kind: input, shape index: {}]
  %s1 = inlined_call_operand.vmem [shape: f32[2,8,8], index: 1, kind: input, shape index: {}]
  %s2 = inlined_call_operand.vmem [shape: f32[2,8,8,32], index: 2, kind: input, shape index: {}]
  %s3 = inlined_call_operand.vmem [shape: f32[32,32], index: 3, kind: input, shape index: {}]
  %s4 = inlined_call_operand.vmem [shape: f32[1,32], index: 4, kind: input, shape index: {}]
  %s5 = inlined_call_operand.vmem [shape: f32[32,8], index: 5, kind: input, shape index: {}]
  %s6 = inlined_call_operand.vmem [shape: f32[32,4], index: 6, kind: input, shape index: {}]
  %s7 = inlined_call_operand.vmem [shape: f32[1,4], index: 7, kind: input, shape index: {}]
  %s8 = inlined_call_operand.vmem [shape: f32[1,32], index: 8, kind: input, shape index: {}]
  %s9 = inlined_call_operand.vmem [shape: f32[1,32], index: 9, kind: input, shape index: {}]
  %s10 = inlined_call_operand.vmem [shape: f32[2,8,32], index: 10, kind: output, shape index: {0}]
  %s11 = inlined_call_operand.vmem [shape: f32[1,1,32], index: 11, kind: output, shape index: {1}]
  %s12 = inlined_call_operand.vmem [shape: f32[1,1,32], index: 12, kind: output, shape index: {2}]
  %13 = xla_tuple %s10, %s11, %s12
  %s14 = sld [smem:[#allocation0]]
  $region66: #{graph_attention_encoder.12} parent=0
    _
  %s16 = ssub.s32 1, %s14
  %s17 = scalar_select 0, %s16, %s14
  // Predicated region
  $region2: #{graph_attention_encoder.12} parent=0 // pred_check
    _
  $region3: #{graph_attention_encoder.12} parent=0 // pred_check_branch
    %19 = sbr.rel (0) target = $region5
  $region4: #{graph_attention_encoder.12} parent=0 // pred_region
    _
  $region5: #{graph_attention_encoder.12} parent=0 // pred_fallthru
    _
  // Predicated region
  $region6: #{graph_attention_encoder.12} parent=0 // pred_check
    _
  $region7: #{graph_attention_encoder.12} parent=0 // pred_check_branch
    %21 = sbr.rel (0) target = $region9
  $region8: #{graph_attention_encoder.12} parent=0 // pred_region
    _
  $region9: #{graph_attention_encoder.12} parent=0 // pred_fallthru
    _
  // Predicated region
  $region10: #{graph_attention_encoder.12} parent=0 // pred_check
    _
  $region11: #{graph_attention_encoder.12} parent=0 // pred_check_branch
    %23 = sbr.rel (0) target = $region13
  $region12: #{graph_attention_encoder.12} parent=0 // pred_region
    _
  $region13: #{graph_attention_encoder.12} parent=0 // pred_fallthru
    _
  // Predicated region
  $region14: #{graph_attention_encoder.12} parent=0 // pred_check
    _
  $region15: #{graph_attention_encoder.12} parent=0 // pred_check_branch
    %25 = sbr.rel (0) target = $region17
  $region16: #{graph_attention_encoder.12} parent=0 // pred_region
    _
  $region17: #{graph_attention_encoder.12} parent=0 // pred_fallthru
    _
  // Predicated region
  $region18: #{graph_attention_encoder.12} parent=0 // pred_check
    _
  $region19: #{graph_attention_encoder.12} parent=0 // pred_check_branch
    %27 = sbr.rel (0) target = $region21
  $region20: #{graph_attention_encoder.12} parent=0 // pred_region
    _
  $region21: #{graph_attention_encoder.12} parent=0 // pred_fallthru
    _
  // Predicated region
  $region22: #{graph_attention_encoder.12} parent=0 // pred_check
    _
  $region23: #{graph_attention_encoder.12} parent=0 // pred_check_branch
    %29 = sbr.rel (0) target = $region25
  $region24: #{graph_attention_encoder.12} parent=0 // pred_region
    _
  $region25: #{graph_attention_encoder.12} parent=0 // pred_fallthru
    _
  // Predicated region
  $region26: #{graph_attention_encoder.12} parent=0 // pred_check
    _
  $region27: #{graph_attention_encoder.12} parent=0 // pred_check_branch
    %31 = sbr.rel (0) target = $region29
  $region28: #{graph_attention_encoder.12} parent=0 // pred_region
    _
  $region29: #{graph_attention_encoder.12} parent=0 // pred_fallthru
    _
  // Predicated region
  $region30: #{graph_attention_encoder.12} parent=0 // pred_check
    _
  $region31: #{graph_attention_encoder.12} parent=0 // pred_check_branch
    %33 = sbr.rel (0) target = $region33
  $region32: #{graph_attention_encoder.12} parent=0 // pred_region
    _
  $region33: #{graph_attention_encoder.12} parent=0 // pred_fallthru
    _
  // Predicated region
  $region34: #{graph_attention_encoder.12} parent=0 // pred_check
    _
  $region35: #{graph_attention_encoder.12} parent=0 // pred_check_branch
    %35 = sbr.rel (0) target = $region37
  $region36: #{graph_attention_encoder.12} parent=0 // pred_region
    _
  $region37: #{graph_attention_encoder.12} parent=0 // pred_fallthru
    _
  // Predicated region
  $region38: #{graph_attention_encoder.12} parent=0 // pred_check
    _
  $region39: #{graph_attention_encoder.12} parent=0 // pred_check_branch
    %37 = sbr.rel (0) target = $region41
  $region40: #{graph_attention_encoder.12} parent=0 // pred_region
    _
  $region41: #{graph_attention_encoder.12} parent=0 // pred_fallthru
    _
  %v38 = vld [vmem:[%s0] sm:$0xff]
  %v39 = vld [vmem:[%s0 + $0x8] sm:$0xff]
  %v40 = vld [vmem:[%s3] sm:$0xff]
  %v41 = vld [vmem:[%s3 + $0x8] sm:$0xff]
  %v42 = vld [vmem:[%s3 + $0x10] sm:$0xff]
  %v43 = vld [vmem:[%s3 + $0x18] sm:$0xff]
  %v44 = vld [vmem:[%s4] sm:$0x1]
  %v46 = vperm.slane %v44, 0
  %vm48 = vcmask 261120
  %v50 = vsel %vm48, %v38, 0
  %v53 = vsel %vm48, %v39, 0
  %55 = vmatpush.msra.mxu0 0.0
  %56 = vmatpush.msra.mxu0 0.0
  %57 = vmatpush.msra.mxu0 0.0
  %58 = vmatpush.msra.mxu0 0.0
  %59 = vmatpush.msra.mxu0 0.0
  %60 = vmatpush.msra.mxu0 0.0
  %61 = vmatpush.msra.mxu0 0.0
  %62 = vmatpush.msra.mxu0 0.0
  %63 = vmatpush.msra.mxu0 0.0
  %64 = vmatpush.msra.mxu0 0.0
  %65 = vmatpush.msra.mxu0 0.0
  %66 = vmatpush.msra.mxu0 0.0
  %67 = vmatpush.msra.mxu0 %v43
  %68 = vmatpush.msra.mxu0 %v42
  %69 = vmatpush.msra.mxu0 %v41
  %70 = vmatpush.msra.mxu0 %v40
  %71 = vmatmul.f32.gmra.mxu0 %v50
  %v72 = vpop.f32.mrf.mxu0
  %v73 = vadd.f32 %v46, %v72
  %74 = vmatmul.f32.gmra.mxu0 %v53
  %v75 = vpop.f32.mrf.mxu0
  %v76 = vadd.f32 %v46, %v75
  %77 = vdwg.mxu0
  %v78 = vld [vmem:[%s5] sm:$0xff]
  %v79 = vld [vmem:[%s5 + $0x8] sm:$0xff]
  %v80 = vld [vmem:[%s5 + $0x10] sm:$0xff]
  %v81 = vld [vmem:[%s5 + $0x18] sm:$0xff]
  %v83 = vsel %vm48, %v73, 0
  %v86 = vsel %vm48, %v76, 0
  %88 = vmatpush.msra.mxu0 0.0
  %89 = vmatpush.msra.mxu0 0.0
  %90 = vmatpush.msra.mxu0 0.0
  %91 = vmatpush.msra.mxu0 0.0
  %92 = vmatpush.msra.mxu0 0.0
  %93 = vmatpush.msra.mxu0 0.0
  %94 = vmatpush.msra.mxu0 0.0
  %95 = vmatpush.msra.mxu0 0.0
  %96 = vmatpush.msra.mxu0 0.0
  %97 = vmatpush.msra.mxu0 0.0
  %98 = vmatpush.msra.mxu0 0.0
  %99 = vmatpush.msra.mxu0 0.0
  %100 = vmatpush.msra.mxu0 %v81
  %101 = vmatpush.msra.mxu0 %v80
  %102 = vmatpush.msra.mxu0 %v79
  %103 = vmatpush.msra.mxu0 %v78
  %104 = vmatmul.f32.gmra.mxu0 %v83
  %v105 = vpop.f32.mrf.mxu0
  %v106 = vadd.f32 0.0, %v105
  %107 = vmatmul.f32.gmra.mxu0 %v86
  %v108 = vpop.f32.mrf.mxu0
  %v109 = vadd.f32 0.0, %v108
  %110 = vdwg.mxu0
  %v111 = vld [vmem:[%s2] sm:$0xff]
  %v112 = vld [vmem:[%s2 + $0x8] sm:$0xff]
  %v113 = vld [vmem:[%s2 + $0x10] sm:$0xff]
  %v114 = vld [vmem:[%s2 + $0x18] sm:$0xff]
  %v115 = vld [vmem:[%s2 + $0x20] sm:$0xff]
  %v116 = vld [vmem:[%s2 + $0x28] sm:$0xff]
  %v117 = vld [vmem:[%s2 + $0x30] sm:$0xff]
  %v118 = vld [vmem:[%s2 + $0x38] sm:$0xff]
  %v119 = vld [vmem:[%s2 + $0x40] sm:$0xff]
  %v120 = vld [vmem:[%s2 + $0x48] sm:$0xff]
  %v121 = vld [vmem:[%s2 + $0x50] sm:$0xff]
  %v122 = vld [vmem:[%s2 + $0x58] sm:$0xff]
  %v123 = vld [vmem:[%s2 + $0x60] sm:$0xff]
  %v124 = vld [vmem:[%s2 + $0x68] sm:$0xff]
  %v125 = vld [vmem:[%s2 + $0x70] sm:$0xff]
  %v126 = vld [vmem:[%s2 + $0x78] sm:$0xff]
  %v127 = vld [vmem:[%s6] sm:$0xff]
  %v128 = vld [vmem:[%s6 + $0x8] sm:$0xff]
  %v129 = vld [vmem:[%s6 + $0x10] sm:$0xff]
  %v130 = vld [vmem:[%s6 + $0x18] sm:$0xff]
  %v131 = vld [vmem:[%s7] sm:$0x1]
  %v133 = vperm.slane %v131, 0
  %v136 = vsel %vm48, %v111, 0
  %v139 = vsel %vm48, %v112, 0
  %v142 = vsel %vm48, %v113, 0
  %v145 = vsel %vm48, %v114, 0
  %v148 = vsel %vm48, %v115, 0
  %v151 = vsel %vm48, %v116, 0
  %v154 = vsel %vm48, %v117, 0
  %v157 = vsel %vm48, %v118, 0
  %v160 = vsel %vm48, %v119, 0
  %v163 = vsel %vm48, %v120, 0
  %v166 = vsel %vm48, %v121, 0
  %v169 = vsel %vm48, %v122, 0
  %v172 = vsel %vm48, %v123, 0
  %v175 = vsel %vm48, %v124, 0
  %v178 = vsel %vm48, %v125, 0
  %v181 = vsel %vm48, %v126, 0
  %183 = vmatpush.msra.mxu0 0.0
  %184 = vmatpush.msra.mxu0 0.0
  %185 = vmatpush.msra.mxu0 0.0
  %186 = vmatpush.msra.mxu0 0.0
  %187 = vmatpush.msra.mxu0 0.0
  %188 = vmatpush.msra.mxu0 0.0
  %189 = vmatpush.msra.mxu0 0.0
  %190 = vmatpush.msra.mxu0 0.0
  %191 = vmatpush.msra.mxu0 0.0
  %192 = vmatpush.msra.mxu0 0.0
  %193 = vmatpush.msra.mxu0 0.0
  %194 = vmatpush.msra.mxu0 0.0
  %195 = vmatpush.msra.mxu0 %v130
  %196 = vmatpush.msra.mxu0 %v129
  %197 = vmatpush.msra.mxu0 %v128
  %198 = vmatpush.msra.mxu0 %v127
  %199 = vmatmul.f32.gmra.mxu0 %v136
  %v200 = vpop.f32.mrf.mxu0
  %v201 = vadd.f32 %v133, %v200
  %202 = vmatmul.f32.gmra.mxu0 %v139
  %v203 = vpop.f32.mrf.mxu0
  %v204 = vadd.f32 %v133, %v203
  %205 = vmatmul.f32.gmra.mxu0 %v142
  %v206 = vpop.f32.mrf.mxu0
  %v207 = vadd.f32 %v133, %v206
  %208 = vmatmul.f32.gmra.mxu0 %v145
  %v209 = vpop.f32.mrf.mxu0
  %v210 = vadd.f32 %v133, %v209
  %211 = vmatmul.f32.gmra.mxu0 %v148
  %v212 = vpop.f32.mrf.mxu0
  %v213 = vadd.f32 %v133, %v212
  %214 = vmatmul.f32.gmra.mxu0 %v151
  %v215 = vpop.f32.mrf.mxu0
  %v216 = vadd.f32 %v133, %v215
  %217 = vmatmul.f32.gmra.mxu0 %v154
  %v218 = vpop.f32.mrf.mxu0
  %v219 = vadd.f32 %v133, %v218
  %220 = vmatmul.f32.gmra.mxu0 %v157
  %v221 = vpop.f32.mrf.mxu0
  %v222 = vadd.f32 %v133, %v221
  %223 = vmatmul.f32.gmra.mxu0 %v160
  %v224 = vpop.f32.mrf.mxu0
  %v225 = vadd.f32 %v133, %v224
  %226 = vmatmul.f32.gmra.mxu0 %v163
  %v227 = vpop.f32.mrf.mxu0
  %v228 = vadd.f32 %v133, %v227
  %229 = vmatmul.f32.gmra.mxu0 %v166
  %v230 = vpop.f32.mrf.mxu0
  %v231 = vadd.f32 %v133, %v230
  %232 = vmatmul.f32.gmra.mxu0 %v169
  %v233 = vpop.f32.mrf.mxu0
  %v234 = vadd.f32 %v133, %v233
  %235 = vmatmul.f32.gmra.mxu0 %v172
  %v236 = vpop.f32.mrf.mxu0
  %v237 = vadd.f32 %v133, %v236
  %238 = vmatmul.f32.gmra.mxu0 %v175
  %v239 = vpop.f32.mrf.mxu0
  %v240 = vadd.f32 %v133, %v239
  %241 = vmatmul.f32.gmra.mxu0 %v178
  %v242 = vpop.f32.mrf.mxu0
  %v243 = vadd.f32 %v133, %v242
  %244 = vmatmul.f32.gmra.mxu0 %v181
  %v245 = vpop.f32.mrf.mxu0
  %v246 = vadd.f32 %v133, %v245
  %247 = vdwg.mxu0
  %v248 = vld [vmem:[%s1] sm:$0xff]
  %v249 = vld [vmem:[%s1 + $0x8] sm:$0xff]
  %vm250 = vcmp.eq.f32.partialorder %v248, 0.0
  %vm251 = vcmp.eq.f32.partialorder %v249, 0.0
  %253 = vset.pattern.permute.xlu0 0
  %254 = vperm.xlu0 %253, %v106
  %v255 = vpop.permute.xlu0 %254
  %258 = vset.pattern.permute.xlu0 0
  %259 = vperm.xlu0 %258, %v109
  %v260 = vpop.permute.xlu0 %259
  %262 = vset.pattern.permute.xlu0 4
  %263 = vperm.xlu0 %262, %v106
  %v264 = vpop.permute.xlu0 %263
  %265 = vset.pattern.permute.xlu0 4
  %266 = vperm.xlu0 %265, %v109
  %v267 = vpop.permute.xlu0 %266
  %v268 = vlaneseq
  %v269 = vand.u32 %v268, 127
  %v270 = vperm.slane %v264, %v269
  %v271 = vperm.slane %v267, %v269
  %vm272 = vcmask 1041409
  %vm273 = vcmask 1042434
  %v274 = vsel %vm273, %v270, %v270
  %vm275 = vcmask 1043459
  %v276 = vsel %vm275, %v270, %v274
  %vm277 = vcmask 1044484
  %v278 = vsel %vm277, %v270, %v276
  %vm279 = vcmask 1045509
  %v280 = vsel %vm279, %v270, %v278
  %vm281 = vcmask 1046534
  %v282 = vsel %vm281, %v270, %v280
  %vm283 = vcmask 1047559
  %v284 = vsel %vm283, %v270, %v282
  %v285 = vsel %vm273, %v271, %v271
  %v286 = vsel %vm275, %v271, %v285
  %v287 = vsel %vm277, %v271, %v286
  %v288 = vsel %vm279, %v271, %v287
  %v289 = vsel %vm281, %v271, %v288
  %v290 = vsel %vm283, %v271, %v289
  %v293 = vadd.f32 %v255, %v284
  %v294 = vadd.f32 %v260, %v290
  %311 = vset.pattern.permute.xlu0 0
  %312 = vperm.xlu0 %311, %v201
  %v313 = vpop.permute.xlu0 %312
  %314 = vset.pattern.permute.xlu0 0
  %315 = vperm.xlu0 %314, %v204
  %v316 = vpop.permute.xlu0 %315
  %317 = vset.pattern.permute.xlu0 0
  %318 = vperm.xlu0 %317, %v207
  %v319 = vpop.permute.xlu0 %318
  %320 = vset.pattern.permute.xlu0 0
  %321 = vperm.xlu0 %320, %v210
  %v322 = vpop.permute.xlu0 %321
  %323 = vset.pattern.permute.xlu0 0
  %324 = vperm.xlu0 %323, %v213
  %v325 = vpop.permute.xlu0 %324
  %326 = vset.pattern.permute.xlu0 0
  %327 = vperm.xlu0 %326, %v216
  %v328 = vpop.permute.xlu0 %327
  %329 = vset.pattern.permute.xlu0 0
  %330 = vperm.xlu0 %329, %v219
  %v331 = vpop.permute.xlu0 %330
  %332 = vset.pattern.permute.xlu0 0
  %333 = vperm.xlu0 %332, %v222
  %v334 = vpop.permute.xlu0 %333
  %335 = vset.pattern.permute.xlu0 0
  %336 = vperm.xlu0 %335, %v225
  %v337 = vpop.permute.xlu0 %336
  %338 = vset.pattern.permute.xlu0 0
  %339 = vperm.xlu0 %338, %v228
  %v340 = vpop.permute.xlu0 %339
  %341 = vset.pattern.permute.xlu0 0
  %342 = vperm.xlu0 %341, %v231
  %v343 = vpop.permute.xlu0 %342
  %344 = vset.pattern.permute.xlu0 0
  %345 = vperm.xlu0 %344, %v234
  %v346 = vpop.permute.xlu0 %345
  %347 = vset.pattern.permute.xlu0 0
  %348 = vperm.xlu0 %347, %v237
  %v349 = vpop.permute.xlu0 %348
  %350 = vset.pattern.permute.xlu0 0
  %351 = vperm.xlu0 %350, %v240
  %v352 = vpop.permute.xlu0 %351
  %353 = vset.pattern.permute.xlu0 0
  %354 = vperm.xlu0 %353, %v243
  %v355 = vpop.permute.xlu0 %354
  %356 = vset.pattern.permute.xlu0 0
  %357 = vperm.xlu0 %356, %v246
  %v358 = vpop.permute.xlu0 %357
  %v359 = vperm.slane %v313, %v269
  %v360 = vperm.slane %v316, %v269
  %v361 = vperm.slane %v319, %v269
  %v362 = vperm.slane %v322, %v269
  %v363 = vperm.slane %v325, %v269
  %v364 = vperm.slane %v328, %v269
  %v365 = vperm.slane %v331, %v269
  %v366 = vperm.slane %v334, %v269
  %v367 = vperm.slane %v337, %v269
  %v368 = vperm.slane %v340, %v269
  %v369 = vperm.slane %v343, %v269
  %v370 = vperm.slane %v346, %v269
  %v371 = vperm.slane %v349, %v269
  %v372 = vperm.slane %v352, %v269
  %v373 = vperm.slane %v355, %v269
  %v374 = vperm.slane %v358, %v269
  %v375 = vsel %vm272, %v360, %v359
  %v376 = vsel %vm273, %v361, %v375
  %v377 = vsel %vm275, %v362, %v376
  %v378 = vsel %vm277, %v363, %v377
  %v379 = vsel %vm279, %v364, %v378
  %v380 = vsel %vm281, %v365, %v379
  %v381 = vsel %vm283, %v366, %v380
  %v382 = vsel %vm272, %v368, %v367
  %v383 = vsel %vm273, %v369, %v382
  %v384 = vsel %vm275, %v370, %v383
  %v385 = vsel %vm277, %v371, %v384
  %v386 = vsel %vm279, %v372, %v385
  %v387 = vsel %vm281, %v373, %v386
  %v388 = vsel %vm283, %v374, %v387
  %v391 = vadd.f32 %v293, %v381
  %v392 = vadd.f32 %v294, %v388
  %vm393 = vcmp.ge.f32.partialorder %v391, 0.0
  %vm394 = vcmp.ge.f32.partialorder %v392, 0.0
  %v395 = vmul.f32 %v391, 0.2
  %v396 = vmul.f32 %v392, 0.2
  %v397 = vsel %vm393, %v391, %v395
  %v398 = vsel %vm394, %v392, %v396
  %v399 = vsel %vm250, -1e+30, %v397
  %v400 = vsel %vm251, -1e+30, %v398
  %vm401 = vcmask 64512
  %v402 = vsel %vm401, %v399, -inf
  %403 = vmax.xlane.f32.xlu0 %v402
  %v404 = vpop.xlane.xlu0 %403
  %v405 = vsel %vm401, %v400, -inf
  %406 = vmax.xlane.f32.xlu0 %v405
  %v407 = vpop.xlane.xlu0 %406
  %v408 = vsub.f32 %v399, %v404
  %v409 = vsub.f32 %v400, %v407
  %v410 = vmul.f32 %v408, 1.442695
  %v411 = vpow.pop %v410
  %v412 = vmul.f32 %v409, 1.442695
  %v413 = vpow.pop %v412
  %v414 = vsel %vm401, %v411, 0.0
  %415 = vadd.xlane.f32.xlu0 %v414
  %v416 = vpop.xlane.xlu0 %415
  %v417 = vsel %vm401, %v413, 0.0
  %418 = vadd.xlane.f32.xlu0 %v417
  %v419 = vpop.xlane.xlu0 %418
  %v420 = vrcp.pop %v416
  %v421 = vrcp.pop %v419
  %v422 = vmul.f32 %v411, %v420
  %v423 = vmul.f32 %v413, %v421
  %v425 = vsel %vm401, %v422, 0
  %427 = vmatpush.msra.mxu0 0.0
  %428 = vmatpush.msra.mxu0 0.0
  %429 = vmatpush.msra.mxu0 0.0
  %430 = vmatpush.msra.mxu0 0.0
  %431 = vmatpush.msra.mxu0 0.0
  %432 = vmatpush.msra.mxu0 0.0
  %433 = vmatpush.msra.mxu0 0.0
  %434 = vmatpush.msra.mxu0 0.0
  %435 = vmatpush.msra.mxu0 0.0
  %436 = vmatpush.msra.mxu0 0.0
  %437 = vmatpush.msra.mxu0 0.0
  %438 = vmatpush.msra.mxu0 0.0
  %439 = vmatpush.msra.mxu0 0.0
  %440 = vmatpush.msra.mxu0 0.0
  %441 = vmatpush.msra.mxu0 0.0
  %442 = vmatpush.msra.mxu0 %v73
  %443 = vmatmul.f32.gmra.mxu0 %v425
  %v444 = vpop.f32.mrf.mxu0
  %v445 = vadd.f32 0.0, %v444
  %446 = vdwg.mxu0
  %v448 = vsel %vm401, %v423, 0
  %450 = vmatpush.msra.mxu0 0.0
  %451 = vmatpush.msra.mxu0 0.0
  %452 = vmatpush.msra.mxu0 0.0
  %453 = vmatpush.msra.mxu0 0.0
  %454 = vmatpush.msra.mxu0 0.0
  %455 = vmatpush.msra.mxu0 0.0
  %456 = vmatpush.msra.mxu0 0.0
  %457 = vmatpush.msra.mxu0 0.0
  %458 = vmatpush.msra.mxu0 0.0
  %459 = vmatpush.msra.mxu0 0.0
  %460 = vmatpush.msra.mxu0 0.0
  %461 = vmatpush.msra.mxu0 0.0
  %462 = vmatpush.msra.mxu0 0.0
  %463 = vmatpush.msra.mxu0 0.0
  %464 = vmatpush.msra.mxu0 0.0
  %465 = vmatpush.msra.mxu0 %v76
  %466 = vmatmul.f32.gmra.mxu0 %v448
  %v467 = vpop.f32.mrf.mxu0
  %v468 = vadd.f32 0.0, %v467
  %469 = vdwg.mxu0
  %470 = vset.pattern.permute.xlu0 1
  %471 = vperm.xlu0 %470, %v106
  %v472 = vpop.permute.xlu0 %471
  %474 = vset.pattern.permute.xlu0 1
  %475 = vperm.xlu0 %474, %v109
  %v476 = vpop.permute.xlu0 %475
  %478 = vset.pattern.permute.xlu0 5
  %479 = vperm.xlu0 %478, %v106
  %v480 = vpop.permute.xlu0 %479
  %481 = vset.pattern.permute.xlu0 5
  %482 = vperm.xlu0 %481, %v109
  %v483 = vpop.permute.xlu0 %482
  %v484 = vperm.slane %v480, %v269
  %v485 = vperm.slane %v483, %v269
  %v486 = vsel %vm273, %v484, %v484
  %v487 = vsel %vm275, %v484, %v486
  %v488 = vsel %vm277, %v484, %v487
  %v489 = vsel %vm279, %v484, %v488
  %v490 = vsel %vm281, %v484, %v489
  %v491 = vsel %vm283, %v484, %v490
  %v492 = vsel %vm273, %v485, %v485
  %v493 = vsel %vm275, %v485, %v492
  %v494 = vsel %vm277, %v485, %v493
  %v495 = vsel %vm279, %v485, %v494
  %v496 = vsel %vm281, %v485, %v495
  %v497 = vsel %vm283, %v485, %v496
  %v500 = vadd.f32 %v472, %v491
  %v501 = vadd.f32 %v476, %v497
  %502 = vset.pattern.permute.xlu0 1
  %503 = vperm.xlu0 %502, %v201
  %v504 = vpop.permute.xlu0 %503
  %505 = vset.pattern.permute.xlu0 1
  %506 = vperm.xlu0 %505, %v204
  %v507 = vpop.permute.xlu0 %506
  %508 = vset.pattern.permute.xlu0 1
  %509 = vperm.xlu0 %508, %v207
  %v510 = vpop.permute.xlu0 %509
  %511 = vset.pattern.permute.xlu0 1
  %512 = vperm.xlu0 %511, %v210
  %v513 = vpop.permute.xlu0 %512
  %514 = vset.pattern.permute.xlu0 1
  %515 = vperm.xlu0 %514, %v213
  %v516 = vpop.permute.xlu0 %515
  %517 = vset.pattern.permute.xlu0 1
  %518 = vperm.xlu0 %517, %v216
  %v519 = vpop.permute.xlu0 %518
  %520 = vset.pattern.permute.xlu0 1
  %521 = vperm.xlu0 %520, %v219
  %v522 = vpop.permute.xlu0 %521
  %523 = vset.pattern.permute.xlu0 1
  %524 = vperm.xlu0 %523, %v222
  %v525 = vpop.permute.xlu0 %524
  %526 = vset.pattern.permute.xlu0 1
  %527 = vperm.xlu0 %526, %v225
  %v528 = vpop.permute.xlu0 %527
  %529 = vset.pattern.permute.xlu0 1
  %530 = vperm.xlu0 %529, %v228
  %v531 = vpop.permute.xlu0 %530
  %532 = vset.pattern.permute.xlu0 1
  %533 = vperm.xlu0 %532, %v231
  %v534 = vpop.permute.xlu0 %533
  %535 = vset.pattern.permute.xlu0 1
  %536 = vperm.xlu0 %535, %v234
  %v537 = vpop.permute.xlu0 %536
  %538 = vset.pattern.permute.xlu0 1
  %539 = vperm.xlu0 %538, %v237
  %v540 = vpop.permute.xlu0 %539
  %541 = vset.pattern.permute.xlu0 1
  %542 = vperm.xlu0 %541, %v240
  %v543 = vpop.permute.xlu0 %542
  %544 = vset.pattern.permute.xlu0 1
  %545 = vperm.xlu0 %544, %v243
  %v546 = vpop.permute.xlu0 %545
  %547 = vset.pattern.permute.xlu0 1
  %548 = vperm.xlu0 %547, %v246
  %v549 = vpop.permute.xlu0 %548
  %v550 = vperm.slane %v504, %v269
  %v551 = vperm.slane %v507, %v269
  %v552 = vperm.slane %v510, %v269
  %v553 = vperm.slane %v513, %v269
  %v554 = vperm.slane %v516, %v269
  %v555 = vperm.slane %v519, %v269
  %v556 = vperm.slane %v522, %v269
  %v557 = vperm.slane %v525, %v269
  %v558 = vperm.slane %v528, %v269
  %v559 = vperm.slane %v531, %v269
  %v560 = vperm.slane %v534, %v269
  %v561 = vperm.slane %v537, %v269
  %v562 = vperm.slane %v540, %v269
  %v563 = vperm.slane %v543, %v269
  %v564 = vperm.slane %v546, %v269
  %v565 = vperm.slane %v549, %v269
  %v566 = vsel %vm272, %v551, %v550
  %v567 = vsel %vm273, %v552, %v566
  %v568 = vsel %vm275, %v553, %v567
  %v569 = vsel %vm277, %v554, %v568
  %v570 = vsel %vm279, %v555, %v569
  %v571 = vsel %vm281, %v556, %v570
  %v572 = vsel %vm283, %v557, %v571
  %v573 = vsel %vm272, %v559, %v558
  %v574 = vsel %vm273, %v560, %v573
  %v575 = vsel %vm275, %v561, %v574
  %v576 = vsel %vm277, %v562, %v575
  %v577 = vsel %vm279, %v563, %v576
  %v578 = vsel %vm281, %v564, %v577
  %v579 = vsel %vm283, %v565, %v578
  %v582 = vadd.f32 %v500, %v572
  %v583 = vadd.f32 %v501, %v579
  %vm584 = vcmp.ge.f32.partialorder %v582, 0.0
  %vm585 = vcmp.ge.f32.partialorder %v583, 0.0
  %v586 = vmul.f32 %v582, 0.2
  %v587 = vmul.f32 %v583, 0.2
  %v588 = vsel %vm584, %v582, %v586
  %v589 = vsel %vm585, %v583, %v587
  %v590 = vsel %vm250, -1e+30, %v588
  %v591 = vsel %vm251, -1e+30, %v589
  %v592 = vsel %vm401, %v590, -inf
  %593 = vmax.xlane.f32.xlu0 %v592
  %v594 = vpop.xlane.xlu0 %593
  %v595 = vsel %vm401, %v591, -inf
  %596 = vmax.xlane.f32.xlu0 %v595
  %v597 = vpop.xlane.xlu0 %596
  %v598 = vsub.f32 %v590, %v594
  %v599 = vsub.f32 %v591, %v597
  %v600 = vmul.f32 %v598, 1.442695
  %v601 = vpow.pop %v600
  %v602 = vmul.f32 %v599, 1.442695
  %v603 = vpow.pop %v602
  %v604 = vsel %vm401, %v601, 0.0
  %605 = vadd.xlane.f32.xlu0 %v604
  %v606 = vpop.xlane.xlu0 %605
  %v607 = vsel %vm401, %v603, 0.0
  %608 = vadd.xlane.f32.xlu0 %v607
  %v609 = vpop.xlane.xlu0 %608
  %v610 = vrcp.pop %v606
  %v611 = vrcp.pop %v609
  %v612 = vmul.f32 %v601, %v610
  %v613 = vmul.f32 %v603, %v611
  %614 = vrot.lane.b32.xlu0 %v73, 120
  %v615 = vpop.permute.xlu0 %614
  %v618 = vsel %vm401, %v612, 0
  %620 = vmatpush.msra.mxu0 0.0
  %621 = vmatpush.msra.mxu0 0.0
  %622 = vmatpush.msra.mxu0 0.0
  %623 = vmatpush.msra.mxu0 0.0
  %624 = vmatpush.msra.mxu0 0.0
  %625 = vmatpush.msra.mxu0 0.0
  %626 = vmatpush.msra.mxu0 0.0
  %627 = vmatpush.msra.mxu0 0.0
  %628 = vmatpush.msra.mxu0 0.0
  %629 = vmatpush.msra.mxu0 0.0
  %630 = vmatpush.msra.mxu0 0.0
  %631 = vmatpush.msra.mxu0 0.0
  %632 = vmatpush.msra.mxu0 0.0
  %633 = vmatpush.msra.mxu0 0.0
  %634 = vmatpush.msra.mxu0 0.0
  %635 = vmatpush.msra.mxu0 %v615
  %636 = vmatmul.f32.gmra.mxu0 %v618
  %v637 = vpop.f32.mrf.mxu0
  %v638 = vadd.f32 0.0, %v637
  %639 = vdwg.mxu0
  %640 = vrot.lane.b32.xlu0 %v76, 120
  %v641 = vpop.permute.xlu0 %640
  %v644 = vsel %vm401, %v613, 0
  %646 = vmatpush.msra.mxu0 0.0
  %647 = vmatpush.msra.mxu0 0.0
  %648 = vmatpush.msra.mxu0 0.0
  %649 = vmatpush.msra.mxu0 0.0
  %650 = vmatpush.msra.mxu0 0.0
  %651 = vmatpush.msra.mxu0 0.0
  %652 = vmatpush.msra.mxu0 0.0
  %653 = vmatpush.msra.mxu0 0.0
  %654 = vmatpush.msra.mxu0 0.0
  %655 = vmatpush.msra.mxu0 0.0
  %656 = vmatpush.msra.mxu0 0.0
  %657 = vmatpush.msra.mxu0 0.0
  %658 = vmatpush.msra.mxu0 0.0
  %659 = vmatpush.msra.mxu0 0.0
  %660 = vmatpush.msra.mxu0 0.0
  %661 = vmatpush.msra.mxu0 %v641
  %662 = vmatmul.f32.gmra.mxu0 %v644
  %v663 = vpop.f32.mrf.mxu0
  %v664 = vadd.f32 0.0, %v663
  %665 = vdwg.mxu0
  %666 = vset.pattern.permute.xlu0 2
  %667 = vperm.xlu0 %666, %v106
  %v668 = vpop.permute.xlu0 %667
  %670 = vset.pattern.permute.xlu0 2
  %671 = vperm.xlu0 %670, %v109
  %v672 = vpop.permute.xlu0 %671
  %674 = vset.pattern.permute.xlu0 6
  %675 = vperm.xlu0 %674, %v106
  %v676 = vpop.permute.xlu0 %675
  %677 = vset.pattern.permute.xlu0 6
  %678 = vperm.xlu0 %677, %v109
  %v679 = vpop.permute.xlu0 %678
  %v680 = vperm.slane %v676, %v269
  %v681 = vperm.slane %v679, %v269
  %v682 = vsel %vm273, %v680, %v680
  %v683 = vsel %vm275, %v680, %v682
  %v684 = vsel %vm277, %v680, %v683
  %v685 = vsel %vm279, %v680, %v684
  %v686 = vsel %vm281, %v680, %v685
  %v687 = vsel %vm283, %v680, %v686
  %v688 = vsel %vm273, %v681, %v681
  %v689 = vsel %vm275, %v681, %v688
  %v690 = vsel %vm277, %v681, %v689
  %v691 = vsel %vm279, %v681, %v690
  %v692 = vsel %vm281, %v681, %v691
  %v693 = vsel %vm283, %v681, %v692
  %v696 = vadd.f32 %v668, %v687
  %v697 = vadd.f32 %v672, %v693
  %698 = vset.pattern.permute.xlu0 2
  %699 = vperm.xlu0 %698, %v201
  %v700 = vpop.permute.xlu0 %699
  %701 = vset.pattern.permute.xlu0 2
  %702 = vperm.xlu0 %701, %v204
  %v703 = vpop.permute.xlu0 %702
  %704 = vset.pattern.permute.xlu0 2
  %705 = vperm.xlu0 %704, %v207
  %v706 = vpop.permute.xlu0 %705
  %707 = vset.pattern.permute.xlu0 2
  %708 = vperm.xlu0 %707, %v210
  %v709 = vpop.permute.xlu0 %708
  %710 = vset.pattern.permute.xlu0 2
  %711 = vperm.xlu0 %710, %v213
  %v712 = vpop.permute.xlu0 %711
  %713 = vset.pattern.permute.xlu0 2
  %714 = vperm.xlu0 %713, %v216
  %v715 = vpop.permute.xlu0 %714
  %716 = vset.pattern.permute.xlu0 2
  %717 = vperm.xlu0 %716, %v219
  %v718 = vpop.permute.xlu0 %717
  %719 = vset.pattern.permute.xlu0 2
  %720 = vperm.xlu0 %719, %v222
  %v721 = vpop.permute.xlu0 %720
  %722 = vset.pattern.permute.xlu0 2
  %723 = vperm.xlu0 %722, %v225
  %v724 = vpop.permute.xlu0 %723
  %725 = vset.pattern.permute.xlu0 2
  %726 = vperm.xlu0 %725, %v228
  %v727 = vpop.permute.xlu0 %726
  %728 = vset.pattern.permute.xlu0 2
  %729 = vperm.xlu0 %728, %v231
  %v730 = vpop.permute.xlu0 %729
  %731 = vset.pattern.permute.xlu0 2
  %732 = vperm.xlu0 %731, %v234
  %v733 = vpop.permute.xlu0 %732
  %734 = vset.pattern.permute.xlu0 2
  %735 = vperm.xlu0 %734, %v237
  %v736 = vpop.permute.xlu0 %735
  %737 = vset.pattern.permute.xlu0 2
  %738 = vperm.xlu0 %737, %v240
  %v739 = vpop.permute.xlu0 %738
  %740 = vset.pattern.permute.xlu0 2
  %741 = vperm.xlu0 %740, %v243
  %v742 = vpop.permute.xlu0 %741
  %743 = vset.pattern.permute.xlu0 2
  %744 = vperm.xlu0 %743, %v246
  %v745 = vpop.permute.xlu0 %744
  %v746 = vperm.slane %v700, %v269
  %v747 = vperm.slane %v703, %v269
  %v748 = vperm.slane %v706, %v269
  %v749 = vperm.slane %v709, %v269
  %v750 = vperm.slane %v712, %v269
  %v751 = vperm.slane %v715, %v269
  %v752 = vperm.slane %v718, %v269
  %v753 = vperm.slane %v721, %v269
  %v754 = vperm.slane %v724, %v269
  %v755 = vperm.slane %v727, %v269
  %v756 = vperm.slane %v730, %v269
  %v757 = vperm.slane %v733, %v269
  %v758 = vperm.slane %v736, %v269
  %v759 = vperm.slane %v739, %v269
  %v760 = vperm.slane %v742, %v269
  %v761 = vperm.slane %v745, %v269
  %v762 = vsel %vm272, %v747, %v746
  %v763 = vsel %vm273, %v748, %v762
  %v764 = vsel %vm275, %v749, %v763
  %v765 = vsel %vm277, %v750, %v764
  %v766 = vsel %vm279, %v751, %v765
  %v767 = vsel %vm281, %v752, %v766
  %v768 = vsel %vm283, %v753, %v767
  %v769 = vsel %vm272, %v755, %v754
  %v770 = vsel %vm273, %v756, %v769
  %v771 = vsel %vm275, %v757, %v770
  %v772 = vsel %vm277, %v758, %v771
  %v773 = vsel %vm279, %v759, %v772
  %v774 = vsel %vm281, %v760, %v773
  %v775 = vsel %vm283, %v761, %v774
  %v778 = vadd.f32 %v696, %v768
  %v779 = vadd.f32 %v697, %v775
  %vm780 = vcmp.ge.f32.partialorder %v778, 0.0
  %vm781 = vcmp.ge.f32.partialorder %v779, 0.0
  %v782 = vmul.f32 %v778, 0.2
  %v783 = vmul.f32 %v779, 0.2
  %v784 = vsel %vm780, %v778, %v782
  %v785 = vsel %vm781, %v779, %v783
  %v786 = vsel %vm250, -1e+30, %v784
  %v787 = vsel %vm251, -1e+30, %v785
  %v788 = vsel %vm401, %v786, -inf
  %789 = vmax.xlane.f32.xlu0 %v788
  %v790 = vpop.xlane.xlu0 %789
  %v791 = vsel %vm401, %v787, -inf
  %792 = vmax.xlane.f32.xlu0 %v791
  %v793 = vpop.xlane.xlu0 %792
  %v794 = vsub.f32 %v786, %v790
  %v795 = vsub.f32 %v787, %v793
  %v796 = vmul.f32 %v794, 1.442695
  %v797 = vpow.pop %v796
  %v798 = vmul.f32 %v795, 1.442695
  %v799 = vpow.pop %v798
  %v800 = vsel %vm401, %v797, 0.0
  %801 = vadd.xlane.f32.xlu0 %v800
  %v802 = vpop.xlane.xlu0 %801
  %v803 = vsel %vm401, %v799, 0.0
  %804 = vadd.xlane.f32.xlu0 %v803
  %v805 = vpop.xlane.xlu0 %804
  %v806 = vrcp.pop %v802
  %v807 = vrcp.pop %v805
  %v808 = vmul.f32 %v797, %v806
  %v809 = vmul.f32 %v799, %v807
  %810 = vrot.lane.b32.xlu0 %v73, 112
  %v811 = vpop.permute.xlu0 %810
  %v814 = vsel %vm401, %v808, 0
  %816 = vmatpush.msra.mxu0 0.0
  %817 = vmatpush.msra.mxu0 0.0
  %818 = vmatpush.msra.mxu0 0.0
  %819 = vmatpush.msra.mxu0 0.0
  %820 = vmatpush.msra.mxu0 0.0
  %821 = vmatpush.msra.mxu0 0.0
  %822 = vmatpush.msra.mxu0 0.0
  %823 = vmatpush.msra.mxu0 0.0
  %824 = vmatpush.msra.mxu0 0.0
  %825 = vmatpush.msra.mxu0 0.0
  %826 = vmatpush.msra.mxu0 0.0
  %827 = vmatpush.msra.mxu0 0.0
  %828 = vmatpush.msra.mxu0 0.0
  %829 = vmatpush.msra.mxu0 0.0
  %830 = vmatpush.msra.mxu0 0.0
  %831 = vmatpush.msra.mxu0 %v811
  %832 = vmatmul.f32.gmra.mxu0 %v814
  %v833 = vpop.f32.mrf.mxu0
  %v834 = vadd.f32 0.0, %v833
  %835 = vdwg.mxu0
  %836 = vrot.lane.b32.xlu0 %v76, 112
  %v837 = vpop.permute.xlu0 %836
  %v840 = vsel %vm401, %v809, 0
  %842 = vmatpush.msra.mxu0 0.0
  %843 = vmatpush.msra.mxu0 0.0
  %844 = vmatpush.msra.mxu0 0.0
  %845 = vmatpush.msra.mxu0 0.0
  %846 = vmatpush.msra.mxu0 0.0
  %847 = vmatpush.msra.mxu0 0.0
  %848 = vmatpush.msra.mxu0 0.0
  %849 = vmatpush.msra.mxu0 0.0
  %850 = vmatpush.msra.mxu0 0.0
  %851 = vmatpush.msra.mxu0 0.0
  %852 = vmatpush.msra.mxu0 0.0
  %853 = vmatpush.msra.mxu0 0.0
  %854 = vmatpush.msra.mxu0 0.0
  %855 = vmatpush.msra.mxu0 0.0
  %856 = vmatpush.msra.mxu0 0.0
  %857 = vmatpush.msra.mxu0 %v837
  %858 = vmatmul.f32.gmra.mxu0 %v840
  %v859 = vpop.f32.mrf.mxu0
  %v860 = vadd.f32 0.0, %v859
  %861 = vdwg.mxu0
  %862 = vset.pattern.permute.xlu0 3
  %863 = vperm.xlu0 %862, %v106
  %v864 = vpop.permute.xlu0 %863
  %866 = vset.pattern.permute.xlu0 3
  %867 = vperm.xlu0 %866, %v109
  %v868 = vpop.permute.xlu0 %867
  %870 = vset.pattern.permute.xlu0 7
  %871 = vperm.xlu0 %870, %v106
  %v872 = vpop.permute.xlu0 %871
  %873 = vset.pattern.permute.xlu0 7
  %874 = vperm.xlu0 %873, %v109
  %v875 = vpop.permute.xlu0 %874
  %v876 = vperm.slane %v872, %v269
  %v877 = vperm.slane %v875, %v269
  %v878 = vsel %vm273, %v876, %v876
  %v879 = vsel %vm275, %v876, %v878
  %v880 = vsel %vm277, %v876, %v879
  %v881 = vsel %vm279, %v876, %v880
  %v882 = vsel %vm281, %v876, %v881
  %v883 = vsel %vm283, %v876, %v882
  %v884 = vsel %vm273, %v877, %v877
  %v885 = vsel %vm275, %v877, %v884
  %v886 = vsel %vm277, %v877, %v885
  %v887 = vsel %vm279, %v877, %v886
  %v888 = vsel %vm281, %v877, %v887
  %v889 = vsel %vm283, %v877, %v888
  %v892 = vadd.f32 %v864, %v883
  %v893 = vadd.f32 %v868, %v889
  %894 = vset.pattern.permute.xlu0 3
  %895 = vperm.xlu0 %894, %v201
  %v896 = vpop.permute.xlu0 %895
  %897 = vset.pattern.permute.xlu0 3
  %898 = vperm.xlu0 %897, %v204
  %v899 = vpop.permute.xlu0 %898
  %900 = vset.pattern.permute.xlu0 3
  %901 = vperm.xlu0 %900, %v207
  %v902 = vpop.permute.xlu0 %901
  %903 = vset.pattern.permute.xlu0 3
  %904 = vperm.xlu0 %903, %v210
  %v905 = vpop.permute.xlu0 %904
  %906 = vset.pattern.permute.xlu0 3
  %907 = vperm.xlu0 %906, %v213
  %v908 = vpop.permute.xlu0 %907
  %909 = vset.pattern.permute.xlu0 3
  %910 = vperm.xlu0 %909, %v216
  %v911 = vpop.permute.xlu0 %910
  %912 = vset.pattern.permute.xlu0 3
  %913 = vperm.xlu0 %912, %v219
  %v914 = vpop.permute.xlu0 %913
  %915 = vset.pattern.permute.xlu0 3
  %916 = vperm.xlu0 %915, %v222
  %v917 = vpop.permute.xlu0 %916
  %918 = vset.pattern.permute.xlu0 3
  %919 = vperm.xlu0 %918, %v225
  %v920 = vpop.permute.xlu0 %919
  %921 = vset.pattern.permute.xlu0 3
  %922 = vperm.xlu0 %921, %v228
  %v923 = vpop.permute.xlu0 %922
  %924 = vset.pattern.permute.xlu0 3
  %925 = vperm.xlu0 %924, %v231
  %v926 = vpop.permute.xlu0 %925
  %927 = vset.pattern.permute.xlu0 3
  %928 = vperm.xlu0 %927, %v234
  %v929 = vpop.permute.xlu0 %928
  %930 = vset.pattern.permute.xlu0 3
  %931 = vperm.xlu0 %930, %v237
  %v932 = vpop.permute.xlu0 %931
  %933 = vset.pattern.permute.xlu0 3
  %934 = vperm.xlu0 %933, %v240
  %v935 = vpop.permute.xlu0 %934
  %936 = vset.pattern.permute.xlu0 3
  %937 = vperm.xlu0 %936, %v243
  %v938 = vpop.permute.xlu0 %937
  %939 = vset.pattern.permute.xlu0 3
  %940 = vperm.xlu0 %939, %v246
  %v941 = vpop.permute.xlu0 %940
  %v942 = vperm.slane %v896, %v269
  %v943 = vperm.slane %v899, %v269
  %v944 = vperm.slane %v902, %v269
  %v945 = vperm.slane %v905, %v269
  %v946 = vperm.slane %v908, %v269
  %v947 = vperm.slane %v911, %v269
  %v948 = vperm.slane %v914, %v269
  %v949 = vperm.slane %v917, %v269
  %v950 = vperm.slane %v920, %v269
  %v951 = vperm.slane %v923, %v269
  %v952 = vperm.slane %v926, %v269
  %v953 = vperm.slane %v929, %v269
  %v954 = vperm.slane %v932, %v269
  %v955 = vperm.slane %v935, %v269
  %v956 = vperm.slane %v938, %v269
  %v957 = vperm.slane %v941, %v269
  %v958 = vsel %vm272, %v943, %v942
  %v959 = vsel %vm273, %v944, %v958
  %v960 = vsel %vm275, %v945, %v959
  %v961 = vsel %vm277, %v946, %v960
  %v962 = vsel %vm279, %v947, %v961
  %v963 = vsel %vm281, %v948, %v962
  %v964 = vsel %vm283, %v949, %v963
  %v965 = vsel %vm272, %v951, %v950
  %v966 = vsel %vm273, %v952, %v965
  %v967 = vsel %vm275, %v953, %v966
  %v968 = vsel %vm277, %v954, %v967
  %v969 = vsel %vm279, %v955, %v968
  %v970 = vsel %vm281, %v956, %v969
  %v971 = vsel %vm283, %v957, %v970
  %v974 = vadd.f32 %v892, %v964
  %v975 = vadd.f32 %v893, %v971
  %vm976 = vcmp.ge.f32.partialorder %v974, 0.0
  %vm977 = vcmp.ge.f32.partialorder %v975, 0.0
  %v978 = vmul.f32 %v974, 0.2
  %v979 = vmul.f32 %v975, 0.2
  %v980 = vsel %vm976, %v974, %v978
  %v981 = vsel %vm977, %v975, %v979
  %v982 = vsel %vm250, -1e+30, %v980
  %v983 = vsel %vm251, -1e+30, %v981
  %v984 = vsel %vm401, %v982, -inf
  %985 = vmax.xlane.f32.xlu0 %v984
  %v986 = vpop.xlane.xlu0 %985
  %v987 = vsel %vm401, %v983, -inf
  %988 = vmax.xlane.f32.xlu0 %v987
  %v989 = vpop.xlane.xlu0 %988
  %v990 = vsub.f32 %v982, %v986
  %v991 = vsub.f32 %v983, %v989
  %v992 = vmul.f32 %v990, 1.442695
  %v993 = vpow.pop %v992
  %v994 = vmul.f32 %v991, 1.442695
  %v995 = vpow.pop %v994
  %v996 = vsel %vm401, %v993, 0.0
  %997 = vadd.xlane.f32.xlu0 %v996
  %v998 = vpop.xlane.xlu0 %997
  %v999 = vsel %vm401, %v995, 0.0
  %1000 = vadd.xlane.f32.xlu0 %v999
  %v1001 = vpop.xlane.xlu0 %1000
  %v1002 = vrcp.pop %v998
  %v1003 = vrcp.pop %v1001
  %v1004 = vmul.f32 %v993, %v1002
  %v1005 = vmul.f32 %v995, %v1003
  %1006 = vrot.lane.b32.xlu0 %v73, 104
  %v1007 = vpop.permute.xlu0 %1006
  %v1010 = vsel %vm401, %v1004, 0
  %1012 = vmatpush.msra.mxu0 0.0
  %1013 = vmatpush.msra.mxu0 0.0
  %1014 = vmatpush.msra.mxu0 0.0
  %1015 = vmatpush.msra.mxu0 0.0
  %1016 = vmatpush.msra.mxu0 0.0
  %1017 = vmatpush.msra.mxu0 0.0
  %1018 = vmatpush.msra.mxu0 0.0
  %1019 = vmatpush.msra.mxu0 0.0
  %1020 = vmatpush.msra.mxu0 0.0
  %1021 = vmatpush.msra.mxu0 0.0
  %1022 = vmatpush.msra.mxu0 0.0
  %1023 = vmatpush.msra.mxu0 0.0
  %1024 = vmatpush.msra.mxu0 0.0
  %1025 = vmatpush.msra.mxu0 0.0
  %1026 = vmatpush.msra.mxu0 0.0
  %1027 = vmatpush.msra.mxu0 %v1007
  %1028 = vmatmul.f32.gmra.mxu0 %v1010
  %v1029 = vpop.f32.mrf.mxu0
  %v1030 = vadd.f32 0.0, %v1029
  %1031 = vdwg.mxu0
  %1032 = vrot.lane.b32.xlu0 %v76, 104
  %v1033 = vpop.permute.xlu0 %1032
  %v1036 = vsel %vm401, %v1005, 0
  %1038 = vmatpush.msra.mxu0 0.0
  %1039 = vmatpush.msra.mxu0 0.0
  %1040 = vmatpush.msra.mxu0 0.0
  %1041 = vmatpush.msra.mxu0 0.0
  %1042 = vmatpush.msra.mxu0 0.0
  %1043 = vmatpush.msra.mxu0 0.0
  %1044 = vmatpush.msra.mxu0 0.0
  %1045 = vmatpush.msra.mxu0 0.0
  %1046 = vmatpush.msra.mxu0 0.0
  %1047 = vmatpush.msra.mxu0 0.0
  %1048 = vmatpush.msra.mxu0 0.0
  %1049 = vmatpush.msra.mxu0 0.0
  %1050 = vmatpush.msra.mxu0 0.0
  %1051 = vmatpush.msra.mxu0 0.0
  %1052 = vmatpush.msra.mxu0 0.0
  %1053 = vmatpush.msra.mxu0 %v1033
  %1054 = vmatmul.f32.gmra.mxu0 %v1036
  %v1055 = vpop.f32.mrf.mxu0
  %v1056 = vadd.f32 0.0, %v1055
  %1057 = vdwg.mxu0
  %1060 = vrot.lane.b32.xlu0 %v638, 8
  %v1061 = vpop.permute.xlu0 %1060
  %1062 = vrot.lane.b32.xlu0 %v664, 8
  %v1063 = vpop.permute.xlu0 %1062
  %1068 = vrot.lane.b32.xlu0 %v834, 16
  %v1069 = vpop.permute.xlu0 %1068
  %1070 = vrot.lane.b32.xlu0 %v860, 16
  %v1071 = vpop.permute.xlu0 %1070
  %1076 = vrot.lane.b32.xlu0 %v1030, 24
  %v1077 = vpop.permute.xlu0 %1076
  %1078 = vrot.lane.b32.xlu0 %v1056, 24
  %v1079 = vpop.permute.xlu0 %1078
  %v1082 = vsel %vm401, %v445, %v1061
  %v1083 = vsel %vm401, %v468, %v1063
  %vm1084 = vcmask 130048
  %v1085 = vsel %vm1084, %v1082, %v1069
  %v1086 = vsel %vm1084, %v1083, %v1071
  %vm1087 = vcmask 195584
  %v1088 = vsel %vm1087, %v1085, %v1077
  %v1089 = vsel %vm1087, %v1086, %v1079
  %v1090 = vld [vmem:[%s8] sm:$0x1]
  %v1092 = vperm.slane %v1090, 0
  %v1094 = vmul.f32 %v38, %v1092
  %v1095 = vmul.f32 %v39, %v1092
  %v1096 = vld [vmem:[%s9] sm:$0x1]
  %v1098 = vperm.slane %v1096, 0
  %v1100 = vadd.f32 %v1094, %v1098
  %v1101 = vadd.f32 %v1095, %v1098
  %v1102 = vadd.f32 %v1088, %v1100
  %v1103 = vadd.f32 %v1089, %v1101
  %1104 = vst.msk [vmem:[%s10] sm:$0xff] %vm48, %v1102
  %1105 = vst.msk [vmem:[%s10 + $0x8] sm:$0xff] %vm48, %v1103
  %v1106 = vsel %vm48, %v1102, 0.0
  %v1107 = vsel %vm48, %v1103, 0.0
  %v1108 = vadd.f32 %v1106, %v1107
  %v1109 = vrot.slane %v1108, 4
  %v1110 = vadd.f32 %v1108, %v1109
  %v1111 = vrot.slane %v1110, 2
  %v1112 = vadd.f32 %v1110, %v1111
  %v1113 = vrot.slane %v1112, 1
  %v1114 = vadd.f32 %v1112, %v1113
  %vm1115 = vcmask 253952
  %1116 = vst.msk [vmem:[%s11] sm:$0x1] %vm1115, %v1114
  %v1117 = vmul.f32 %v1102, %v1102
  %v1118 = vmul.f32 %v1103, %v1103
  %v1119 = vsel %vm48, %v1117, 0.0
  %v1120 = vsel %vm48, %v1118, 0.0
  %v1121 = vadd.f32 %v1119, %v1120
  %v1122 = vrot.slane %v1121, 4
  %v1123 = vadd.f32 %v1121, %v1122
  %v1124 = vrot.slane %v1123, 2
  %v1125 = vadd.f32 %v1123, %v1124
  %v1126 = vrot.slane %v1125, 1
  %v1127 = vadd.f32 %v1125, %v1126
  %1128 = vst.msk [vmem:[%s12] sm:$0x1] %vm1115, %v1127
  // Predicated region
  $region42: #{graph_attention_encoder.12} parent=0 // pred_check
    _
  $region43: #{graph_attention_encoder.12} parent=0 // pred_check_branch
    %1130 = sbr.rel (0) target = $region45
  $region44: #{graph_attention_encoder.12} parent=0 // pred_region
    _
  $region45: #{graph_attention_encoder.12} parent=0 // pred_fallthru
    _
  // Predicated region
  $region46: #{graph_attention_encoder.12} parent=0 // pred_check
    _
  $region47: #{graph_attention_encoder.12} parent=0 // pred_check_branch
    %1132 = sbr.rel (0) target = $region49
  $region48: #{graph_attention_encoder.12} parent=0 // pred_region
    _
  $region49: #{graph_attention_encoder.12} parent=0 // pred_fallthru
    _
  // Predicated region
  $region50: #{graph_attention_encoder.12} parent=0 // pred_check
    _
  $region51: #{graph_attention_encoder.12} parent=0 // pred_check_branch
    %1134 = sbr.rel (0) target = $region53
  $region52: #{graph_attention_encoder.12} parent=0 // pred_region
    _
  $region53: #{graph_attention_encoder.12} parent=0 // pred_fallthru
    _
  // Predicated region
  $region54: #{graph_attention_encoder.12} parent=0 // pred_check
    _
  $region55: #{graph_attention_encoder.12} parent=0 // pred_check_branch
    %1136 = sbr.rel (0) target = $region57
  $region56: #{graph_attention_encoder.12} parent=0 // pred_region
    _
  $region57: #{graph_attention_encoder.12} parent=0 // pred_fallthru
    _
  // Predicated region
  $region58: #{graph_attention_encoder.12} parent=0 // pred_check
    _
  $region59: #{graph_attention_encoder.12} parent=0 // pred_check_branch
    %1138 = sbr.rel (0) target = $region61
  $region60: #{graph_attention_encoder.12} parent=0 // pred_region
    _
  $region61: #{graph_attention_encoder.12} parent=0 // pred_fallthru
    _
  // Predicated region
  $region62: #{graph_attention_encoder.12} parent=0 // pred_check
    _
  $region63: #{graph_attention_encoder.12} parent=0 // pred_check_branch
    %1140 = sbr.rel (0) target = $region65
  $region64: #{graph_attention_encoder.12} parent=0 // pred_region
    _
  $region65: #{graph_attention_encoder.12} parent=0 // pred_fallthru
    _

</llo_original>
